<compile_context>
chip_gen: v7x
topology: tpu7x:2x2x1
jax: 0.10.0
libtpu: 0.0.40
codegen_flags: <defaults>
</compile_context>

<pallas_src>
import functools

import numpy as np
import jax
import jax.numpy as jnp
from jax.experimental import pallas as pl
from jax.experimental.pallas import tpu as pltpu


# ----------------------- architecture constants (from the module) -----------
IN_H = IN_W = 28                     # expected_input_size
C1, K1, ST1 = 8, 3, 3                # conv1: 1 -> 8,   k=3, s=3
H1 = (IN_H - K1) // ST1 + 1          # 9
C2, K2, ST2 = 16, 3, 2               # conv2: 8 -> 16,  k=3, s=2
H2 = (H1 - K2) // ST2 + 1            # 4
C3, K3, ST3 = 384, 2, 2              # conv3: 16 -> 384, k=2, s=2
H3 = (H2 - K3) // ST3 + 1            # 2
NCLS = 10                            # fc: 1536 -> 10
LEAK = 0.01                          # torch LeakyReLU default negative_slope


def _leaky(y):
    return jnp.where(y >= 0.0, y, LEAK * y)


# ------------------------------- Pallas kernel -------------------------------
def _pr_cnn_kernel(p1_ref, w1_ref, b1_ref,
                   s2_ref, w2_ref, b2_ref,
                   s3_ref, w3_ref, b3_ref,
                   sf_ref, wf_ref, bf_ref,
                   out_ref):
    f32 = jnp.float32

    # conv1: non-overlapping -> already im2col'd; one matmul + bias + LeakyReLU
    a1 = jnp.dot(p1_ref[...], w1_ref[...], preferred_element_type=f32) + b1_ref[...]
    a1 = _leaky(a1)                                   # (NT*81, 8)

    # conv2 (k=3, s=2): sum over 9 taps of (gather-by-matmul) @ per-tap weight
    acc2 = None
    for t in range(K2 * K2):
        g = jnp.dot(s2_ref[t], a1, preferred_element_type=f32)    # (NT*16, 8)
        term = jnp.dot(g, w2_ref[t], preferred_element_type=f32)  # (NT*16, 16)
        acc2 = term if acc2 is None else acc2 + term
    a2 = acc2 + b2_ref[...]
    # TODO(synk): Dropout2d layers are inference-mode identities (no RNG masking).

    # conv3 (k=2, s=2) + LeakyReLU
    acc3 = None
    for t in range(K3 * K3):
        g = jnp.dot(s3_ref[t], a2, preferred_element_type=f32)    # (NT*4, 16)
        term = jnp.dot(g, w3_ref[t], preferred_element_type=f32)  # (NT*4, 384)
        acc3 = term if acc3 is None else acc3 + term
    a3 = _leaky(acc3 + b3_ref[...])                   # (NT*4, 384)

    # fc over torch's NCHW flatten == a k=2, s=2 "conv" down to (NT, 10)
    accf = None
    for t in range(H3 * H3):
        g = jnp.dot(sf_ref[t], a3, preferred_element_type=f32)    # (NT, 384)
        term = jnp.dot(g, wf_ref[t], preferred_element_type=f32)  # (NT, 10)
        accf = term if accf is None else accf + term
    out_ref[...] = (accf + bf_ref[...]).astype(out_ref.dtype)


# --------------------------- constant gather matrices -------------------------
def _selection_matrices(tile_n, in_h, in_w, k, stride):
    """One-hot S_t (per kernel tap t=(i,j)) such that, for row-major NHWC rows:
       (S_t @ A)[(n*OH+p)*OW+q, c] = A[(n*in_h + stride*p+i)*in_w + stride*q+j, c]."""
    oh = (in_h - k) // stride + 1
    ow = (in_w - k) // stride + 1
    mats = np.zeros((k * k, tile_n * oh * ow, tile_n * in_h * in_w), np.float32)
    for i in range(k):
        for j in range(k):
            t = i * k + j
            for n in range(tile_n):
                for p in range(oh):
                    for q in range(ow):
                        r = (n * oh + p) * ow + q
                        m = (n * in_h + stride * p + i) * in_w + (stride * q + j)
                        mats[t, r, m] = 1.0
    return jnp.asarray(mats)


def prepare_params(params, tile_n):
    """One-time weight permutations (NHWC / torch-flatten-order absorbed here)
    plus the constant gather matrices for a given batch tile."""
    w2 = jnp.asarray(params["w2"], jnp.float32)        # (16, 8, 3, 3)
    w3 = jnp.asarray(params["w3"], jnp.float32)        # (384, 16, 2, 2)
    wfc = jnp.asarray(params["wfc"], jnp.float32)      # (10, 1536)
    return {
        "tile_n": tile_n,
        "w1": jnp.asarray(params["w1"], jnp.float32).reshape(C1, K1 * K1).T,      # (9, 8)
        "b1": jnp.asarray(params["b1"], jnp.float32).reshape(1, C1),
        "w2": jnp.transpose(w2, (2, 3, 1, 0)).reshape(K2 * K2, C1, C2),           # (9, 8, 16)
        "b2": jnp.asarray(params["b2"], jnp.float32).reshape(1, C2),
        "w3": jnp.transpose(w3, (2, 3, 1, 0)).reshape(K3 * K3, C2, C3),           # (4, 16, 384)
        "b3": jnp.asarray(params["b3"], jnp.float32).reshape(1, C3),
        "wf": jnp.transpose(wfc.reshape(NCLS, C3, H3, H3),
                            (2, 3, 1, 0)).reshape(H3 * H3, C3, NCLS),             # (4, 384, 10)
        "bf": jnp.asarray(params["bfc"], jnp.float32).reshape(1, NCLS),
        "s2": _selection_matrices(tile_n, H1, H1, K2, ST2),   # (9, nt*16, nt*81)
        "s3": _selection_matrices(tile_n, H2, H2, K3, ST3),   # (4, nt*4,  nt*16)
        "sf": _selection_matrices(tile_n, H3, H3, H3, H3),    # (4, nt,    nt*4)
    }


# ------------------------------- forward wrapper ------------------------------
def pr_cnn_forward(x, prep):
    """x: (N, 1, 28, 28) f32 NCHW -> logits (N, 10)."""
    N = x.shape[0]
    nt = prep["tile_n"]

    # conv1 im2col: stride == kernel -> a single reshape/transpose of the input
    crop = H1 * ST1                                   # 27
    p1 = (x[:, 0, :crop, :crop]
          .reshape(N, H1, ST1, H1, ST1)
          .transpose(0, 1, 3, 2, 4)
          .reshape(N * H1 * H1, K1 * K1)
          .astype(jnp.float32))                       # (N*81, 9), (i,j) column order

    pad = (-N) % nt
    if pad:
        p1 = jnp.concatenate(
            [p1, jnp.zeros((pad * H1 * H1, K1 * K1), jnp.float32)], axis=0)
    n_tot = N + pad
    steps = n_tot // nt

    rows1 = nt * H1 * H1          # 81 * nt
    rows2 = nt * H2 * H2          # 16 * nt
    rows3 = nt * H3 * H3          # 4 * nt

    const2 = lambda i: (0, 0)
    const3 = lambda i: (0, 0, 0)
    in_specs = [
        pl.BlockSpec((rows1, K1 * K1), lambda i: (i, 0)),     # p1 (batch-tiled)
        pl.BlockSpec((K1 * K1, C1), const2),                  # w1
        pl.BlockSpec((1, C1), const2),                        # b1
        pl.BlockSpec((K2 * K2, rows2, rows1), const3),        # s2
        pl.BlockSpec((K2 * K2, C1, C2), const3),              # w2
        pl.BlockSpec((1, C2), const2),                        # b2
        pl.BlockSpec((K3 * K3, rows3, rows2), const3),        # s3
        pl.BlockSpec((K3 * K3, C2, C3), const3),              # w3
        pl.BlockSpec((1, C3), const2),                        # b3
        pl.BlockSpec((H3 * H3, nt, rows3), const3),           # sf
        pl.BlockSpec((H3 * H3, C3, NCLS), const3),            # wf
        pl.BlockSpec((1, NCLS), const2),                      # bf
    ]
    out_specs = pl.BlockSpec((nt, NCLS), lambda i: (i, 0))

    flops = steps * (
        2 * rows1 * (K1 * K1) * C1
        + (K2 * K2) * 2 * (rows2 * rows1 * C1 + rows2 * C1 * C2)
        + (K3 * K3) * 2 * (rows3 * rows2 * C2 + rows3 * C2 * C3)
        + (H3 * H3) * 2 * (nt * rows3 * C3 + nt * C3 * NCLS))
    bytes_accessed = 4 * (
        n_tot * H1 * H1 * K1 * K1 + n_tot * NCLS
        + K1 * K1 * C1 + C1
        + (K2 * K2) * (rows2 * rows1 + C1 * C2) + C2
        + (K3 * K3) * (rows3 * rows2 + C2 * C3) + C3
        + (H3 * H3) * (nt * rows3 + C3 * NCLS) + NCLS)

    out = pl.pallas_call(
        _pr_cnn_kernel,
        out_shape=jax.ShapeDtypeStruct((n_tot, NCLS), jnp.float32),
        grid=(steps,),
        in_specs=in_specs,
        out_specs=out_specs,
        compiler_params=pltpu.CompilerParams(
            dimension_semantics=("parallel",)),
        cost_estimate=pl.CostEstimate(
            flops=flops, transcendentals=0, bytes_accessed=bytes_accessed),
    )(p1, prep["w1"], prep["b1"],
      prep["s2"], prep["w2"], prep["b2"],
      prep["s3"], prep["w3"], prep["b3"],
      prep["sf"], prep["wf"], prep["bf"])
    return out[:N]


# ------------------------------ reference + init ------------------------------
def ref_forward(x, params):
    hp = jax.lax.Precision.HIGHEST

    def conv(h, w, b, s):
        y = jax.lax.conv_general_dilated(
            h, w, (s, s), "VALID",
            dimension_numbers=("NCHW", "OIHW", "NCHW"), precision=hp)
        return y + b.reshape(1, -1, 1, 1)

    y = conv(x, params["w1"], params["b1"], ST1)
    y = jnp.where(y >= 0, y, LEAK * y)
    y = conv(y, params["w2"], params["b2"], ST2)
    y = conv(y, params["w3"], params["b3"], ST3)
    y = jnp.where(y >= 0, y, LEAK * y)
    y = y.reshape(y.shape[0], -1)
    return jnp.dot(y, params["wfc"].T, precision=hp) + params["bfc"]


def init_params(key):
    ks = jax.random.split(key, 8)

    def nrm(k, shape, scale=0.1):
        return (scale * jax.random.normal(k, shape)).astype(jnp.float32)

    return {
        "w1": nrm(ks[0], (C1, 1, K1, K1)),    "b1": nrm(ks[1], (C1,)),
        "w2": nrm(ks[2], (C2, C1, K2, K2)),   "b2": nrm(ks[3], (C2,)),
        "w3": nrm(ks[4], (C3, C2, K3, K3)),   "b3": nrm(ks[5], (C3,)),
        "wfc": nrm(ks[6], (NCLS, C3 * H3 * H3)), "bfc": nrm(ks[7], (NCLS,)),
    }


if __name__ == "__main__":
    key = jax.random.PRNGKey(0)
    pkey, xkey = jax.random.split(key)
    params = init_params(pkey)
    # expected_input_size = (28, 28), single input channel, small batch of 2
    x = jax.random.normal(xkey, (2, 1, IN_H, IN_W), dtype=jnp.float32)

    tile_n = min(x.shape[0], 8)
    prep = prepare_params(params, tile_n)        # one-time weight prep

    fwd = jax.jit(lambda xx: pr_cnn_forward(xx, prep))
    out = jax.block_until_ready(fwd(x))

    assert out.shape == (2, NCLS), out.shape
    assert bool(jnp.all(jnp.isfinite(out)))

    ref = jax.block_until_ready(ref_forward(x, params))
    err = float(jnp.max(jnp.abs(out - ref)))
    assert jnp.allclose(out, ref, atol=5e-3, rtol=5e-3), err

    print("KERNEL_OK")
</pallas_src>

<mosaic_0001>
module attributes {stable_mosaic.version = 11 : i64} {
  func.func @_pr_cnn_kernel(%arg0: i32, %arg1: memref<162x9xf32, #tpu.memory_space<vmem>>, %arg2: memref<9x8xf32, #tpu.memory_space<vmem>>, %arg3: memref<1x8xf32, #tpu.memory_space<vmem>>, %arg4: memref<9x32x162xf32, #tpu.memory_space<vmem>>, %arg5: memref<9x8x16xf32, #tpu.memory_space<vmem>>, %arg6: memref<1x16xf32, #tpu.memory_space<vmem>>, %arg7: memref<4x8x32xf32, #tpu.memory_space<vmem>>, %arg8: memref<4x16x384xf32, #tpu.memory_space<vmem>>, %arg9: memref<1x384xf32, #tpu.memory_space<vmem>>, %arg10: memref<4x2x8xf32, #tpu.memory_space<vmem>>, %arg11: memref<4x384x10xf32, #tpu.memory_space<vmem>>, %arg12: memref<1x10xf32, #tpu.memory_space<vmem>>, %arg13: memref<2x10xf32, #tpu.memory_space<vmem>>) attributes {dimension_semantics = [#tpu.dimension_semantics<parallel>], iteration_bounds = array<i64: 1>, scalar_prefetch = 0 : i64, scratch_operands = 0 : i64, tpu.core_type = #tpu.core_type<tc>, window_params = [{transform_indices = @transform_0, window_bounds = array<i64: 162, 9>}, {pipeline_mode = #tpu.pipeline_mode<synchronous>, transform_indices = @transform_1, window_bounds = array<i64: 9, 8>}, {pipeline_mode = #tpu.pipeline_mode<synchronous>, transform_indices = @transform_2, window_bounds = array<i64: 1, 8>}, {pipeline_mode = #tpu.pipeline_mode<synchronous>, transform_indices = @transform_3, window_bounds = array<i64: 9, 32, 162>}, {pipeline_mode = #tpu.pipeline_mode<synchronous>, transform_indices = @transform_4, window_bounds = array<i64: 9, 8, 16>}, {pipeline_mode = #tpu.pipeline_mode<synchronous>, transform_indices = @transform_5, window_bounds = array<i64: 1, 16>}, {pipeline_mode = #tpu.pipeline_mode<synchronous>, transform_indices = @transform_6, window_bounds = array<i64: 4, 8, 32>}, {pipeline_mode = #tpu.pipeline_mode<synchronous>, transform_indices = @transform_7, window_bounds = array<i64: 4, 16, 384>}, {pipeline_mode = #tpu.pipeline_mode<synchronous>, transform_indices = @transform_8, window_bounds = array<i64: 1, 384>}, {pipeline_mode = #tpu.pipeline_mode<synchronous>, transform_indices = @transform_9, window_bounds = array<i64: 4, 2, 8>}, {pipeline_mode = #tpu.pipeline_mode<synchronous>, transform_indices = @transform_10, window_bounds = array<i64: 4, 384, 10>}, {pipeline_mode = #tpu.pipeline_mode<synchronous>, transform_indices = @transform_11, window_bounds = array<i64: 1, 10>}, {transform_indices = @transform_12, window_bounds = array<i64: 2, 10>}]} {
    %c0 = arith.constant 0 : index
    %c0_0 = arith.constant 0 : index
    %0 = vector.load %arg1[%c0, %c0_0] : memref<162x9xf32, #tpu.memory_space<vmem>>, vector<162x9xf32>
    %c0_1 = arith.constant 0 : index
    %c0_2 = arith.constant 0 : index
    %1 = vector.load %arg2[%c0_1, %c0_2] : memref<9x8xf32, #tpu.memory_space<vmem>>, vector<9x8xf32>
    %cst = arith.constant dense<0.000000e+00> : vector<162x8xf32>
    %2 = tpu.matmul %0, %1, %cst {dimension_numbers = #tpu.dot_dimension_numbers<[1], [0], [0], [1], [0, 0, 1, 1], [], []>} : vector<162x9xf32>, vector<9x8xf32>, vector<162x8xf32> -> vector<162x8xf32>
    %c0_3 = arith.constant 0 : index
    %c0_4 = arith.constant 0 : index
    %3 = vector.load %arg3[%c0_3, %c0_4] : memref<1x8xf32, #tpu.memory_space<vmem>>, vector<1x8xf32>
    %4 = vector.broadcast %3 : vector<1x8xf32> to vector<162x8xf32>
    %5 = arith.addf %2, %4 : vector<162x8xf32>
    %cst_5 = arith.constant 0.000000e+00 : f32
    %6 = vector.broadcast %cst_5 : f32 to vector<162x8xf32>
    %7 = arith.cmpf oge, %5, %6 : vector<162x8xf32>
    %cst_6 = arith.constant 0.00999999977 : f32
    %8 = vector.broadcast %cst_6 : f32 to vector<162x8xf32>
    %9 = arith.mulf %8, %5 : vector<162x8xf32>
    %10 = arith.select %7, %5, %9 : vector<162x8xi1>, vector<162x8xf32>
    %c0_7 = arith.constant 0 : index
    %c0_8 = arith.constant 0 : index
    %c0_9 = arith.constant 0 : index
    %11 = vector.load %arg4[%c0_7, %c0_8, %c0_9] : memref<9x32x162xf32, #tpu.memory_space<vmem>>, vector<1x32x162xf32>
    %12 = vector.shape_cast %11 : vector<1x32x162xf32> to vector<32x162xf32>
    %cst_10 = arith.constant dense<0.000000e+00> : vector<32x8xf32>
    %13 = tpu.matmul %12, %10, %cst_10 {dimension_numbers = #tpu.dot_dimension_numbers<[1], [0], [0], [1], [0, 0, 1, 1], [], []>} : vector<32x162xf32>, vector<162x8xf32>, vector<32x8xf32> -> vector<32x8xf32>
    %c0_11 = arith.constant 0 : index
    %c0_12 = arith.constant 0 : index
    %c0_13 = arith.constant 0 : index
    %14 = vector.load %arg5[%c0_11, %c0_12, %c0_13] : memref<9x8x16xf32, #tpu.memory_space<vmem>>, vector<1x8x16xf32>
    %15 = vector.shape_cast %14 : vector<1x8x16xf32> to vector<8x16xf32>
    %cst_14 = arith.constant dense<0.000000e+00> : vector<32x16xf32>
    %16 = tpu.matmul %13, %15, %cst_14 {dimension_numbers = #tpu.dot_dimension_numbers<[1], [0], [0], [1], [0, 0, 1, 1], [], []>} : vector<32x8xf32>, vector<8x16xf32>, vector<32x16xf32> -> vector<32x16xf32>
    %c1 = arith.constant 1 : index
    %c0_15 = arith.constant 0 : index
    %c0_16 = arith.constant 0 : index
    %17 = vector.load %arg4[%c1, %c0_15, %c0_16] : memref<9x32x162xf32, #tpu.memory_space<vmem>>, vector<1x32x162xf32>
    %18 = vector.shape_cast %17 : vector<1x32x162xf32> to vector<32x162xf32>
    %cst_17 = arith.constant dense<0.000000e+00> : vector<32x8xf32>
    %19 = tpu.matmul %18, %10, %cst_17 {dimension_numbers = #tpu.dot_dimension_numbers<[1], [0], [0], [1], [0, 0, 1, 1], [], []>} : vector<32x162xf32>, vector<162x8xf32>, vector<32x8xf32> -> vector<32x8xf32>
    %c1_18 = arith.constant 1 : index
    %c0_19 = arith.constant 0 : index
    %c0_20 = arith.constant 0 : index
    %20 = vector.load %arg5[%c1_18, %c0_19, %c0_20] : memref<9x8x16xf32, #tpu.memory_space<vmem>>, vector<1x8x16xf32>
    %21 = vector.shape_cast %20 : vector<1x8x16xf32> to vector<8x16xf32>
    %cst_21 = arith.constant dense<0.000000e+00> : vector<32x16xf32>
    %22 = tpu.matmul %19, %21, %cst_21 {dimension_numbers = #tpu.dot_dimension_numbers<[1], [0], [0], [1], [0, 0, 1, 1], [], []>} : vector<32x8xf32>, vector<8x16xf32>, vector<32x16xf32> -> vector<32x16xf32>
    %23 = arith.addf %16, %22 : vector<32x16xf32>
    %c2 = arith.constant 2 : index
    %c0_22 = arith.constant 0 : index
    %c0_23 = arith.constant 0 : index
    %24 = vector.load %arg4[%c2, %c0_22, %c0_23] : memref<9x32x162xf32, #tpu.memory_space<vmem>>, vector<1x32x162xf32>
    %25 = vector.shape_cast %24 : vector<1x32x162xf32> to vector<32x162xf32>
    %cst_24 = arith.constant dense<0.000000e+00> : vector<32x8xf32>
    %26 = tpu.matmul %25, %10, %cst_24 {dimension_numbers = #tpu.dot_dimension_numbers<[1], [0], [0], [1], [0, 0, 1, 1], [], []>} : vector<32x162xf32>, vector<162x8xf32>, vector<32x8xf32> -> vector<32x8xf32>
    %c2_25 = arith.constant 2 : index
    %c0_26 = arith.constant 0 : index
    %c0_27 = arith.constant 0 : index
    %27 = vector.load %arg5[%c2_25, %c0_26, %c0_27] : memref<9x8x16xf32, #tpu.memory_space<vmem>>, vector<1x8x16xf32>
    %28 = vector.shape_cast %27 : vector<1x8x16xf32> to vector<8x16xf32>
    %cst_28 = arith.constant dense<0.000000e+00> : vector<32x16xf32>
    %29 = tpu.matmul %26, %28, %cst_28 {dimension_numbers = #tpu.dot_dimension_numbers<[1], [0], [0], [1], [0, 0, 1, 1], [], []>} : vector<32x8xf32>, vector<8x16xf32>, vector<32x16xf32> -> vector<32x16xf32>
    %30 = arith.addf %23, %29 : vector<32x16xf32>
    %c3 = arith.constant 3 : index
    %c0_29 = arith.constant 0 : index
    %c0_30 = arith.constant 0 : index
    %31 = vector.load %arg4[%c3, %c0_29, %c0_30] : memref<9x32x162xf32, #tpu.memory_space<vmem>>, vector<1x32x162xf32>
    %32 = vector.shape_cast %31 : vector<1x32x162xf32> to vector<32x162xf32>
    %cst_31 = arith.constant dense<0.000000e+00> : vector<32x8xf32>
    %33 = tpu.matmul %32, %10, %cst_31 {dimension_numbers = #tpu.dot_dimension_numbers<[1], [0], [0], [1], [0, 0, 1, 1], [], []>} : vector<32x162xf32>, vector<162x8xf32>, vector<32x8xf32> -> vector<32x8xf32>
    %c3_32 = arith.constant 3 : index
    %c0_33 = arith.constant 0 : index
    %c0_34 = arith.constant 0 : index
    %34 = vector.load %arg5[%c3_32, %c0_33, %c0_34] : memref<9x8x16xf32, #tpu.memory_space<vmem>>, vector<1x8x16xf32>
    %35 = vector.shape_cast %34 : vector<1x8x16xf32> to vector<8x16xf32>
    %cst_35 = arith.constant dense<0.000000e+00> : vector<32x16xf32>
    %36 = tpu.matmul %33, %35, %cst_35 {dimension_numbers = #tpu.dot_dimension_numbers<[1], [0], [0], [1], [0, 0, 1, 1], [], []>} : vector<32x8xf32>, vector<8x16xf32>, vector<32x16xf32> -> vector<32x16xf32>
    %37 = arith.addf %30, %36 : vector<32x16xf32>
    %c4 = arith.constant 4 : index
    %c0_36 = arith.constant 0 : index
    %c0_37 = arith.constant 0 : index
    %38 = vector.load %arg4[%c4, %c0_36, %c0_37] : memref<9x32x162xf32, #tpu.memory_space<vmem>>, vector<1x32x162xf32>
    %39 = vector.shape_cast %38 : vector<1x32x162xf32> to vector<32x162xf32>
    %cst_38 = arith.constant dense<0.000000e+00> : vector<32x8xf32>
    %40 = tpu.matmul %39, %10, %cst_38 {dimension_numbers = #tpu.dot_dimension_numbers<[1], [0], [0], [1], [0, 0, 1, 1], [], []>} : vector<32x162xf32>, vector<162x8xf32>, vector<32x8xf32> -> vector<32x8xf32>
    %c4_39 = arith.constant 4 : index
    %c0_40 = arith.constant 0 : index
    %c0_41 = arith.constant 0 : index
    %41 = vector.load %arg5[%c4_39, %c0_40, %c0_41] : memref<9x8x16xf32, #tpu.memory_space<vmem>>, vector<1x8x16xf32>
    %42 = vector.shape_cast %41 : vector<1x8x16xf32> to vector<8x16xf32>
    %cst_42 = arith.constant dense<0.000000e+00> : vector<32x16xf32>
    %43 = tpu.matmul %40, %42, %cst_42 {dimension_numbers = #tpu.dot_dimension_numbers<[1], [0], [0], [1], [0, 0, 1, 1], [], []>} : vector<32x8xf32>, vector<8x16xf32>, vector<32x16xf32> -> vector<32x16xf32>
    %44 = arith.addf %37, %43 : vector<32x16xf32>
    %c5 = arith.constant 5 : index
    %c0_43 = arith.constant 0 : index
    %c0_44 = arith.constant 0 : index
    %45 = vector.load %arg4[%c5, %c0_43, %c0_44] : memref<9x32x162xf32, #tpu.memory_space<vmem>>, vector<1x32x162xf32>
    %46 = vector.shape_cast %45 : vector<1x32x162xf32> to vector<32x162xf32>
    %cst_45 = arith.constant dense<0.000000e+00> : vector<32x8xf32>
    %47 = tpu.matmul %46, %10, %cst_45 {dimension_numbers = #tpu.dot_dimension_numbers<[1], [0], [0], [1], [0, 0, 1, 1], [], []>} : vector<32x162xf32>, vector<162x8xf32>, vector<32x8xf32> -> vector<32x8xf32>
    %c5_46 = arith.constant 5 : index
    %c0_47 = arith.constant 0 : index
    %c0_48 = arith.constant 0 : index
    %48 = vector.load %arg5[%c5_46, %c0_47, %c0_48] : memref<9x8x16xf32, #tpu.memory_space<vmem>>, vector<1x8x16xf32>
    %49 = vector.shape_cast %48 : vector<1x8x16xf32> to vector<8x16xf32>
    %cst_49 = arith.constant dense<0.000000e+00> : vector<32x16xf32>
    %50 = tpu.matmul %47, %49, %cst_49 {dimension_numbers = #tpu.dot_dimension_numbers<[1], [0], [0], [1], [0, 0, 1, 1], [], []>} : vector<32x8xf32>, vector<8x16xf32>, vector<32x16xf32> -> vector<32x16xf32>
    %51 = arith.addf %44, %50 : vector<32x16xf32>
    %c6 = arith.constant 6 : index
    %c0_50 = arith.constant 0 : index
    %c0_51 = arith.constant 0 : index
    %52 = vector.load %arg4[%c6, %c0_50, %c0_51] : memref<9x32x162xf32, #tpu.memory_space<vmem>>, vector<1x32x162xf32>
    %53 = vector.shape_cast %52 : vector<1x32x162xf32> to vector<32x162xf32>
    %cst_52 = arith.constant dense<0.000000e+00> : vector<32x8xf32>
    %54 = tpu.matmul %53, %10, %cst_52 {dimension_numbers = #tpu.dot_dimension_numbers<[1], [0], [0], [1], [0, 0, 1, 1], [], []>} : vector<32x162xf32>, vector<162x8xf32>, vector<32x8xf32> -> vector<32x8xf32>
    %c6_53 = arith.constant 6 : index
    %c0_54 = arith.constant 0 : index
    %c0_55 = arith.constant 0 : index
    %55 = vector.load %arg5[%c6_53, %c0_54, %c0_55] : memref<9x8x16xf32, #tpu.memory_space<vmem>>, vector<1x8x16xf32>
    %56 = vector.shape_cast %55 : vector<1x8x16xf32> to vector<8x16xf32>
    %cst_56 = arith.constant dense<0.000000e+00> : vector<32x16xf32>
    %57 = tpu.matmul %54, %56, %cst_56 {dimension_numbers = #tpu.dot_dimension_numbers<[1], [0], [0], [1], [0, 0, 1, 1], [], []>} : vector<32x8xf32>, vector<8x16xf32>, vector<32x16xf32> -> vector<32x16xf32>
    %58 = arith.addf %51, %57 : vector<32x16xf32>
    %c7 = arith.constant 7 : index
    %c0_57 = arith.constant 0 : index
    %c0_58 = arith.constant 0 : index
    %59 = vector.load %arg4[%c7, %c0_57, %c0_58] : memref<9x32x162xf32, #tpu.memory_space<vmem>>, vector<1x32x162xf32>
    %60 = vector.shape_cast %59 : vector<1x32x162xf32> to vector<32x162xf32>
    %cst_59 = arith.constant dense<0.000000e+00> : vector<32x8xf32>
    %61 = tpu.matmul %60, %10, %cst_59 {dimension_numbers = #tpu.dot_dimension_numbers<[1], [0], [0], [1], [0, 0, 1, 1], [], []>} : vector<32x162xf32>, vector<162x8xf32>, vector<32x8xf32> -> vector<32x8xf32>
    %c7_60 = arith.constant 7 : index
    %c0_61 = arith.constant 0 : index
    %c0_62 = arith.constant 0 : index
    %62 = vector.load %arg5[%c7_60, %c0_61, %c0_62] : memref<9x8x16xf32, #tpu.memory_space<vmem>>, vector<1x8x16xf32>
    %63 = vector.shape_cast %62 : vector<1x8x16xf32> to vector<8x16xf32>
    %cst_63 = arith.constant dense<0.000000e+00> : vector<32x16xf32>
    %64 = tpu.matmul %61, %63, %cst_63 {dimension_numbers = #tpu.dot_dimension_numbers<[1], [0], [0], [1], [0, 0, 1, 1], [], []>} : vector<32x8xf32>, vector<8x16xf32>, vector<32x16xf32> -> vector<32x16xf32>
    %65 = arith.addf %58, %64 : vector<32x16xf32>
    %c8 = arith.constant 8 : index
    %c0_64 = arith.constant 0 : index
    %c0_65 = arith.constant 0 : index
    %66 = vector.load %arg4[%c8, %c0_64, %c0_65] : memref<9x32x162xf32, #tpu.memory_space<vmem>>, vector<1x32x162xf32>
    %67 = vector.shape_cast %66 : vector<1x32x162xf32> to vector<32x162xf32>
    %cst_66 = arith.constant dense<0.000000e+00> : vector<32x8xf32>
    %68 = tpu.matmul %67, %10, %cst_66 {dimension_numbers = #tpu.dot_dimension_numbers<[1], [0], [0], [1], [0, 0, 1, 1], [], []>} : vector<32x162xf32>, vector<162x8xf32>, vector<32x8xf32> -> vector<32x8xf32>
    %c8_67 = arith.constant 8 : index
    %c0_68 = arith.constant 0 : index
    %c0_69 = arith.constant 0 : index
    %69 = vector.load %arg5[%c8_67, %c0_68, %c0_69] : memref<9x8x16xf32, #tpu.memory_space<vmem>>, vector<1x8x16xf32>
    %70 = vector.shape_cast %69 : vector<1x8x16xf32> to vector<8x16xf32>
    %cst_70 = arith.constant dense<0.000000e+00> : vector<32x16xf32>
    %71 = tpu.matmul %68, %70, %cst_70 {dimension_numbers = #tpu.dot_dimension_numbers<[1], [0], [0], [1], [0, 0, 1, 1], [], []>} : vector<32x8xf32>, vector<8x16xf32>, vector<32x16xf32> -> vector<32x16xf32>
    %72 = arith.addf %65, %71 : vector<32x16xf32>
    %c0_71 = arith.constant 0 : index
    %c0_72 = arith.constant 0 : index
    %73 = vector.load %arg6[%c0_71, %c0_72] : memref<1x16xf32, #tpu.memory_space<vmem>>, vector<1x16xf32>
    %74 = vector.broadcast %73 : vector<1x16xf32> to vector<32x16xf32>
    %75 = arith.addf %72, %74 : vector<32x16xf32>
    %c0_73 = arith.constant 0 : index
    %c0_74 = arith.constant 0 : index
    %c0_75 = arith.constant 0 : index
    %76 = vector.load %arg7[%c0_73, %c0_74, %c0_75] : memref<4x8x32xf32, #tpu.memory_space<vmem>>, vector<1x8x32xf32>
    %77 = vector.shape_cast %76 : vector<1x8x32xf32> to vector<8x32xf32>
    %cst_76 = arith.constant dense<0.000000e+00> : vector<8x16xf32>
    %78 = tpu.matmul %77, %75, %cst_76 {dimension_numbers = #tpu.dot_dimension_numbers<[1], [0], [0], [1], [0, 0, 1, 1], [], []>} : vector<8x32xf32>, vector<32x16xf32>, vector<8x16xf32> -> vector<8x16xf32>
    %c0_77 = arith.constant 0 : index
    %c0_78 = arith.constant 0 : index
    %c0_79 = arith.constant 0 : index
    %79 = vector.load %arg8[%c0_77, %c0_78, %c0_79] : memref<4x16x384xf32, #tpu.memory_space<vmem>>, vector<1x16x384xf32>
    %80 = vector.shape_cast %79 : vector<1x16x384xf32> to vector<16x384xf32>
    %cst_80 = arith.constant dense<0.000000e+00> : vector<8x384xf32>
    %81 = tpu.matmul %78, %80, %cst_80 {dimension_numbers = #tpu.dot_dimension_numbers<[1], [0], [0], [1], [0, 0, 1, 1], [], []>} : vector<8x16xf32>, vector<16x384xf32>, vector<8x384xf32> -> vector<8x384xf32>
    %c1_81 = arith.constant 1 : index
    %c0_82 = arith.constant 0 : index
    %c0_83 = arith.constant 0 : index
    %82 = vector.load %arg7[%c1_81, %c0_82, %c0_83] : memref<4x8x32xf32, #tpu.memory_space<vmem>>, vector<1x8x32xf32>
    %83 = vector.shape_cast %82 : vector<1x8x32xf32> to vector<8x32xf32>
    %cst_84 = arith.constant dense<0.000000e+00> : vector<8x16xf32>
    %84 = tpu.matmul %83, %75, %cst_84 {dimension_numbers = #tpu.dot_dimension_numbers<[1], [0], [0], [1], [0, 0, 1, 1], [], []>} : vector<8x32xf32>, vector<32x16xf32>, vector<8x16xf32> -> vector<8x16xf32>
    %c1_85 = arith.constant 1 : index
    %c0_86 = arith.constant 0 : index
    %c0_87 = arith.constant 0 : index
    %85 = vector.load %arg8[%c1_85, %c0_86, %c0_87] : memref<4x16x384xf32, #tpu.memory_space<vmem>>, vector<1x16x384xf32>
    %86 = vector.shape_cast %85 : vector<1x16x384xf32> to vector<16x384xf32>
    %cst_88 = arith.constant dense<0.000000e+00> : vector<8x384xf32>
    %87 = tpu.matmul %84, %86, %cst_88 {dimension_numbers = #tpu.dot_dimension_numbers<[1], [0], [0], [1], [0, 0, 1, 1], [], []>} : vector<8x16xf32>, vector<16x384xf32>, vector<8x384xf32> -> vector<8x384xf32>
    %88 = arith.addf %81, %87 : vector<8x384xf32>
    %c2_89 = arith.constant 2 : index
    %c0_90 = arith.constant 0 : index
    %c0_91 = arith.constant 0 : index
    %89 = vector.load %arg7[%c2_89, %c0_90, %c0_91] : memref<4x8x32xf32, #tpu.memory_space<vmem>>, vector<1x8x32xf32>
    %90 = vector.shape_cast %89 : vector<1x8x32xf32> to vector<8x32xf32>
    %cst_92 = arith.constant dense<0.000000e+00> : vector<8x16xf32>
    %91 = tpu.matmul %90, %75, %cst_92 {dimension_numbers = #tpu.dot_dimension_numbers<[1], [0], [0], [1], [0, 0, 1, 1], [], []>} : vector<8x32xf32>, vector<32x16xf32>, vector<8x16xf32> -> vector<8x16xf32>
    %c2_93 = arith.constant 2 : index
    %c0_94 = arith.constant 0 : index
    %c0_95 = arith.constant 0 : index
    %92 = vector.load %arg8[%c2_93, %c0_94, %c0_95] : memref<4x16x384xf32, #tpu.memory_space<vmem>>, vector<1x16x384xf32>
    %93 = vector.shape_cast %92 : vector<1x16x384xf32> to vector<16x384xf32>
    %cst_96 = arith.constant dense<0.000000e+00> : vector<8x384xf32>
    %94 = tpu.matmul %91, %93, %cst_96 {dimension_numbers = #tpu.dot_dimension_numbers<[1], [0], [0], [1], [0, 0, 1, 1], [], []>} : vector<8x16xf32>, vector<16x384xf32>, vector<8x384xf32> -> vector<8x384xf32>
    %95 = arith.addf %88, %94 : vector<8x384xf32>
    %c3_97 = arith.constant 3 : index
    %c0_98 = arith.constant 0 : index
    %c0_99 = arith.constant 0 : index
    %96 = vector.load %arg7[%c3_97, %c0_98, %c0_99] : memref<4x8x32xf32, #tpu.memory_space<vmem>>, vector<1x8x32xf32>
    %97 = vector.shape_cast %96 : vector<1x8x32xf32> to vector<8x32xf32>
    %cst_100 = arith.constant dense<0.000000e+00> : vector<8x16xf32>
    %98 = tpu.matmul %97, %75, %cst_100 {dimension_numbers = #tpu.dot_dimension_numbers<[1], [0], [0], [1], [0, 0, 1, 1], [], []>} : vector<8x32xf32>, vector<32x16xf32>, vector<8x16xf32> -> vector<8x16xf32>
    %c3_101 = arith.constant 3 : index
    %c0_102 = arith.constant 0 : index
    %c0_103 = arith.constant 0 : index
    %99 = vector.load %arg8[%c3_101, %c0_102, %c0_103] : memref<4x16x384xf32, #tpu.memory_space<vmem>>, vector<1x16x384xf32>
    %100 = vector.shape_cast %99 : vector<1x16x384xf32> to vector<16x384xf32>
    %cst_104 = arith.constant dense<0.000000e+00> : vector<8x384xf32>
    %101 = tpu.matmul %98, %100, %cst_104 {dimension_numbers = #tpu.dot_dimension_numbers<[1], [0], [0], [1], [0, 0, 1, 1], [], []>} : vector<8x16xf32>, vector<16x384xf32>, vector<8x384xf32> -> vector<8x384xf32>
    %102 = arith.addf %95, %101 : vector<8x384xf32>
    %c0_105 = arith.constant 0 : index
    %c0_106 = arith.constant 0 : index
    %103 = vector.load %arg9[%c0_105, %c0_106] : memref<1x384xf32, #tpu.memory_space<vmem>>, vector<1x384xf32>
    %104 = vector.broadcast %103 : vector<1x384xf32> to vector<8x384xf32>
    %105 = arith.addf %102, %104 : vector<8x384xf32>
    %cst_107 = arith.constant 0.000000e+00 : f32
    %106 = vector.broadcast %cst_107 : f32 to vector<8x384xf32>
    %107 = arith.cmpf oge, %105, %106 : vector<8x384xf32>
    %cst_108 = arith.constant 0.00999999977 : f32
    %108 = vector.broadcast %cst_108 : f32 to vector<8x384xf32>
    %109 = arith.mulf %108, %105 : vector<8x384xf32>
    %110 = arith.select %107, %105, %109 : vector<8x384xi1>, vector<8x384xf32>
    %c0_109 = arith.constant 0 : index
    %c0_110 = arith.constant 0 : index
    %c0_111 = arith.constant 0 : index
    %111 = vector.load %arg10[%c0_109, %c0_110, %c0_111] : memref<4x2x8xf32, #tpu.memory_space<vmem>>, vector<1x2x8xf32>
    %112 = vector.shape_cast %111 : vector<1x2x8xf32> to vector<2x8xf32>
    %cst_112 = arith.constant dense<0.000000e+00> : vector<2x384xf32>
    %113 = tpu.matmul %112, %110, %cst_112 {dimension_numbers = #tpu.dot_dimension_numbers<[1], [0], [0], [1], [0, 0, 1, 1], [], []>} : vector<2x8xf32>, vector<8x384xf32>, vector<2x384xf32> -> vector<2x384xf32>
    %c0_113 = arith.constant 0 : index
    %c0_114 = arith.constant 0 : index
    %c0_115 = arith.constant 0 : index
    %114 = vector.load %arg11[%c0_113, %c0_114, %c0_115] : memref<4x384x10xf32, #tpu.memory_space<vmem>>, vector<1x384x10xf32>
    %115 = vector.shape_cast %114 : vector<1x384x10xf32> to vector<384x10xf32>
    %cst_116 = arith.constant dense<0.000000e+00> : vector<2x10xf32>
    %116 = tpu.matmul %113, %115, %cst_116 {dimension_numbers = #tpu.dot_dimension_numbers<[1], [0], [0], [1], [0, 0, 1, 1], [], []>} : vector<2x384xf32>, vector<384x10xf32>, vector<2x10xf32> -> vector<2x10xf32>
    %c1_117 = arith.constant 1 : index
    %c0_118 = arith.constant 0 : index
    %c0_119 = arith.constant 0 : index
    %117 = vector.load %arg10[%c1_117, %c0_118, %c0_119] : memref<4x2x8xf32, #tpu.memory_space<vmem>>, vector<1x2x8xf32>
    %118 = vector.shape_cast %117 : vector<1x2x8xf32> to vector<2x8xf32>
    %cst_120 = arith.constant dense<0.000000e+00> : vector<2x384xf32>
    %119 = tpu.matmul %118, %110, %cst_120 {dimension_numbers = #tpu.dot_dimension_numbers<[1], [0], [0], [1], [0, 0, 1, 1], [], []>} : vector<2x8xf32>, vector<8x384xf32>, vector<2x384xf32> -> vector<2x384xf32>
    %c1_121 = arith.constant 1 : index
    %c0_122 = arith.constant 0 : index
    %c0_123 = arith.constant 0 : index
    %120 = vector.load %arg11[%c1_121, %c0_122, %c0_123] : memref<4x384x10xf32, #tpu.memory_space<vmem>>, vector<1x384x10xf32>
    %121 = vector.shape_cast %120 : vector<1x384x10xf32> to vector<384x10xf32>
    %cst_124 = arith.constant dense<0.000000e+00> : vector<2x10xf32>
    %122 = tpu.matmul %119, %121, %cst_124 {dimension_numbers = #tpu.dot_dimension_numbers<[1], [0], [0], [1], [0, 0, 1, 1], [], []>} : vector<2x384xf32>, vector<384x10xf32>, vector<2x10xf32> -> vector<2x10xf32>
    %123 = arith.addf %116, %122 : vector<2x10xf32>
    %c2_125 = arith.constant 2 : index
    %c0_126 = arith.constant 0 : index
    %c0_127 = arith.constant 0 : index
    %124 = vector.load %arg10[%c2_125, %c0_126, %c0_127] : memref<4x2x8xf32, #tpu.memory_space<vmem>>, vector<1x2x8xf32>
    %125 = vector.shape_cast %124 : vector<1x2x8xf32> to vector<2x8xf32>
    %cst_128 = arith.constant dense<0.000000e+00> : vector<2x384xf32>
    %126 = tpu.matmul %125, %110, %cst_128 {dimension_numbers = #tpu.dot_dimension_numbers<[1], [0], [0], [1], [0, 0, 1, 1], [], []>} : vector<2x8xf32>, vector<8x384xf32>, vector<2x384xf32> -> vector<2x384xf32>
    %c2_129 = arith.constant 2 : index
    %c0_130 = arith.constant 0 : index
    %c0_131 = arith.constant 0 : index
    %127 = vector.load %arg11[%c2_129, %c0_130, %c0_131] : memref<4x384x10xf32, #tpu.memory_space<vmem>>, vector<1x384x10xf32>
    %128 = vector.shape_cast %127 : vector<1x384x10xf32> to vector<384x10xf32>
    %cst_132 = arith.constant dense<0.000000e+00> : vector<2x10xf32>
    %129 = tpu.matmul %126, %128, %cst_132 {dimension_numbers = #tpu.dot_dimension_numbers<[1], [0], [0], [1], [0, 0, 1, 1], [], []>} : vector<2x384xf32>, vector<384x10xf32>, vector<2x10xf32> -> vector<2x10xf32>
    %130 = arith.addf %123, %129 : vector<2x10xf32>
    %c3_133 = arith.constant 3 : index
    %c0_134 = arith.constant 0 : index
    %c0_135 = arith.constant 0 : index
    %131 = vector.load %arg10[%c3_133, %c0_134, %c0_135] : memref<4x2x8xf32, #tpu.memory_space<vmem>>, vector<1x2x8xf32>
    %132 = vector.shape_cast %131 : vector<1x2x8xf32> to vector<2x8xf32>
    %cst_136 = arith.constant dense<0.000000e+00> : vector<2x384xf32>
    %133 = tpu.matmul %132, %110, %cst_136 {dimension_numbers = #tpu.dot_dimension_numbers<[1], [0], [0], [1], [0, 0, 1, 1], [], []>} : vector<2x8xf32>, vector<8x384xf32>, vector<2x384xf32> -> vector<2x384xf32>
    %c3_137 = arith.constant 3 : index
    %c0_138 = arith.constant 0 : index
    %c0_139 = arith.constant 0 : index
    %134 = vector.load %arg11[%c3_137, %c0_138, %c0_139] : memref<4x384x10xf32, #tpu.memory_space<vmem>>, vector<1x384x10xf32>
    %135 = vector.shape_cast %134 : vector<1x384x10xf32> to vector<384x10xf32>
    %cst_140 = arith.constant dense<0.000000e+00> : vector<2x10xf32>
    %136 = tpu.matmul %133, %135, %cst_140 {dimension_numbers = #tpu.dot_dimension_numbers<[1], [0], [0], [1], [0, 0, 1, 1], [], []>} : vector<2x384xf32>, vector<384x10xf32>, vector<2x10xf32> -> vector<2x10xf32>
    %137 = arith.addf %130, %136 : vector<2x10xf32>
    %c0_141 = arith.constant 0 : index
    %c0_142 = arith.constant 0 : index
    %138 = vector.load %arg12[%c0_141, %c0_142] : memref<1x10xf32, #tpu.memory_space<vmem>>, vector<1x10xf32>
    %139 = vector.broadcast %138 : vector<1x10xf32> to vector<2x10xf32>
    %140 = arith.addf %137, %139 : vector<2x10xf32>
    %c0_143 = arith.constant 0 : index
    %c0_144 = arith.constant 0 : index
    %141 = vector.load %arg13[%c0_143, %c0_144] : memref<2x10xf32, #tpu.memory_space<vmem>>, vector<2x10xf32>
    tpu.vector_store %arg13[%c0_143, %c0_144], %140 {strides = array<i32>} : memref<2x10xf32, #tpu.memory_space<vmem>>, vector<2x10xf32>,
    return
  }
  func.func @transform_0(%arg0: i32) -> (i32, i32) {
    %c0_i32 = arith.constant 0 : i32
    %c0_i32_0 = arith.constant 0 : i32
    return %arg0, %c0_i32 : i32, i32
  }
  func.func @transform_1(%arg0: i32) -> (i32, i32) {
    %c0_i32 = arith.constant 0 : i32
    %c0_i32_0 = arith.constant 0 : i32
    %c0_i32_1 = arith.constant 0 : i32
    return %c0_i32, %c0_i32_0 : i32, i32
  }
  func.func @transform_2(%arg0: i32) -> (i32, i32) {
    %c0_i32 = arith.constant 0 : i32
    %c0_i32_0 = arith.constant 0 : i32
    %c0_i32_1 = arith.constant 0 : i32
    return %c0_i32, %c0_i32_0 : i32, i32
  }
  func.func @transform_3(%arg0: i32) -> (i32, i32, i32) {
    %c0_i32 = arith.constant 0 : i32
    %c0_i32_0 = arith.constant 0 : i32
    %c0_i32_1 = arith.constant 0 : i32
    %c0_i32_2 = arith.constant 0 : i32
    return %c0_i32, %c0_i32_0, %c0_i32_1 : i32, i32, i32
  }
  func.func @transform_4(%arg0: i32) -> (i32, i32, i32) {
    %c0_i32 = arith.constant 0 : i32
    %c0_i32_0 = arith.constant 0 : i32
    %c0_i32_1 = arith.constant 0 : i32
    %c0_i32_2 = arith.constant 0 : i32
    return %c0_i32, %c0_i32_0, %c0_i32_1 : i32, i32, i32
  }
  func.func @transform_5(%arg0: i32) -> (i32, i32) {
    %c0_i32 = arith.constant 0 : i32
    %c0_i32_0 = arith.constant 0 : i32
    %c0_i32_1 = arith.constant 0 : i32
    return %c0_i32, %c0_i32_0 : i32, i32
  }
  func.func @transform_6(%arg0: i32) -> (i32, i32, i32) {
    %c0_i32 = arith.constant 0 : i32
    %c0_i32_0 = arith.constant 0 : i32
    %c0_i32_1 = arith.constant 0 : i32
    %c0_i32_2 = arith.constant 0 : i32
    return %c0_i32, %c0_i32_0, %c0_i32_1 : i32, i32, i32
  }
  func.func @transform_7(%arg0: i32) -> (i32, i32, i32) {
    %c0_i32 = arith.constant 0 : i32
    %c0_i32_0 = arith.constant 0 : i32
    %c0_i32_1 = arith.constant 0 : i32
    %c0_i32_2 = arith.constant 0 : i32
    return %c0_i32, %c0_i32_0, %c0_i32_1 : i32, i32, i32
  }
  func.func @transform_8(%arg0: i32) -> (i32, i32) {
    %c0_i32 = arith.constant 0 : i32
    %c0_i32_0 = arith.constant 0 : i32
    %c0_i32_1 = arith.constant 0 : i32
    return %c0_i32, %c0_i32_0 : i32, i32
  }
  func.func @transform_9(%arg0: i32) -> (i32, i32, i32) {
    %c0_i32 = arith.constant 0 : i32
    %c0_i32_0 = arith.constant 0 : i32
    %c0_i32_1 = arith.constant 0 : i32
    %c0_i32_2 = arith.constant 0 : i32
    return %c0_i32, %c0_i32_0, %c0_i32_1 : i32, i32, i32
  }
  func.func @transform_10(%arg0: i32) -> (i32, i32, i32) {
    %c0_i32 = arith.constant 0 : i32
    %c0_i32_0 = arith.constant 0 : i32
    %c0_i32_1 = arith.constant 0 : i32
    %c0_i32_2 = arith.constant 0 : i32
    return %c0_i32, %c0_i32_0, %c0_i32_1 : i32, i32, i32
  }
  func.func @transform_11(%arg0: i32) -> (i32, i32) {
    %c0_i32 = arith.constant 0 : i32
    %c0_i32_0 = arith.constant 0 : i32
    %c0_i32_1 = arith.constant 0 : i32
    return %c0_i32, %c0_i32_0 : i32, i32
  }
  func.func @transform_12(%arg0: i32) -> (i32, i32) {
    %c0_i32 = arith.constant 0 : i32
    %c0_i32_0 = arith.constant 0 : i32
    return %arg0, %c0_i32 : i32, i32
  }
}

</mosaic_0001>

<llo_original>
// kernel: squeeze.1
$region0: #{squeeze.1}
  %s0 = inlined_call_operand.vmem [shape: f32[2,1,27,27], index: 0, kind: input, shape index: {}]
  %s1 = inlined_call_operand.vmem [shape: f32[2,9,3,9,3], index: 1, kind: output, shape index: {}]
  $region1: #{squeeze.1} parent=0
    #allocation0 [shape = 'u8[110592]{0}', space=vmem, size = 0x1b000, scoped, tag = 'scoped mem for input reshape']
    %s3 = sshllo.u32 0, 2
    %s4 = smul.addr 2, 26
    %s5 = scalar_lea.vmem %s0, %s4
    %v6 = vld [vmem:[%s5] sm:%s3]
    %s7 = scalar_lea.vmem [#allocation0], 208
    %8 = vst [vmem:[%s7] sm:%s3] %v6
    %s9 = smul.addr 2, 25
    %s10 = scalar_lea.vmem %s0, %s9
    %v11 = vld [vmem:[%s10] sm:%s3]
    %s12 = scalar_lea.vmem [#allocation0], 200
    %13 = vst [vmem:[%s12] sm:%s3] %v11
    %s14 = smul.addr 2, 24
    %s15 = scalar_lea.vmem %s0, %s14
    %v16 = vld [vmem:[%s15] sm:%s3]
    %s17 = scalar_lea.vmem [#allocation0], 192
    %18 = vst [vmem:[%s17] sm:%s3] %v16
    %s19 = smul.addr 2, 23
    %s20 = scalar_lea.vmem %s0, %s19
    %v21 = vld [vmem:[%s20] sm:%s3]
    %s22 = scalar_lea.vmem [#allocation0], 184
    %23 = vst [vmem:[%s22] sm:%s3] %v21
    %s24 = smul.addr 2, 22
    %s25 = scalar_lea.vmem %s0, %s24
    %v26 = vld [vmem:[%s25] sm:%s3]
    %s27 = scalar_lea.vmem [#allocation0], 176
    %28 = vst [vmem:[%s27] sm:%s3] %v26
    %s29 = smul.addr 2, 21
    %s30 = scalar_lea.vmem %s0, %s29
    %v31 = vld [vmem:[%s30] sm:%s3]
    %s32 = scalar_lea.vmem [#allocation0], 168
    %33 = vst [vmem:[%s32] sm:%s3] %v31
    %s34 = smul.addr 2, 20
    %s35 = scalar_lea.vmem %s0, %s34
    %v36 = vld [vmem:[%s35] sm:%s3]
    %s37 = scalar_lea.vmem [#allocation0], 160
    %38 = vst [vmem:[%s37] sm:%s3] %v36
    %s39 = smul.addr 2, 19
    %s40 = scalar_lea.vmem %s0, %s39
    %v41 = vld [vmem:[%s40] sm:%s3]
    %s42 = scalar_lea.vmem [#allocation0], 152
    %43 = vst [vmem:[%s42] sm:%s3] %v41
    %s44 = smul.addr 2, 18
    %s45 = scalar_lea.vmem %s0, %s44
    %v46 = vld [vmem:[%s45] sm:%s3]
    %s47 = scalar_lea.vmem [#allocation0], 144
    %48 = vst [vmem:[%s47] sm:%s3] %v46
    %s49 = smul.addr 2, 17
    %s50 = scalar_lea.vmem %s0, %s49
    %v51 = vld [vmem:[%s50] sm:%s3]
    %s52 = scalar_lea.vmem [#allocation0], 136
    %53 = vst [vmem:[%s52] sm:%s3] %v51
    %s54 = smul.addr 2, 16
    %s55 = scalar_lea.vmem %s0, %s54
    %v56 = vld [vmem:[%s55] sm:%s3]
    %s57 = scalar_lea.vmem [#allocation0], 128
    %58 = vst [vmem:[%s57] sm:%s3] %v56
    %s59 = smul.addr 2, 15
    %s60 = scalar_lea.vmem %s0, %s59
    %v61 = vld [vmem:[%s60] sm:%s3]
    %s62 = scalar_lea.vmem [#allocation0], 120
    %63 = vst [vmem:[%s62] sm:%s3] %v61
    %s64 = smul.addr 2, 14
    %s65 = scalar_lea.vmem %s0, %s64
    %v66 = vld [vmem:[%s65] sm:%s3]
    %s67 = scalar_lea.vmem [#allocation0], 112
    %68 = vst [vmem:[%s67] sm:%s3] %v66
    %s69 = smul.addr 2, 13
    %s70 = scalar_lea.vmem %s0, %s69
    %v71 = vld [vmem:[%s70] sm:%s3]
    %s72 = scalar_lea.vmem [#allocation0], 104
    %73 = vst [vmem:[%s72] sm:%s3] %v71
    %s74 = smul.addr 2, 12
    %s75 = scalar_lea.vmem %s0, %s74
    %v76 = vld [vmem:[%s75] sm:%s3]
    %s77 = scalar_lea.vmem [#allocation0], 96
    %78 = vst [vmem:[%s77] sm:%s3] %v76
    %s79 = smul.addr 2, 11
    %s80 = scalar_lea.vmem %s0, %s79
    %v81 = vld [vmem:[%s80] sm:%s3]
    %s82 = scalar_lea.vmem [#allocation0], 88
    %83 = vst [vmem:[%s82] sm:%s3] %v81
    %s84 = smul.addr 2, 10
    %s85 = scalar_lea.vmem %s0, %s84
    %v86 = vld [vmem:[%s85] sm:%s3]
    %s87 = scalar_lea.vmem [#allocation0], 80
    %88 = vst [vmem:[%s87] sm:%s3] %v86
    %s89 = smul.addr 2, 9
    %s90 = scalar_lea.vmem %s0, %s89
    %v91 = vld [vmem:[%s90] sm:%s3]
    %s92 = scalar_lea.vmem [#allocation0], 72
    %93 = vst [vmem:[%s92] sm:%s3] %v91
    %s94 = smul.addr 2, 8
    %s95 = scalar_lea.vmem %s0, %s94
    %v96 = vld [vmem:[%s95] sm:%s3]
    %s97 = scalar_lea.vmem [#allocation0], 64
    %98 = vst [vmem:[%s97] sm:%s3] %v96
    %s99 = smul.addr 2, 7
    %s100 = scalar_lea.vmem %s0, %s99
    %v101 = vld [vmem:[%s100] sm:%s3]
    %s102 = scalar_lea.vmem [#allocation0], 56
    %103 = vst [vmem:[%s102] sm:%s3] %v101
    %s104 = smul.addr 2, 6
    %s105 = scalar_lea.vmem %s0, %s104
    %v106 = vld [vmem:[%s105] sm:%s3]
    %s107 = scalar_lea.vmem [#allocation0], 48
    %108 = vst [vmem:[%s107] sm:%s3] %v106
    %s109 = smul.addr 2, 5
    %s110 = scalar_lea.vmem %s0, %s109
    %v111 = vld [vmem:[%s110] sm:%s3]
    %s112 = scalar_lea.vmem [#allocation0], 40
    %113 = vst [vmem:[%s112] sm:%s3] %v111
    %s114 = smul.addr 2, 4
    %s115 = scalar_lea.vmem %s0, %s114
    %v116 = vld [vmem:[%s115] sm:%s3]
    %s117 = scalar_lea.vmem [#allocation0], 32
    %118 = vst [vmem:[%s117] sm:%s3] %v116
    %s119 = smul.addr 2, 3
    %s120 = scalar_lea.vmem %s0, %s119
    %v121 = vld [vmem:[%s120] sm:%s3]
    %s122 = scalar_lea.vmem [#allocation0], 24
    %123 = vst [vmem:[%s122] sm:%s3] %v121
    %s124 = smul.addr 2, 2
    %s125 = scalar_lea.vmem %s0, %s124
    %v126 = vld [vmem:[%s125] sm:%s3]
    %s127 = scalar_lea.vmem [#allocation0], 16
    %128 = vst [vmem:[%s127] sm:%s3] %v126
    %s129 = scalar_lea.vmem %s0, 2
    %v130 = vld [vmem:[%s129] sm:%s3]
    %s131 = scalar_lea.vmem [#allocation0], 8
    %132 = vst [vmem:[%s131] sm:%s3] %v130
    %v133 = vld [vmem:[%s0] sm:%s3]
    %134 = vst [vmem:[#allocation0] sm:%s3] %v133
    %v135 = vld [vmem:[#allocation0] sm:$0x3]
    %vm136 = vcmask 23552
    %137 = vst.msk [vmem:[%s1] ss:$16 sm:$0x3] %vm136, %v135
    %s138 = scalar_lea.vmem [#allocation0], 8
    %v139 = vld [vmem:[%s138] sm:$0x3]
    %vm140 = vcmask 23552
    %s141 = scalar_lea.vmem %s1, 32
    %142 = vst.msk [vmem:[%s141] ss:$16 sm:$0x3] %vm140, %v139
    %s143 = scalar_lea.vmem [#allocation0], 16
    %v144 = vld [vmem:[%s143] sm:$0x3]
    %vm145 = vcmask 23552
    %s146 = scalar_lea.vmem %s1, 64
    %147 = vst.msk [vmem:[%s146] ss:$16 sm:$0x3] %vm145, %v144
    %s148 = scalar_lea.vmem [#allocation0], 24
    %v149 = vld [vmem:[%s148] sm:$0x3]
    %vm150 = vcmask 23552
    %s151 = scalar_lea.vmem %s1, 96
    %152 = vst.msk [vmem:[%s151] ss:$16 sm:$0x3] %vm150, %v149
    %s153 = scalar_lea.vmem [#allocation0], 32
    %v154 = vld [vmem:[%s153] sm:$0x3]
    %vm155 = vcmask 23552
    %s156 = scalar_lea.vmem %s1, 128
    %157 = vst.msk [vmem:[%s156] ss:$16 sm:$0x3] %vm155, %v154
    %s158 = scalar_lea.vmem [#allocation0], 40
    %v159 = vld [vmem:[%s158] sm:$0x3]
    %vm160 = vcmask 23552
    %s161 = scalar_lea.vmem %s1, 160
    %162 = vst.msk [vmem:[%s161] ss:$16 sm:$0x3] %vm160, %v159
    %s163 = scalar_lea.vmem [#allocation0], 48
    %v164 = vld [vmem:[%s163] sm:$0x3]
    %vm165 = vcmask 23552
    %s166 = scalar_lea.vmem %s1, 192
    %167 = vst.msk [vmem:[%s166] ss:$16 sm:$0x3] %vm165, %v164
    %s168 = scalar_lea.vmem [#allocation0], 56
    %v169 = vld [vmem:[%s168] sm:$0x3]
    %vm170 = vcmask 23552
    %s171 = scalar_lea.vmem %s1, 224
    %172 = vst.msk [vmem:[%s171] ss:$16 sm:$0x3] %vm170, %v169
    %s173 = scalar_lea.vmem [#allocation0], 64
    %v174 = vld [vmem:[%s173] sm:$0x3]
    %vm175 = vcmask 23552
    %s176 = scalar_lea.vmem %s1, 256
    %177 = vst.msk [vmem:[%s176] ss:$16 sm:$0x3] %vm175, %v174
    %s178 = scalar_lea.vmem [#allocation0], 72
    %v179 = vld [vmem:[%s178] sm:$0x3]
    %vm180 = vcmask 23552
    %s181 = scalar_lea.vmem %s1, 288
    %182 = vst.msk [vmem:[%s181] ss:$16 sm:$0x3] %vm180, %v179
    %s183 = scalar_lea.vmem [#allocation0], 80
    %v184 = vld [vmem:[%s183] sm:$0x3]
    %vm185 = vcmask 23552
    %s186 = scalar_lea.vmem %s1, 320
    %187 = vst.msk [vmem:[%s186] ss:$16 sm:$0x3] %vm185, %v184
    %s188 = scalar_lea.vmem [#allocation0], 88
    %v189 = vld [vmem:[%s188] sm:$0x3]
    %vm190 = vcmask 23552
    %s191 = scalar_lea.vmem %s1, 352
    %192 = vst.msk [vmem:[%s191] ss:$16 sm:$0x3] %vm190, %v189
    %s193 = scalar_lea.vmem [#allocation0], 96
    %v194 = vld [vmem:[%s193] sm:$0x3]
    %vm195 = vcmask 23552
    %s196 = scalar_lea.vmem %s1, 384
    %197 = vst.msk [vmem:[%s196] ss:$16 sm:$0x3] %vm195, %v194
    %s198 = scalar_lea.vmem [#allocation0], 104
    %v199 = vld [vmem:[%s198] sm:$0x3]
    %vm200 = vcmask 23552
    %s201 = scalar_lea.vmem %s1, 416
    %202 = vst.msk [vmem:[%s201] ss:$16 sm:$0x3] %vm200, %v199
    %s203 = scalar_lea.vmem [#allocation0], 112
    %v204 = vld [vmem:[%s203] sm:$0x3]
    %vm205 = vcmask 23552
    %s206 = scalar_lea.vmem %s1, 448
    %207 = vst.msk [vmem:[%s206] ss:$16 sm:$0x3] %vm205, %v204
    %s208 = scalar_lea.vmem [#allocation0], 120
    %v209 = vld [vmem:[%s208] sm:$0x3]
    %vm210 = vcmask 23552
    %s211 = scalar_lea.vmem %s1, 480
    %212 = vst.msk [vmem:[%s211] ss:$16 sm:$0x3] %vm210, %v209
    %s213 = scalar_lea.vmem [#allocation0], 128
    %v214 = vld [vmem:[%s213] sm:$0x3]
    %vm215 = vcmask 23552
    %s216 = scalar_lea.vmem %s1, 512
    %217 = vst.msk [vmem:[%s216] ss:$16 sm:$0x3] %vm215, %v214
    %s218 = scalar_lea.vmem [#allocation0], 136
    %v219 = vld [vmem:[%s218] sm:$0x3]
    %vm220 = vcmask 23552
    %s221 = scalar_lea.vmem %s1, 544
    %222 = vst.msk [vmem:[%s221] ss:$16 sm:$0x3] %vm220, %v219
    %s223 = scalar_lea.vmem [#allocation0], 144
    %v224 = vld [vmem:[%s223] sm:$0x3]
    %vm225 = vcmask 23552
    %s226 = scalar_lea.vmem %s1, 576
    %227 = vst.msk [vmem:[%s226] ss:$16 sm:$0x3] %vm225, %v224
    %s228 = scalar_lea.vmem [#allocation0], 152
    %v229 = vld [vmem:[%s228] sm:$0x3]
    %vm230 = vcmask 23552
    %s231 = scalar_lea.vmem %s1, 608
    %232 = vst.msk [vmem:[%s231] ss:$16 sm:$0x3] %vm230, %v229
    %s233 = scalar_lea.vmem [#allocation0], 160
    %v234 = vld [vmem:[%s233] sm:$0x3]
    %vm235 = vcmask 23552
    %s236 = scalar_lea.vmem %s1, 640
    %237 = vst.msk [vmem:[%s236] ss:$16 sm:$0x3] %vm235, %v234
    %s238 = scalar_lea.vmem [#allocation0], 168
    %v239 = vld [vmem:[%s238] sm:$0x3]
    %vm240 = vcmask 23552
    %s241 = scalar_lea.vmem %s1, 672
    %242 = vst.msk [vmem:[%s241] ss:$16 sm:$0x3] %vm240, %v239
    %s243 = scalar_lea.vmem [#allocation0], 176
    %v244 = vld [vmem:[%s243] sm:$0x3]
    %vm245 = vcmask 23552
    %s246 = scalar_lea.vmem %s1, 704
    %247 = vst.msk [vmem:[%s246] ss:$16 sm:$0x3] %vm245, %v244
    %s248 = scalar_lea.vmem [#allocation0], 184
    %v249 = vld [vmem:[%s248] sm:$0x3]
    %vm250 = vcmask 23552
    %s251 = scalar_lea.vmem %s1, 736
    %252 = vst.msk [vmem:[%s251] ss:$16 sm:$0x3] %vm250, %v249
    %s253 = scalar_lea.vmem [#allocation0], 192
    %v254 = vld [vmem:[%s253] sm:$0x3]
    %vm255 = vcmask 23552
    %s256 = scalar_lea.vmem %s1, 768
    %257 = vst.msk [vmem:[%s256] ss:$16 sm:$0x3] %vm255, %v254
    %s258 = scalar_lea.vmem [#allocation0], 200
    %v259 = vld [vmem:[%s258] sm:$0x3]
    %vm260 = vcmask 23552
    %s261 = scalar_lea.vmem %s1, 800
    %262 = vst.msk [vmem:[%s261] ss:$16 sm:$0x3] %vm260, %v259
    %s263 = scalar_lea.vmem [#allocation0], 208
    %v264 = vld [vmem:[%s263] sm:$0x3]
    %vm265 = vcmask 23552
    %s266 = scalar_lea.vmem %s1, 832
    %267 = vst.msk [vmem:[%s266] ss:$16 sm:$0x3] %vm265, %v264
    %v268 = vld.sshfl [vmem:[#allocation0] sm:$0xff pattern:$0x99999810]
    %s269 = scalar_lea.vmem [#allocation0], 16
    %v270 = vld.sshfl [vmem:[%s269] sm:$0xff pattern:$0x98100000]
    %vm271 = vcmask 1047556
    %v272 = vsel %vm271, %v270, %v268
    %273 = vrot.lane.b32.xlu0 %v272, 125
    %v274 = vpop.permute.xlu0 %273
    %vm275 = vcmask 23552
    %s276 = scalar_lea.vmem %s1, 1
    %277 = vst.msk [vmem:[%s276] ss:$16 sm:$0x3] %vm275, %v274
    %s278 = scalar_lea.vmem %s1, 1
    %279 = vst.msk [vmem:[%s278] ss:$16 sm:$0xc] %vm275, %v274
    %s280 = scalar_lea.vmem %s1, 1
    %281 = vst.msk [vmem:[%s280] ss:$16 sm:$0x30] %vm275, %v274
    %s282 = scalar_lea.vmem %s1, 1
    %283 = vst.msk [vmem:[%s282] ss:$16 sm:$0xc0] %vm275, %v274
    %s284 = scalar_lea.vmem [#allocation0], 32
    %v285 = vld.sshfl [vmem:[%s284] sm:$0xff pattern:$0x99999810]
    %s286 = scalar_lea.vmem [#allocation0], 48
    %v287 = vld.sshfl [vmem:[%s286] sm:$0xff pattern:$0x98100000]
    %vm288 = vcmask 1047556
    %v289 = vsel %vm288, %v287, %v285
    %290 = vrot.lane.b32.xlu0 %v289, 125
    %v291 = vpop.permute.xlu0 %290
    %vm292 = vcmask 23552
    %s293 = scalar_lea.vmem %s1, 129
    %294 = vst.msk [vmem:[%s293] ss:$16 sm:$0x3] %vm292, %v291
    %s295 = scalar_lea.vmem %s1, 129
    %296 = vst.msk [vmem:[%s295] ss:$16 sm:$0xc] %vm292, %v291
    %s297 = scalar_lea.vmem %s1, 129
    %298 = vst.msk [vmem:[%s297] ss:$16 sm:$0x30] %vm292, %v291
    %s299 = scalar_lea.vmem %s1, 129
    %300 = vst.msk [vmem:[%s299] ss:$16 sm:$0xc0] %vm292, %v291
    %s301 = scalar_lea.vmem [#allocation0], 64
    %v302 = vld.sshfl [vmem:[%s301] sm:$0xff pattern:$0x99999810]
    %s303 = scalar_lea.vmem [#allocation0], 80
    %v304 = vld.sshfl [vmem:[%s303] sm:$0xff pattern:$0x98100000]
    %vm305 = vcmask 1047556
    %v306 = vsel %vm305, %v304, %v302
    %307 = vrot.lane.b32.xlu0 %v306, 125
    %v308 = vpop.permute.xlu0 %307
    %vm309 = vcmask 23552
    %s310 = scalar_lea.vmem %s1, 257
    %311 = vst.msk [vmem:[%s310] ss:$16 sm:$0x3] %vm309, %v308
    %s312 = scalar_lea.vmem %s1, 257
    %313 = vst.msk [vmem:[%s312] ss:$16 sm:$0xc] %vm309, %v308
    %s314 = scalar_lea.vmem %s1, 257
    %315 = vst.msk [vmem:[%s314] ss:$16 sm:$0x30] %vm309, %v308
    %s316 = scalar_lea.vmem %s1, 257
    %317 = vst.msk [vmem:[%s316] ss:$16 sm:$0xc0] %vm309, %v308
    %s318 = scalar_lea.vmem [#allocation0], 96
    %v319 = vld.sshfl [vmem:[%s318] sm:$0xff pattern:$0x99999810]
    %s320 = scalar_lea.vmem [#allocation0], 112
    %v321 = vld.sshfl [vmem:[%s320] sm:$0xff pattern:$0x98100000]
    %vm322 = vcmask 1047556
    %v323 = vsel %vm322, %v321, %v319
    %324 = vrot.lane.b32.xlu0 %v323, 125
    %v325 = vpop.permute.xlu0 %324
    %vm326 = vcmask 23552
    %s327 = scalar_lea.vmem %s1, 385
    %328 = vst.msk [vmem:[%s327] ss:$16 sm:$0x3] %vm326, %v325
    %s329 = scalar_lea.vmem %s1, 385
    %330 = vst.msk [vmem:[%s329] ss:$16 sm:$0xc] %vm326, %v325
    %s331 = scalar_lea.vmem %s1, 385
    %332 = vst.msk [vmem:[%s331] ss:$16 sm:$0x30] %vm326, %v325
    %s333 = scalar_lea.vmem %s1, 385
    %334 = vst.msk [vmem:[%s333] ss:$16 sm:$0xc0] %vm326, %v325
    %s335 = scalar_lea.vmem [#allocation0], 128
    %v336 = vld.sshfl [vmem:[%s335] sm:$0xff pattern:$0x99999810]
    %s337 = scalar_lea.vmem [#allocation0], 144
    %v338 = vld.sshfl [vmem:[%s337] sm:$0xff pattern:$0x98100000]
    %vm339 = vcmask 1047556
    %v340 = vsel %vm339, %v338, %v336
    %341 = vrot.lane.b32.xlu0 %v340, 125
    %v342 = vpop.permute.xlu0 %341
    %vm343 = vcmask 23552
    %s344 = scalar_lea.vmem %s1, 513
    %345 = vst.msk [vmem:[%s344] ss:$16 sm:$0x3] %vm343, %v342
    %s346 = scalar_lea.vmem %s1, 513
    %347 = vst.msk [vmem:[%s346] ss:$16 sm:$0xc] %vm343, %v342
    %s348 = scalar_lea.vmem %s1, 513
    %349 = vst.msk [vmem:[%s348] ss:$16 sm:$0x30] %vm343, %v342
    %s350 = scalar_lea.vmem %s1, 513
    %351 = vst.msk [vmem:[%s350] ss:$16 sm:$0xc0] %vm343, %v342
    %s352 = scalar_lea.vmem [#allocation0], 160
    %v353 = vld.sshfl [vmem:[%s352] sm:$0xff pattern:$0x99999810]
    %s354 = scalar_lea.vmem [#allocation0], 176
    %v355 = vld.sshfl [vmem:[%s354] sm:$0xff pattern:$0x98100000]
    %vm356 = vcmask 1047556
    %v357 = vsel %vm356, %v355, %v353
    %358 = vrot.lane.b32.xlu0 %v357, 125
    %v359 = vpop.permute.xlu0 %358
    %vm360 = vcmask 23552
    %s361 = scalar_lea.vmem %s1, 641
    %362 = vst.msk [vmem:[%s361] ss:$16 sm:$0x3] %vm360, %v359
    %s363 = scalar_lea.vmem %s1, 641
    %364 = vst.msk [vmem:[%s363] ss:$16 sm:$0xc] %vm360, %v359
    %s365 = scalar_lea.vmem %s1, 641
    %366 = vst.msk [vmem:[%s365] ss:$16 sm:$0x30] %vm360, %v359
    %s367 = scalar_lea.vmem %s1, 641
    %368 = vst.msk [vmem:[%s367] ss:$16 sm:$0xc0] %vm360, %v359
    %s369 = scalar_lea.vmem [#allocation0], 192
    %v370 = vld.sshfl [vmem:[%s369] sm:$0xff pattern:$0x99999810]
    %s371 = scalar_lea.vmem [#allocation0], 204
    %v372 = vld [vmem:[%s371] sm:$0x30]
    %vm373 = vcmask 1045508
    %v374 = vsel %vm373, %v372, %v370
    %375 = vrot.lane.b32.xlu0 %v374, 125
    %v376 = vpop.permute.xlu0 %375
    %vm377 = vcmask 23552
    %s378 = scalar_lea.vmem %s1, 769
    %379 = vst.msk [vmem:[%s378] ss:$16 sm:$0x3] %vm377, %v376
    %s380 = scalar_lea.vmem %s1, 769
    %381 = vst.msk [vmem:[%s380] ss:$16 sm:$0xc] %vm377, %v376
    %s382 = scalar_lea.vmem %s1, 769
    %383 = vst.msk [vmem:[%s382] ss:$16 sm:$0x30] %vm377, %v376
    %v384 = vld.sshfl [vmem:[#allocation0] sm:$0xff pattern:$0x99999810]
    %s385 = scalar_lea.vmem [#allocation0], 16
    %v386 = vld.sshfl [vmem:[%s385] sm:$0xff pattern:$0x98100000]
    %vm387 = vcmask 1047556
    %v388 = vsel %vm387, %v386, %v384
    %389 = vrot.lane.b32.xlu0 %v388, 122
    %v390 = vpop.permute.xlu0 %389
    %vm391 = vcmask 23552
    %s392 = scalar_lea.vmem %s1, 2
    %393 = vst.msk [vmem:[%s392] ss:$16 sm:$0x3] %vm391, %v390
    %s394 = scalar_lea.vmem %s1, 2
    %395 = vst.msk [vmem:[%s394] ss:$16 sm:$0xc] %vm391, %v390
    %s396 = scalar_lea.vmem %s1, 2
    %397 = vst.msk [vmem:[%s396] ss:$16 sm:$0x30] %vm391, %v390
    %s398 = scalar_lea.vmem %s1, 2
    %399 = vst.msk [vmem:[%s398] ss:$16 sm:$0xc0] %vm391, %v390
    %s400 = scalar_lea.vmem [#allocation0], 32
    %v401 = vld.sshfl [vmem:[%s400] sm:$0xff pattern:$0x99999810]
    %s402 = scalar_lea.vmem [#allocation0], 48
    %v403 = vld.sshfl [vmem:[%s402] sm:$0xff pattern:$0x98100000]
    %vm404 = vcmask 1047556
    %v405 = vsel %vm404, %v403, %v401
    %406 = vrot.lane.b32.xlu0 %v405, 122
    %v407 = vpop.permute.xlu0 %406
    %vm408 = vcmask 23552
    %s409 = scalar_lea.vmem %s1, 130
    %410 = vst.msk [vmem:[%s409] ss:$16 sm:$0x3] %vm408, %v407
    %s411 = scalar_lea.vmem %s1, 130
    %412 = vst.msk [vmem:[%s411] ss:$16 sm:$0xc] %vm408, %v407
    %s413 = scalar_lea.vmem %s1, 130
    %414 = vst.msk [vmem:[%s413] ss:$16 sm:$0x30] %vm408, %v407
    %s415 = scalar_lea.vmem %s1, 130
    %416 = vst.msk [vmem:[%s415] ss:$16 sm:$0xc0] %vm408, %v407
    %s417 = scalar_lea.vmem [#allocation0], 64
    %v418 = vld.sshfl [vmem:[%s417] sm:$0xff pattern:$0x99999810]
    %s419 = scalar_lea.vmem [#allocation0], 80
    %v420 = vld.sshfl [vmem:[%s419] sm:$0xff pattern:$0x98100000]
    %vm421 = vcmask 1047556
    %v422 = vsel %vm421, %v420, %v418
    %423 = vrot.lane.b32.xlu0 %v422, 122
    %v424 = vpop.permute.xlu0 %423
    %vm425 = vcmask 23552
    %s426 = scalar_lea.vmem %s1, 258
    %427 = vst.msk [vmem:[%s426] ss:$16 sm:$0x3] %vm425, %v424
    %s428 = scalar_lea.vmem %s1, 258
    %429 = vst.msk [vmem:[%s428] ss:$16 sm:$0xc] %vm425, %v424
    %s430 = scalar_lea.vmem %s1, 258
    %431 = vst.msk [vmem:[%s430] ss:$16 sm:$0x30] %vm425, %v424
    %s432 = scalar_lea.vmem %s1, 258
    %433 = vst.msk [vmem:[%s432] ss:$16 sm:$0xc0] %vm425, %v424
    %s434 = scalar_lea.vmem [#allocation0], 96
    %v435 = vld.sshfl [vmem:[%s434] sm:$0xff pattern:$0x99999810]
    %s436 = scalar_lea.vmem [#allocation0], 112
    %v437 = vld.sshfl [vmem:[%s436] sm:$0xff pattern:$0x98100000]
    %vm438 = vcmask 1047556
    %v439 = vsel %vm438, %v437, %v435
    %440 = vrot.lane.b32.xlu0 %v439, 122
    %v441 = vpop.permute.xlu0 %440
    %vm442 = vcmask 23552
    %s443 = scalar_lea.vmem %s1, 386
    %444 = vst.msk [vmem:[%s443] ss:$16 sm:$0x3] %vm442, %v441
    %s445 = scalar_lea.vmem %s1, 386
    %446 = vst.msk [vmem:[%s445] ss:$16 sm:$0xc] %vm442, %v441
    %s447 = scalar_lea.vmem %s1, 386
    %448 = vst.msk [vmem:[%s447] ss:$16 sm:$0x30] %vm442, %v441
    %s449 = scalar_lea.vmem %s1, 386
    %450 = vst.msk [vmem:[%s449] ss:$16 sm:$0xc0] %vm442, %v441
    %s451 = scalar_lea.vmem [#allocation0], 128
    %v452 = vld.sshfl [vmem:[%s451] sm:$0xff pattern:$0x99999810]
    %s453 = scalar_lea.vmem [#allocation0], 144
    %v454 = vld.sshfl [vmem:[%s453] sm:$0xff pattern:$0x98100000]
    %vm455 = vcmask 1047556
    %v456 = vsel %vm455, %v454, %v452
    %457 = vrot.lane.b32.xlu0 %v456, 122
    %v458 = vpop.permute.xlu0 %457
    %vm459 = vcmask 23552
    %s460 = scalar_lea.vmem %s1, 514
    %461 = vst.msk [vmem:[%s460] ss:$16 sm:$0x3] %vm459, %v458
    %s462 = scalar_lea.vmem %s1, 514
    %463 = vst.msk [vmem:[%s462] ss:$16 sm:$0xc] %vm459, %v458
    %s464 = scalar_lea.vmem %s1, 514
    %465 = vst.msk [vmem:[%s464] ss:$16 sm:$0x30] %vm459, %v458
    %s466 = scalar_lea.vmem %s1, 514
    %467 = vst.msk [vmem:[%s466] ss:$16 sm:$0xc0] %vm459, %v458
    %s468 = scalar_lea.vmem [#allocation0], 160
    %v469 = vld.sshfl [vmem:[%s468] sm:$0xff pattern:$0x99999810]
    %s470 = scalar_lea.vmem [#allocation0], 176
    %v471 = vld.sshfl [vmem:[%s470] sm:$0xff pattern:$0x98100000]
    %vm472 = vcmask 1047556
    %v473 = vsel %vm472, %v471, %v469
    %474 = vrot.lane.b32.xlu0 %v473, 122
    %v475 = vpop.permute.xlu0 %474
    %vm476 = vcmask 23552
    %s477 = scalar_lea.vmem %s1, 642
    %478 = vst.msk [vmem:[%s477] ss:$16 sm:$0x3] %vm476, %v475
    %s479 = scalar_lea.vmem %s1, 642
    %480 = vst.msk [vmem:[%s479] ss:$16 sm:$0xc] %vm476, %v475
    %s481 = scalar_lea.vmem %s1, 642
    %482 = vst.msk [vmem:[%s481] ss:$16 sm:$0x30] %vm476, %v475
    %s483 = scalar_lea.vmem %s1, 642
    %484 = vst.msk [vmem:[%s483] ss:$16 sm:$0xc0] %vm476, %v475
    %s485 = scalar_lea.vmem [#allocation0], 192
    %v486 = vld.sshfl [vmem:[%s485] sm:$0xff pattern:$0x99999810]
    %s487 = scalar_lea.vmem [#allocation0], 204
    %v488 = vld [vmem:[%s487] sm:$0x30]
    %vm489 = vcmask 1045508
    %v490 = vsel %vm489, %v488, %v486
    %491 = vrot.lane.b32.xlu0 %v490, 122
    %v492 = vpop.permute.xlu0 %491
    %vm493 = vcmask 23552
    %s494 = scalar_lea.vmem %s1, 770
    %495 = vst.msk [vmem:[%s494] ss:$16 sm:$0x3] %vm493, %v492
    %s496 = scalar_lea.vmem %s1, 770
    %497 = vst.msk [vmem:[%s496] ss:$16 sm:$0xc] %vm493, %v492
    %s498 = scalar_lea.vmem %s1, 770
    %499 = vst.msk [vmem:[%s498] ss:$16 sm:$0x30] %vm493, %v492
    %v500 = vld.sshfl [vmem:[#allocation0] sm:$0xff pattern:$0x99999810]
    %s501 = scalar_lea.vmem [#allocation0], 16
    %v502 = vld.sshfl [vmem:[%s501] sm:$0xff pattern:$0x98100000]
    %vm503 = vcmask 1047556
    %v504 = vsel %vm503, %v502, %v500
    %505 = vrot.lane.b32.xlu0 %v504, 119
    %v506 = vpop.permute.xlu0 %505
    %vm507 = vcmask 23552
    %s508 = scalar_lea.vmem %s1, 3
    %509 = vst.msk [vmem:[%s508] ss:$16 sm:$0x3] %vm507, %v506
    %s510 = scalar_lea.vmem %s1, 3
    %511 = vst.msk [vmem:[%s510] ss:$16 sm:$0xc] %vm507, %v506
    %s512 = scalar_lea.vmem %s1, 3
    %513 = vst.msk [vmem:[%s512] ss:$16 sm:$0x30] %vm507, %v506
    %s514 = scalar_lea.vmem %s1, 3
    %515 = vst.msk [vmem:[%s514] ss:$16 sm:$0xc0] %vm507, %v506
    %s516 = scalar_lea.vmem [#allocation0], 32
    %v517 = vld.sshfl [vmem:[%s516] sm:$0xff pattern:$0x99999810]
    %s518 = scalar_lea.vmem [#allocation0], 48
    %v519 = vld.sshfl [vmem:[%s518] sm:$0xff pattern:$0x98100000]
    %vm520 = vcmask 1047556
    %v521 = vsel %vm520, %v519, %v517
    %522 = vrot.lane.b32.xlu0 %v521, 119
    %v523 = vpop.permute.xlu0 %522
    %vm524 = vcmask 23552
    %s525 = scalar_lea.vmem %s1, 131
    %526 = vst.msk [vmem:[%s525] ss:$16 sm:$0x3] %vm524, %v523
    %s527 = scalar_lea.vmem %s1, 131
    %528 = vst.msk [vmem:[%s527] ss:$16 sm:$0xc] %vm524, %v523
    %s529 = scalar_lea.vmem %s1, 131
    %530 = vst.msk [vmem:[%s529] ss:$16 sm:$0x30] %vm524, %v523
    %s531 = scalar_lea.vmem %s1, 131
    %532 = vst.msk [vmem:[%s531] ss:$16 sm:$0xc0] %vm524, %v523
    %s533 = scalar_lea.vmem [#allocation0], 64
    %v534 = vld.sshfl [vmem:[%s533] sm:$0xff pattern:$0x99999810]
    %s535 = scalar_lea.vmem [#allocation0], 80
    %v536 = vld.sshfl [vmem:[%s535] sm:$0xff pattern:$0x98100000]
    %vm537 = vcmask 1047556
    %v538 = vsel %vm537, %v536, %v534
    %539 = vrot.lane.b32.xlu0 %v538, 119
    %v540 = vpop.permute.xlu0 %539
    %vm541 = vcmask 23552
    %s542 = scalar_lea.vmem %s1, 259
    %543 = vst.msk [vmem:[%s542] ss:$16 sm:$0x3] %vm541, %v540
    %s544 = scalar_lea.vmem %s1, 259
    %545 = vst.msk [vmem:[%s544] ss:$16 sm:$0xc] %vm541, %v540
    %s546 = scalar_lea.vmem %s1, 259
    %547 = vst.msk [vmem:[%s546] ss:$16 sm:$0x30] %vm541, %v540
    %s548 = scalar_lea.vmem %s1, 259
    %549 = vst.msk [vmem:[%s548] ss:$16 sm:$0xc0] %vm541, %v540
    %s550 = scalar_lea.vmem [#allocation0], 96
    %v551 = vld.sshfl [vmem:[%s550] sm:$0xff pattern:$0x99999810]
    %s552 = scalar_lea.vmem [#allocation0], 112
    %v553 = vld.sshfl [vmem:[%s552] sm:$0xff pattern:$0x98100000]
    %vm554 = vcmask 1047556
    %v555 = vsel %vm554, %v553, %v551
    %556 = vrot.lane.b32.xlu0 %v555, 119
    %v557 = vpop.permute.xlu0 %556
    %vm558 = vcmask 23552
    %s559 = scalar_lea.vmem %s1, 387
    %560 = vst.msk [vmem:[%s559] ss:$16 sm:$0x3] %vm558, %v557
    %s561 = scalar_lea.vmem %s1, 387
    %562 = vst.msk [vmem:[%s561] ss:$16 sm:$0xc] %vm558, %v557
    %s563 = scalar_lea.vmem %s1, 387
    %564 = vst.msk [vmem:[%s563] ss:$16 sm:$0x30] %vm558, %v557
    %s565 = scalar_lea.vmem %s1, 387
    %566 = vst.msk [vmem:[%s565] ss:$16 sm:$0xc0] %vm558, %v557
    %s567 = scalar_lea.vmem [#allocation0], 128
    %v568 = vld.sshfl [vmem:[%s567] sm:$0xff pattern:$0x99999810]
    %s569 = scalar_lea.vmem [#allocation0], 144
    %v570 = vld.sshfl [vmem:[%s569] sm:$0xff pattern:$0x98100000]
    %vm571 = vcmask 1047556
    %v572 = vsel %vm571, %v570, %v568
    %573 = vrot.lane.b32.xlu0 %v572, 119
    %v574 = vpop.permute.xlu0 %573
    %vm575 = vcmask 23552
    %s576 = scalar_lea.vmem %s1, 515
    %577 = vst.msk [vmem:[%s576] ss:$16 sm:$0x3] %vm575, %v574
    %s578 = scalar_lea.vmem %s1, 515
    %579 = vst.msk [vmem:[%s578] ss:$16 sm:$0xc] %vm575, %v574
    %s580 = scalar_lea.vmem %s1, 515
    %581 = vst.msk [vmem:[%s580] ss:$16 sm:$0x30] %vm575, %v574
    %s582 = scalar_lea.vmem %s1, 515
    %583 = vst.msk [vmem:[%s582] ss:$16 sm:$0xc0] %vm575, %v574
    %s584 = scalar_lea.vmem [#allocation0], 160
    %v585 = vld.sshfl [vmem:[%s584] sm:$0xff pattern:$0x99999810]
    %s586 = scalar_lea.vmem [#allocation0], 176
    %v587 = vld.sshfl [vmem:[%s586] sm:$0xff pattern:$0x98100000]
    %vm588 = vcmask 1047556
    %v589 = vsel %vm588, %v587, %v585
    %590 = vrot.lane.b32.xlu0 %v589, 119
    %v591 = vpop.permute.xlu0 %590
    %vm592 = vcmask 23552
    %s593 = scalar_lea.vmem %s1, 643
    %594 = vst.msk [vmem:[%s593] ss:$16 sm:$0x3] %vm592, %v591
    %s595 = scalar_lea.vmem %s1, 643
    %596 = vst.msk [vmem:[%s595] ss:$16 sm:$0xc] %vm592, %v591
    %s597 = scalar_lea.vmem %s1, 643
    %598 = vst.msk [vmem:[%s597] ss:$16 sm:$0x30] %vm592, %v591
    %s599 = scalar_lea.vmem %s1, 643
    %600 = vst.msk [vmem:[%s599] ss:$16 sm:$0xc0] %vm592, %v591
    %s601 = scalar_lea.vmem [#allocation0], 192
    %v602 = vld.sshfl [vmem:[%s601] sm:$0xff pattern:$0x99999810]
    %s603 = scalar_lea.vmem [#allocation0], 204
    %v604 = vld [vmem:[%s603] sm:$0x30]
    %vm605 = vcmask 1045508
    %v606 = vsel %vm605, %v604, %v602
    %607 = vrot.lane.b32.xlu0 %v606, 119
    %v608 = vpop.permute.xlu0 %607
    %vm609 = vcmask 23552
    %s610 = scalar_lea.vmem %s1, 771
    %611 = vst.msk [vmem:[%s610] ss:$16 sm:$0x3] %vm609, %v608
    %s612 = scalar_lea.vmem %s1, 771
    %613 = vst.msk [vmem:[%s612] ss:$16 sm:$0xc] %vm609, %v608
    %s614 = scalar_lea.vmem %s1, 771
    %615 = vst.msk [vmem:[%s614] ss:$16 sm:$0x30] %vm609, %v608
    %v616 = vld.sshfl [vmem:[#allocation0] sm:$0xff pattern:$0x99999810]
    %s617 = scalar_lea.vmem [#allocation0], 16
    %v618 = vld.sshfl [vmem:[%s617] sm:$0xff pattern:$0x98100000]
    %vm619 = vcmask 1047556
    %v620 = vsel %vm619, %v618, %v616
    %621 = vrot.lane.b32.xlu0 %v620, 116
    %v622 = vpop.permute.xlu0 %621
    %vm623 = vcmask 23552
    %s624 = scalar_lea.vmem %s1, 4
    %625 = vst.msk [vmem:[%s624] ss:$16 sm:$0x3] %vm623, %v622
    %s626 = scalar_lea.vmem %s1, 4
    %627 = vst.msk [vmem:[%s626] ss:$16 sm:$0xc] %vm623, %v622
    %s628 = scalar_lea.vmem %s1, 4
    %629 = vst.msk [vmem:[%s628] ss:$16 sm:$0x30] %vm623, %v622
    %s630 = scalar_lea.vmem %s1, 4
    %631 = vst.msk [vmem:[%s630] ss:$16 sm:$0xc0] %vm623, %v622
    %s632 = scalar_lea.vmem [#allocation0], 32
    %v633 = vld.sshfl [vmem:[%s632] sm:$0xff pattern:$0x99999810]
    %s634 = scalar_lea.vmem [#allocation0], 48
    %v635 = vld.sshfl [vmem:[%s634] sm:$0xff pattern:$0x98100000]
    %vm636 = vcmask 1047556
    %v637 = vsel %vm636, %v635, %v633
    %638 = vrot.lane.b32.xlu0 %v637, 116
    %v639 = vpop.permute.xlu0 %638
    %vm640 = vcmask 23552
    %s641 = scalar_lea.vmem %s1, 132
    %642 = vst.msk [vmem:[%s641] ss:$16 sm:$0x3] %vm640, %v639
    %s643 = scalar_lea.vmem %s1, 132
    %644 = vst.msk [vmem:[%s643] ss:$16 sm:$0xc] %vm640, %v639
    %s645 = scalar_lea.vmem %s1, 132
    %646 = vst.msk [vmem:[%s645] ss:$16 sm:$0x30] %vm640, %v639
    %s647 = scalar_lea.vmem %s1, 132
    %648 = vst.msk [vmem:[%s647] ss:$16 sm:$0xc0] %vm640, %v639
    %s649 = scalar_lea.vmem [#allocation0], 64
    %v650 = vld.sshfl [vmem:[%s649] sm:$0xff pattern:$0x99999810]
    %s651 = scalar_lea.vmem [#allocation0], 80
    %v652 = vld.sshfl [vmem:[%s651] sm:$0xff pattern:$0x98100000]
    %vm653 = vcmask 1047556
    %v654 = vsel %vm653, %v652, %v650
    %655 = vrot.lane.b32.xlu0 %v654, 116
    %v656 = vpop.permute.xlu0 %655
    %vm657 = vcmask 23552
    %s658 = scalar_lea.vmem %s1, 260
    %659 = vst.msk [vmem:[%s658] ss:$16 sm:$0x3] %vm657, %v656
    %s660 = scalar_lea.vmem %s1, 260
    %661 = vst.msk [vmem:[%s660] ss:$16 sm:$0xc] %vm657, %v656
    %s662 = scalar_lea.vmem %s1, 260
    %663 = vst.msk [vmem:[%s662] ss:$16 sm:$0x30] %vm657, %v656
    %s664 = scalar_lea.vmem %s1, 260
    %665 = vst.msk [vmem:[%s664] ss:$16 sm:$0xc0] %vm657, %v656
    %s666 = scalar_lea.vmem [#allocation0], 96
    %v667 = vld.sshfl [vmem:[%s666] sm:$0xff pattern:$0x99999810]
    %s668 = scalar_lea.vmem [#allocation0], 112
    %v669 = vld.sshfl [vmem:[%s668] sm:$0xff pattern:$0x98100000]
    %vm670 = vcmask 1047556
    %v671 = vsel %vm670, %v669, %v667
    %672 = vrot.lane.b32.xlu0 %v671, 116
    %v673 = vpop.permute.xlu0 %672
    %vm674 = vcmask 23552
    %s675 = scalar_lea.vmem %s1, 388
    %676 = vst.msk [vmem:[%s675] ss:$16 sm:$0x3] %vm674, %v673
    %s677 = scalar_lea.vmem %s1, 388
    %678 = vst.msk [vmem:[%s677] ss:$16 sm:$0xc] %vm674, %v673
    %s679 = scalar_lea.vmem %s1, 388
    %680 = vst.msk [vmem:[%s679] ss:$16 sm:$0x30] %vm674, %v673
    %s681 = scalar_lea.vmem %s1, 388
    %682 = vst.msk [vmem:[%s681] ss:$16 sm:$0xc0] %vm674, %v673
    %s683 = scalar_lea.vmem [#allocation0], 128
    %v684 = vld.sshfl [vmem:[%s683] sm:$0xff pattern:$0x99999810]
    %s685 = scalar_lea.vmem [#allocation0], 144
    %v686 = vld.sshfl [vmem:[%s685] sm:$0xff pattern:$0x98100000]
    %vm687 = vcmask 1047556
    %v688 = vsel %vm687, %v686, %v684
    %689 = vrot.lane.b32.xlu0 %v688, 116
    %v690 = vpop.permute.xlu0 %689
    %vm691 = vcmask 23552
    %s692 = scalar_lea.vmem %s1, 516
    %693 = vst.msk [vmem:[%s692] ss:$16 sm:$0x3] %vm691, %v690
    %s694 = scalar_lea.vmem %s1, 516
    %695 = vst.msk [vmem:[%s694] ss:$16 sm:$0xc] %vm691, %v690
    %s696 = scalar_lea.vmem %s1, 516
    %697 = vst.msk [vmem:[%s696] ss:$16 sm:$0x30] %vm691, %v690
    %s698 = scalar_lea.vmem %s1, 516
    %699 = vst.msk [vmem:[%s698] ss:$16 sm:$0xc0] %vm691, %v690
    %s700 = scalar_lea.vmem [#allocation0], 160
    %v701 = vld.sshfl [vmem:[%s700] sm:$0xff pattern:$0x99999810]
    %s702 = scalar_lea.vmem [#allocation0], 176
    %v703 = vld.sshfl [vmem:[%s702] sm:$0xff pattern:$0x98100000]
    %vm704 = vcmask 1047556
    %v705 = vsel %vm704, %v703, %v701
    %706 = vrot.lane.b32.xlu0 %v705, 116
    %v707 = vpop.permute.xlu0 %706
    %vm708 = vcmask 23552
    %s709 = scalar_lea.vmem %s1, 644
    %710 = vst.msk [vmem:[%s709] ss:$16 sm:$0x3] %vm708, %v707
    %s711 = scalar_lea.vmem %s1, 644
    %712 = vst.msk [vmem:[%s711] ss:$16 sm:$0xc] %vm708, %v707
    %s713 = scalar_lea.vmem %s1, 644
    %714 = vst.msk [vmem:[%s713] ss:$16 sm:$0x30] %vm708, %v707
    %s715 = scalar_lea.vmem %s1, 644
    %716 = vst.msk [vmem:[%s715] ss:$16 sm:$0xc0] %vm708, %v707
    %s717 = scalar_lea.vmem [#allocation0], 192
    %v718 = vld.sshfl [vmem:[%s717] sm:$0xff pattern:$0x99999810]
    %s719 = scalar_lea.vmem [#allocation0], 204
    %v720 = vld [vmem:[%s719] sm:$0x30]
    %vm721 = vcmask 1045508
    %v722 = vsel %vm721, %v720, %v718
    %723 = vrot.lane.b32.xlu0 %v722, 116
    %v724 = vpop.permute.xlu0 %723
    %vm725 = vcmask 23552
    %s726 = scalar_lea.vmem %s1, 772
    %727 = vst.msk [vmem:[%s726] ss:$16 sm:$0x3] %vm725, %v724
    %s728 = scalar_lea.vmem %s1, 772
    %729 = vst.msk [vmem:[%s728] ss:$16 sm:$0xc] %vm725, %v724
    %s730 = scalar_lea.vmem %s1, 772
    %731 = vst.msk [vmem:[%s730] ss:$16 sm:$0x30] %vm725, %v724
    %v732 = vld.sshfl [vmem:[#allocation0] sm:$0xff pattern:$0x99999810]
    %s733 = scalar_lea.vmem [#allocation0], 16
    %v734 = vld.sshfl [vmem:[%s733] sm:$0xff pattern:$0x98100000]
    %vm735 = vcmask 1047556
    %v736 = vsel %vm735, %v734, %v732
    %737 = vrot.lane.b32.xlu0 %v736, 113
    %v738 = vpop.permute.xlu0 %737
    %vm739 = vcmask 23552
    %s740 = scalar_lea.vmem %s1, 5
    %741 = vst.msk [vmem:[%s740] ss:$16 sm:$0x3] %vm739, %v738
    %s742 = scalar_lea.vmem %s1, 5
    %743 = vst.msk [vmem:[%s742] ss:$16 sm:$0xc] %vm739, %v738
    %s744 = scalar_lea.vmem %s1, 5
    %745 = vst.msk [vmem:[%s744] ss:$16 sm:$0x30] %vm739, %v738
    %s746 = scalar_lea.vmem %s1, 5
    %747 = vst.msk [vmem:[%s746] ss:$16 sm:$0xc0] %vm739, %v738
    %s748 = scalar_lea.vmem [#allocation0], 32
    %v749 = vld.sshfl [vmem:[%s748] sm:$0xff pattern:$0x99999810]
    %s750 = scalar_lea.vmem [#allocation0], 48
    %v751 = vld.sshfl [vmem:[%s750] sm:$0xff pattern:$0x98100000]
    %vm752 = vcmask 1047556
    %v753 = vsel %vm752, %v751, %v749
    %754 = vrot.lane.b32.xlu0 %v753, 113
    %v755 = vpop.permute.xlu0 %754
    %vm756 = vcmask 23552
    %s757 = scalar_lea.vmem %s1, 133
    %758 = vst.msk [vmem:[%s757] ss:$16 sm:$0x3] %vm756, %v755
    %s759 = scalar_lea.vmem %s1, 133
    %760 = vst.msk [vmem:[%s759] ss:$16 sm:$0xc] %vm756, %v755
    %s761 = scalar_lea.vmem %s1, 133
    %762 = vst.msk [vmem:[%s761] ss:$16 sm:$0x30] %vm756, %v755
    %s763 = scalar_lea.vmem %s1, 133
    %764 = vst.msk [vmem:[%s763] ss:$16 sm:$0xc0] %vm756, %v755
    %s765 = scalar_lea.vmem [#allocation0], 64
    %v766 = vld.sshfl [vmem:[%s765] sm:$0xff pattern:$0x99999810]
    %s767 = scalar_lea.vmem [#allocation0], 80
    %v768 = vld.sshfl [vmem:[%s767] sm:$0xff pattern:$0x98100000]
    %vm769 = vcmask 1047556
    %v770 = vsel %vm769, %v768, %v766
    %771 = vrot.lane.b32.xlu0 %v770, 113
    %v772 = vpop.permute.xlu0 %771
    %vm773 = vcmask 23552
    %s774 = scalar_lea.vmem %s1, 261
    %775 = vst.msk [vmem:[%s774] ss:$16 sm:$0x3] %vm773, %v772
    %s776 = scalar_lea.vmem %s1, 261
    %777 = vst.msk [vmem:[%s776] ss:$16 sm:$0xc] %vm773, %v772
    %s778 = scalar_lea.vmem %s1, 261
    %779 = vst.msk [vmem:[%s778] ss:$16 sm:$0x30] %vm773, %v772
    %s780 = scalar_lea.vmem %s1, 261
    %781 = vst.msk [vmem:[%s780] ss:$16 sm:$0xc0] %vm773, %v772
    %s782 = scalar_lea.vmem [#allocation0], 96
    %v783 = vld.sshfl [vmem:[%s782] sm:$0xff pattern:$0x99999810]
    %s784 = scalar_lea.vmem [#allocation0], 112
    %v785 = vld.sshfl [vmem:[%s784] sm:$0xff pattern:$0x98100000]
    %vm786 = vcmask 1047556
    %v787 = vsel %vm786, %v785, %v783
    %788 = vrot.lane.b32.xlu0 %v787, 113
    %v789 = vpop.permute.xlu0 %788
    %vm790 = vcmask 23552
    %s791 = scalar_lea.vmem %s1, 389
    %792 = vst.msk [vmem:[%s791] ss:$16 sm:$0x3] %vm790, %v789
    %s793 = scalar_lea.vmem %s1, 389
    %794 = vst.msk [vmem:[%s793] ss:$16 sm:$0xc] %vm790, %v789
    %s795 = scalar_lea.vmem %s1, 389
    %796 = vst.msk [vmem:[%s795] ss:$16 sm:$0x30] %vm790, %v789
    %s797 = scalar_lea.vmem %s1, 389
    %798 = vst.msk [vmem:[%s797] ss:$16 sm:$0xc0] %vm790, %v789
    %s799 = scalar_lea.vmem [#allocation0], 128
    %v800 = vld.sshfl [vmem:[%s799] sm:$0xff pattern:$0x99999810]
    %s801 = scalar_lea.vmem [#allocation0], 144
    %v802 = vld.sshfl [vmem:[%s801] sm:$0xff pattern:$0x98100000]
    %vm803 = vcmask 1047556
    %v804 = vsel %vm803, %v802, %v800
    %805 = vrot.lane.b32.xlu0 %v804, 113
    %v806 = vpop.permute.xlu0 %805
    %vm807 = vcmask 23552
    %s808 = scalar_lea.vmem %s1, 517
    %809 = vst.msk [vmem:[%s808] ss:$16 sm:$0x3] %vm807, %v806
    %s810 = scalar_lea.vmem %s1, 517
    %811 = vst.msk [vmem:[%s810] ss:$16 sm:$0xc] %vm807, %v806
    %s812 = scalar_lea.vmem %s1, 517
    %813 = vst.msk [vmem:[%s812] ss:$16 sm:$0x30] %vm807, %v806
    %s814 = scalar_lea.vmem %s1, 517
    %815 = vst.msk [vmem:[%s814] ss:$16 sm:$0xc0] %vm807, %v806
    %s816 = scalar_lea.vmem [#allocation0], 160
    %v817 = vld.sshfl [vmem:[%s816] sm:$0xff pattern:$0x99999810]
    %s818 = scalar_lea.vmem [#allocation0], 176
    %v819 = vld.sshfl [vmem:[%s818] sm:$0xff pattern:$0x98100000]
    %vm820 = vcmask 1047556
    %v821 = vsel %vm820, %v819, %v817
    %822 = vrot.lane.b32.xlu0 %v821, 113
    %v823 = vpop.permute.xlu0 %822
    %vm824 = vcmask 23552
    %s825 = scalar_lea.vmem %s1, 645
    %826 = vst.msk [vmem:[%s825] ss:$16 sm:$0x3] %vm824, %v823
    %s827 = scalar_lea.vmem %s1, 645
    %828 = vst.msk [vmem:[%s827] ss:$16 sm:$0xc] %vm824, %v823
    %s829 = scalar_lea.vmem %s1, 645
    %830 = vst.msk [vmem:[%s829] ss:$16 sm:$0x30] %vm824, %v823
    %s831 = scalar_lea.vmem %s1, 645
    %832 = vst.msk [vmem:[%s831] ss:$16 sm:$0xc0] %vm824, %v823
    %s833 = scalar_lea.vmem [#allocation0], 192
    %v834 = vld.sshfl [vmem:[%s833] sm:$0xff pattern:$0x99999810]
    %s835 = scalar_lea.vmem [#allocation0], 204
    %v836 = vld [vmem:[%s835] sm:$0x30]
    %vm837 = vcmask 1045508
    %v838 = vsel %vm837, %v836, %v834
    %839 = vrot.lane.b32.xlu0 %v838, 113
    %v840 = vpop.permute.xlu0 %839
    %vm841 = vcmask 23552
    %s842 = scalar_lea.vmem %s1, 773
    %843 = vst.msk [vmem:[%s842] ss:$16 sm:$0x3] %vm841, %v840
    %s844 = scalar_lea.vmem %s1, 773
    %845 = vst.msk [vmem:[%s844] ss:$16 sm:$0xc] %vm841, %v840
    %s846 = scalar_lea.vmem %s1, 773
    %847 = vst.msk [vmem:[%s846] ss:$16 sm:$0x30] %vm841, %v840
    %v848 = vld.sshfl [vmem:[#allocation0] sm:$0xff pattern:$0x99999810]
    %s849 = scalar_lea.vmem [#allocation0], 16
    %v850 = vld.sshfl [vmem:[%s849] sm:$0xff pattern:$0x98100000]
    %vm851 = vcmask 1047556
    %v852 = vsel %vm851, %v850, %v848
    %853 = vrot.lane.b32.xlu0 %v852, 110
    %v854 = vpop.permute.xlu0 %853
    %vm855 = vcmask 23552
    %s856 = scalar_lea.vmem %s1, 6
    %857 = vst.msk [vmem:[%s856] ss:$16 sm:$0x3] %vm855, %v854
    %s858 = scalar_lea.vmem %s1, 6
    %859 = vst.msk [vmem:[%s858] ss:$16 sm:$0xc] %vm855, %v854
    %s860 = scalar_lea.vmem %s1, 6
    %861 = vst.msk [vmem:[%s860] ss:$16 sm:$0x30] %vm855, %v854
    %s862 = scalar_lea.vmem %s1, 6
    %863 = vst.msk [vmem:[%s862] ss:$16 sm:$0xc0] %vm855, %v854
    %s864 = scalar_lea.vmem [#allocation0], 32
    %v865 = vld.sshfl [vmem:[%s864] sm:$0xff pattern:$0x99999810]
    %s866 = scalar_lea.vmem [#allocation0], 48
    %v867 = vld.sshfl [vmem:[%s866] sm:$0xff pattern:$0x98100000]
    %vm868 = vcmask 1047556
    %v869 = vsel %vm868, %v867, %v865
    %870 = vrot.lane.b32.xlu0 %v869, 110
    %v871 = vpop.permute.xlu0 %870
    %vm872 = vcmask 23552
    %s873 = scalar_lea.vmem %s1, 134
    %874 = vst.msk [vmem:[%s873] ss:$16 sm:$0x3] %vm872, %v871
    %s875 = scalar_lea.vmem %s1, 134
    %876 = vst.msk [vmem:[%s875] ss:$16 sm:$0xc] %vm872, %v871
    %s877 = scalar_lea.vmem %s1, 134
    %878 = vst.msk [vmem:[%s877] ss:$16 sm:$0x30] %vm872, %v871
    %s879 = scalar_lea.vmem %s1, 134
    %880 = vst.msk [vmem:[%s879] ss:$16 sm:$0xc0] %vm872, %v871
    %s881 = scalar_lea.vmem [#allocation0], 64
    %v882 = vld.sshfl [vmem:[%s881] sm:$0xff pattern:$0x99999810]
    %s883 = scalar_lea.vmem [#allocation0], 80
    %v884 = vld.sshfl [vmem:[%s883] sm:$0xff pattern:$0x98100000]
    %vm885 = vcmask 1047556
    %v886 = vsel %vm885, %v884, %v882
    %887 = vrot.lane.b32.xlu0 %v886, 110
    %v888 = vpop.permute.xlu0 %887
    %vm889 = vcmask 23552
    %s890 = scalar_lea.vmem %s1, 262
    %891 = vst.msk [vmem:[%s890] ss:$16 sm:$0x3] %vm889, %v888
    %s892 = scalar_lea.vmem %s1, 262
    %893 = vst.msk [vmem:[%s892] ss:$16 sm:$0xc] %vm889, %v888
    %s894 = scalar_lea.vmem %s1, 262
    %895 = vst.msk [vmem:[%s894] ss:$16 sm:$0x30] %vm889, %v888
    %s896 = scalar_lea.vmem %s1, 262
    %897 = vst.msk [vmem:[%s896] ss:$16 sm:$0xc0] %vm889, %v888
    %s898 = scalar_lea.vmem [#allocation0], 96
    %v899 = vld.sshfl [vmem:[%s898] sm:$0xff pattern:$0x99999810]
    %s900 = scalar_lea.vmem [#allocation0], 112
    %v901 = vld.sshfl [vmem:[%s900] sm:$0xff pattern:$0x98100000]
    %vm902 = vcmask 1047556
    %v903 = vsel %vm902, %v901, %v899
    %904 = vrot.lane.b32.xlu0 %v903, 110
    %v905 = vpop.permute.xlu0 %904
    %vm906 = vcmask 23552
    %s907 = scalar_lea.vmem %s1, 390
    %908 = vst.msk [vmem:[%s907] ss:$16 sm:$0x3] %vm906, %v905
    %s909 = scalar_lea.vmem %s1, 390
    %910 = vst.msk [vmem:[%s909] ss:$16 sm:$0xc] %vm906, %v905
    %s911 = scalar_lea.vmem %s1, 390
    %912 = vst.msk [vmem:[%s911] ss:$16 sm:$0x30] %vm906, %v905
    %s913 = scalar_lea.vmem %s1, 390
    %914 = vst.msk [vmem:[%s913] ss:$16 sm:$0xc0] %vm906, %v905
    %s915 = scalar_lea.vmem [#allocation0], 128
    %v916 = vld.sshfl [vmem:[%s915] sm:$0xff pattern:$0x99999810]
    %s917 = scalar_lea.vmem [#allocation0], 144
    %v918 = vld.sshfl [vmem:[%s917] sm:$0xff pattern:$0x98100000]
    %vm919 = vcmask 1047556
    %v920 = vsel %vm919, %v918, %v916
    %921 = vrot.lane.b32.xlu0 %v920, 110
    %v922 = vpop.permute.xlu0 %921
    %vm923 = vcmask 23552
    %s924 = scalar_lea.vmem %s1, 518
    %925 = vst.msk [vmem:[%s924] ss:$16 sm:$0x3] %vm923, %v922
    %s926 = scalar_lea.vmem %s1, 518
    %927 = vst.msk [vmem:[%s926] ss:$16 sm:$0xc] %vm923, %v922
    %s928 = scalar_lea.vmem %s1, 518
    %929 = vst.msk [vmem:[%s928] ss:$16 sm:$0x30] %vm923, %v922
    %s930 = scalar_lea.vmem %s1, 518
    %931 = vst.msk [vmem:[%s930] ss:$16 sm:$0xc0] %vm923, %v922
    %s932 = scalar_lea.vmem [#allocation0], 160
    %v933 = vld.sshfl [vmem:[%s932] sm:$0xff pattern:$0x99999810]
    %s934 = scalar_lea.vmem [#allocation0], 176
    %v935 = vld.sshfl [vmem:[%s934] sm:$0xff pattern:$0x98100000]
    %vm936 = vcmask 1047556
    %v937 = vsel %vm936, %v935, %v933
    %938 = vrot.lane.b32.xlu0 %v937, 110
    %v939 = vpop.permute.xlu0 %938
    %vm940 = vcmask 23552
    %s941 = scalar_lea.vmem %s1, 646
    %942 = vst.msk [vmem:[%s941] ss:$16 sm:$0x3] %vm940, %v939
    %s943 = scalar_lea.vmem %s1, 646
    %944 = vst.msk [vmem:[%s943] ss:$16 sm:$0xc] %vm940, %v939
    %s945 = scalar_lea.vmem %s1, 646
    %946 = vst.msk [vmem:[%s945] ss:$16 sm:$0x30] %vm940, %v939
    %s947 = scalar_lea.vmem %s1, 646
    %948 = vst.msk [vmem:[%s947] ss:$16 sm:$0xc0] %vm940, %v939
    %s949 = scalar_lea.vmem [#allocation0], 192
    %v950 = vld.sshfl [vmem:[%s949] sm:$0xff pattern:$0x99999810]
    %s951 = scalar_lea.vmem [#allocation0], 204
    %v952 = vld [vmem:[%s951] sm:$0x30]
    %vm953 = vcmask 1045508
    %v954 = vsel %vm953, %v952, %v950
    %955 = vrot.lane.b32.xlu0 %v954, 110
    %v956 = vpop.permute.xlu0 %955
    %vm957 = vcmask 23552
    %s958 = scalar_lea.vmem %s1, 774
    %959 = vst.msk [vmem:[%s958] ss:$16 sm:$0x3] %vm957, %v956
    %s960 = scalar_lea.vmem %s1, 774
    %961 = vst.msk [vmem:[%s960] ss:$16 sm:$0xc] %vm957, %v956
    %s962 = scalar_lea.vmem %s1, 774
    %963 = vst.msk [vmem:[%s962] ss:$16 sm:$0x30] %vm957, %v956
    %v964 = vld.sshfl [vmem:[#allocation0] sm:$0xff pattern:$0x99999810]
    %s965 = scalar_lea.vmem [#allocation0], 16
    %v966 = vld.sshfl [vmem:[%s965] sm:$0xff pattern:$0x98100000]
    %vm967 = vcmask 1047556
    %v968 = vsel %vm967, %v966, %v964
    %969 = vrot.lane.b32.xlu0 %v968, 107
    %v970 = vpop.permute.xlu0 %969
    %vm971 = vcmask 23552
    %s972 = scalar_lea.vmem %s1, 7
    %973 = vst.msk [vmem:[%s972] ss:$16 sm:$0x3] %vm971, %v970
    %s974 = scalar_lea.vmem %s1, 7
    %975 = vst.msk [vmem:[%s974] ss:$16 sm:$0xc] %vm971, %v970
    %s976 = scalar_lea.vmem %s1, 7
    %977 = vst.msk [vmem:[%s976] ss:$16 sm:$0x30] %vm971, %v970
    %s978 = scalar_lea.vmem %s1, 7
    %979 = vst.msk [vmem:[%s978] ss:$16 sm:$0xc0] %vm971, %v970
    %s980 = scalar_lea.vmem [#allocation0], 32
    %v981 = vld.sshfl [vmem:[%s980] sm:$0xff pattern:$0x99999810]
    %s982 = scalar_lea.vmem [#allocation0], 48
    %v983 = vld.sshfl [vmem:[%s982] sm:$0xff pattern:$0x98100000]
    %vm984 = vcmask 1047556
    %v985 = vsel %vm984, %v983, %v981
    %986 = vrot.lane.b32.xlu0 %v985, 107
    %v987 = vpop.permute.xlu0 %986
    %vm988 = vcmask 23552
    %s989 = scalar_lea.vmem %s1, 135
    %990 = vst.msk [vmem:[%s989] ss:$16 sm:$0x3] %vm988, %v987
    %s991 = scalar_lea.vmem %s1, 135
    %992 = vst.msk [vmem:[%s991] ss:$16 sm:$0xc] %vm988, %v987
    %s993 = scalar_lea.vmem %s1, 135
    %994 = vst.msk [vmem:[%s993] ss:$16 sm:$0x30] %vm988, %v987
    %s995 = scalar_lea.vmem %s1, 135
    %996 = vst.msk [vmem:[%s995] ss:$16 sm:$0xc0] %vm988, %v987
    %s997 = scalar_lea.vmem [#allocation0], 64
    %v998 = vld.sshfl [vmem:[%s997] sm:$0xff pattern:$0x99999810]
    %s999 = scalar_lea.vmem [#allocation0], 80
    %v1000 = vld.sshfl [vmem:[%s999] sm:$0xff pattern:$0x98100000]
    %vm1001 = vcmask 1047556
    %v1002 = vsel %vm1001, %v1000, %v998
    %1003 = vrot.lane.b32.xlu0 %v1002, 107
    %v1004 = vpop.permute.xlu0 %1003
    %vm1005 = vcmask 23552
    %s1006 = scalar_lea.vmem %s1, 263
    %1007 = vst.msk [vmem:[%s1006] ss:$16 sm:$0x3] %vm1005, %v1004
    %s1008 = scalar_lea.vmem %s1, 263
    %1009 = vst.msk [vmem:[%s1008] ss:$16 sm:$0xc] %vm1005, %v1004
    %s1010 = scalar_lea.vmem %s1, 263
    %1011 = vst.msk [vmem:[%s1010] ss:$16 sm:$0x30] %vm1005, %v1004
    %s1012 = scalar_lea.vmem %s1, 263
    %1013 = vst.msk [vmem:[%s1012] ss:$16 sm:$0xc0] %vm1005, %v1004
    %s1014 = scalar_lea.vmem [#allocation0], 96
    %v1015 = vld.sshfl [vmem:[%s1014] sm:$0xff pattern:$0x99999810]
    %s1016 = scalar_lea.vmem [#allocation0], 112
    %v1017 = vld.sshfl [vmem:[%s1016] sm:$0xff pattern:$0x98100000]
    %vm1018 = vcmask 1047556
    %v1019 = vsel %vm1018, %v1017, %v1015
    %1020 = vrot.lane.b32.xlu0 %v1019, 107
    %v1021 = vpop.permute.xlu0 %1020
    %vm1022 = vcmask 23552
    %s1023 = scalar_lea.vmem %s1, 391
    %1024 = vst.msk [vmem:[%s1023] ss:$16 sm:$0x3] %vm1022, %v1021
    %s1025 = scalar_lea.vmem %s1, 391
    %1026 = vst.msk [vmem:[%s1025] ss:$16 sm:$0xc] %vm1022, %v1021
    %s1027 = scalar_lea.vmem %s1, 391
    %1028 = vst.msk [vmem:[%s1027] ss:$16 sm:$0x30] %vm1022, %v1021
    %s1029 = scalar_lea.vmem %s1, 391
    %1030 = vst.msk [vmem:[%s1029] ss:$16 sm:$0xc0] %vm1022, %v1021
    %s1031 = scalar_lea.vmem [#allocation0], 128
    %v1032 = vld.sshfl [vmem:[%s1031] sm:$0xff pattern:$0x99999810]
    %s1033 = scalar_lea.vmem [#allocation0], 144
    %v1034 = vld.sshfl [vmem:[%s1033] sm:$0xff pattern:$0x98100000]
    %vm1035 = vcmask 1047556
    %v1036 = vsel %vm1035, %v1034, %v1032
    %1037 = vrot.lane.b32.xlu0 %v1036, 107
    %v1038 = vpop.permute.xlu0 %1037
    %vm1039 = vcmask 23552
    %s1040 = scalar_lea.vmem %s1, 519
    %1041 = vst.msk [vmem:[%s1040] ss:$16 sm:$0x3] %vm1039, %v1038
    %s1042 = scalar_lea.vmem %s1, 519
    %1043 = vst.msk [vmem:[%s1042] ss:$16 sm:$0xc] %vm1039, %v1038
    %s1044 = scalar_lea.vmem %s1, 519
    %1045 = vst.msk [vmem:[%s1044] ss:$16 sm:$0x30] %vm1039, %v1038
    %s1046 = scalar_lea.vmem %s1, 519
    %1047 = vst.msk [vmem:[%s1046] ss:$16 sm:$0xc0] %vm1039, %v1038
    %s1048 = scalar_lea.vmem [#allocation0], 160
    %v1049 = vld.sshfl [vmem:[%s1048] sm:$0xff pattern:$0x99999810]
    %s1050 = scalar_lea.vmem [#allocation0], 176
    %v1051 = vld.sshfl [vmem:[%s1050] sm:$0xff pattern:$0x98100000]
    %vm1052 = vcmask 1047556
    %v1053 = vsel %vm1052, %v1051, %v1049
    %1054 = vrot.lane.b32.xlu0 %v1053, 107
    %v1055 = vpop.permute.xlu0 %1054
    %vm1056 = vcmask 23552
    %s1057 = scalar_lea.vmem %s1, 647
    %1058 = vst.msk [vmem:[%s1057] ss:$16 sm:$0x3] %vm1056, %v1055
    %s1059 = scalar_lea.vmem %s1, 647
    %1060 = vst.msk [vmem:[%s1059] ss:$16 sm:$0xc] %vm1056, %v1055
    %s1061 = scalar_lea.vmem %s1, 647
    %1062 = vst.msk [vmem:[%s1061] ss:$16 sm:$0x30] %vm1056, %v1055
    %s1063 = scalar_lea.vmem %s1, 647
    %1064 = vst.msk [vmem:[%s1063] ss:$16 sm:$0xc0] %vm1056, %v1055
    %s1065 = scalar_lea.vmem [#allocation0], 192
    %v1066 = vld.sshfl [vmem:[%s1065] sm:$0xff pattern:$0x99999810]
    %s1067 = scalar_lea.vmem [#allocation0], 204
    %v1068 = vld [vmem:[%s1067] sm:$0x30]
    %vm1069 = vcmask 1045508
    %v1070 = vsel %vm1069, %v1068, %v1066
    %1071 = vrot.lane.b32.xlu0 %v1070, 107
    %v1072 = vpop.permute.xlu0 %1071
    %vm1073 = vcmask 23552
    %s1074 = scalar_lea.vmem %s1, 775
    %1075 = vst.msk [vmem:[%s1074] ss:$16 sm:$0x3] %vm1073, %v1072
    %s1076 = scalar_lea.vmem %s1, 775
    %1077 = vst.msk [vmem:[%s1076] ss:$16 sm:$0xc] %vm1073, %v1072
    %s1078 = scalar_lea.vmem %s1, 775
    %1079 = vst.msk [vmem:[%s1078] ss:$16 sm:$0x30] %vm1073, %v1072
    %v1080 = vld.sshfl [vmem:[#allocation0] sm:$0xff pattern:$0x99999810]
    %s1081 = scalar_lea.vmem [#allocation0], 16
    %v1082 = vld.sshfl [vmem:[%s1081] sm:$0xff pattern:$0x98100000]
    %vm1083 = vcmask 1047556
    %v1084 = vsel %vm1083, %v1082, %v1080
    %1085 = vrot.lane.b32.xlu0 %v1084, 104
    %v1086 = vpop.permute.xlu0 %1085
    %vm1087 = vcmask 23552
    %s1088 = scalar_lea.vmem %s1, 8
    %1089 = vst.msk [vmem:[%s1088] ss:$16 sm:$0x3] %vm1087, %v1086
    %s1090 = scalar_lea.vmem %s1, 8
    %1091 = vst.msk [vmem:[%s1090] ss:$16 sm:$0xc] %vm1087, %v1086
    %s1092 = scalar_lea.vmem %s1, 8
    %1093 = vst.msk [vmem:[%s1092] ss:$16 sm:$0x30] %vm1087, %v1086
    %s1094 = scalar_lea.vmem %s1, 8
    %1095 = vst.msk [vmem:[%s1094] ss:$16 sm:$0xc0] %vm1087, %v1086
    %s1096 = scalar_lea.vmem [#allocation0], 32
    %v1097 = vld.sshfl [vmem:[%s1096] sm:$0xff pattern:$0x99999810]
    %s1098 = scalar_lea.vmem [#allocation0], 48
    %v1099 = vld.sshfl [vmem:[%s1098] sm:$0xff pattern:$0x98100000]
    %vm1100 = vcmask 1047556
    %v1101 = vsel %vm1100, %v1099, %v1097
    %1102 = vrot.lane.b32.xlu0 %v1101, 104
    %v1103 = vpop.permute.xlu0 %1102
    %vm1104 = vcmask 23552
    %s1105 = scalar_lea.vmem %s1, 136
    %1106 = vst.msk [vmem:[%s1105] ss:$16 sm:$0x3] %vm1104, %v1103
    %s1107 = scalar_lea.vmem %s1, 136
    %1108 = vst.msk [vmem:[%s1107] ss:$16 sm:$0xc] %vm1104, %v1103
    %s1109 = scalar_lea.vmem %s1, 136
    %1110 = vst.msk [vmem:[%s1109] ss:$16 sm:$0x30] %vm1104, %v1103
    %s1111 = scalar_lea.vmem %s1, 136
    %1112 = vst.msk [vmem:[%s1111] ss:$16 sm:$0xc0] %vm1104, %v1103
    %s1113 = scalar_lea.vmem [#allocation0], 64
    %v1114 = vld.sshfl [vmem:[%s1113] sm:$0xff pattern:$0x99999810]
    %s1115 = scalar_lea.vmem [#allocation0], 80
    %v1116 = vld.sshfl [vmem:[%s1115] sm:$0xff pattern:$0x98100000]
    %vm1117 = vcmask 1047556
    %v1118 = vsel %vm1117, %v1116, %v1114
    %1119 = vrot.lane.b32.xlu0 %v1118, 104
    %v1120 = vpop.permute.xlu0 %1119
    %vm1121 = vcmask 23552
    %s1122 = scalar_lea.vmem %s1, 264
    %1123 = vst.msk [vmem:[%s1122] ss:$16 sm:$0x3] %vm1121, %v1120
    %s1124 = scalar_lea.vmem %s1, 264
    %1125 = vst.msk [vmem:[%s1124] ss:$16 sm:$0xc] %vm1121, %v1120
    %s1126 = scalar_lea.vmem %s1, 264
    %1127 = vst.msk [vmem:[%s1126] ss:$16 sm:$0x30] %vm1121, %v1120
    %s1128 = scalar_lea.vmem %s1, 264
    %1129 = vst.msk [vmem:[%s1128] ss:$16 sm:$0xc0] %vm1121, %v1120
    %s1130 = scalar_lea.vmem [#allocation0], 96
    %v1131 = vld.sshfl [vmem:[%s1130] sm:$0xff pattern:$0x99999810]
    %s1132 = scalar_lea.vmem [#allocation0], 112
    %v1133 = vld.sshfl [vmem:[%s1132] sm:$0xff pattern:$0x98100000]
    %vm1134 = vcmask 1047556
    %v1135 = vsel %vm1134, %v1133, %v1131
    %1136 = vrot.lane.b32.xlu0 %v1135, 104
    %v1137 = vpop.permute.xlu0 %1136
    %vm1138 = vcmask 23552
    %s1139 = scalar_lea.vmem %s1, 392
    %1140 = vst.msk [vmem:[%s1139] ss:$16 sm:$0x3] %vm1138, %v1137
    %s1141 = scalar_lea.vmem %s1, 392
    %1142 = vst.msk [vmem:[%s1141] ss:$16 sm:$0xc] %vm1138, %v1137
    %s1143 = scalar_lea.vmem %s1, 392
    %1144 = vst.msk [vmem:[%s1143] ss:$16 sm:$0x30] %vm1138, %v1137
    %s1145 = scalar_lea.vmem %s1, 392
    %1146 = vst.msk [vmem:[%s1145] ss:$16 sm:$0xc0] %vm1138, %v1137
    %s1147 = scalar_lea.vmem [#allocation0], 128
    %v1148 = vld.sshfl [vmem:[%s1147] sm:$0xff pattern:$0x99999810]
    %s1149 = scalar_lea.vmem [#allocation0], 144
    %v1150 = vld.sshfl [vmem:[%s1149] sm:$0xff pattern:$0x98100000]
    %vm1151 = vcmask 1047556
    %v1152 = vsel %vm1151, %v1150, %v1148
    %1153 = vrot.lane.b32.xlu0 %v1152, 104
    %v1154 = vpop.permute.xlu0 %1153
    %vm1155 = vcmask 23552
    %s1156 = scalar_lea.vmem %s1, 520
    %1157 = vst.msk [vmem:[%s1156] ss:$16 sm:$0x3] %vm1155, %v1154
    %s1158 = scalar_lea.vmem %s1, 520
    %1159 = vst.msk [vmem:[%s1158] ss:$16 sm:$0xc] %vm1155, %v1154
    %s1160 = scalar_lea.vmem %s1, 520
    %1161 = vst.msk [vmem:[%s1160] ss:$16 sm:$0x30] %vm1155, %v1154
    %s1162 = scalar_lea.vmem %s1, 520
    %1163 = vst.msk [vmem:[%s1162] ss:$16 sm:$0xc0] %vm1155, %v1154
    %s1164 = scalar_lea.vmem [#allocation0], 160
    %v1165 = vld.sshfl [vmem:[%s1164] sm:$0xff pattern:$0x99999810]
    %s1166 = scalar_lea.vmem [#allocation0], 176
    %v1167 = vld.sshfl [vmem:[%s1166] sm:$0xff pattern:$0x98100000]
    %vm1168 = vcmask 1047556
    %v1169 = vsel %vm1168, %v1167, %v1165
    %1170 = vrot.lane.b32.xlu0 %v1169, 104
    %v1171 = vpop.permute.xlu0 %1170
    %vm1172 = vcmask 23552
    %s1173 = scalar_lea.vmem %s1, 648
    %1174 = vst.msk [vmem:[%s1173] ss:$16 sm:$0x3] %vm1172, %v1171
    %s1175 = scalar_lea.vmem %s1, 648
    %1176 = vst.msk [vmem:[%s1175] ss:$16 sm:$0xc] %vm1172, %v1171
    %s1177 = scalar_lea.vmem %s1, 648
    %1178 = vst.msk [vmem:[%s1177] ss:$16 sm:$0x30] %vm1172, %v1171
    %s1179 = scalar_lea.vmem %s1, 648
    %1180 = vst.msk [vmem:[%s1179] ss:$16 sm:$0xc0] %vm1172, %v1171
    %s1181 = scalar_lea.vmem [#allocation0], 192
    %v1182 = vld.sshfl [vmem:[%s1181] sm:$0xff pattern:$0x99999810]
    %s1183 = scalar_lea.vmem [#allocation0], 204
    %v1184 = vld [vmem:[%s1183] sm:$0x30]
    %vm1185 = vcmask 1045508
    %v1186 = vsel %vm1185, %v1184, %v1182
    %1187 = vrot.lane.b32.xlu0 %v1186, 104
    %v1188 = vpop.permute.xlu0 %1187
    %vm1189 = vcmask 23552
    %s1190 = scalar_lea.vmem %s1, 776
    %1191 = vst.msk [vmem:[%s1190] ss:$16 sm:$0x3] %vm1189, %v1188
    %s1192 = scalar_lea.vmem %s1, 776
    %1193 = vst.msk [vmem:[%s1192] ss:$16 sm:$0xc] %vm1189, %v1188
    %s1194 = scalar_lea.vmem %s1, 776
    %1195 = vst.msk [vmem:[%s1194] ss:$16 sm:$0x30] %vm1189, %v1188

// kernel: _lambda_.1
$region0: #{_lambda_.1}
  #allocation0 [shape = 'u32[]', space=smem, size = 0x4, offset = 0x4, fixed_abs, tag = 'smem constant byte address 0x4 - core index']
  #allocation1 [shape = 'u32[144,128]{1,0:T(1,128)}', space=vmem, size = 0x12000, scoped, tag = 'internal scratch']
  %s0 = inlined_call_operand.vmem [shape: f32[162,9], index: 0, kind: input, shape index: {}]
  %s1 = inlined_call_operand.vmem [shape: f32[9,8], index: 1, kind: input, shape index: {}]
  %s2 = inlined_call_operand.vmem [shape: f32[1,8], index: 2, kind: input, shape index: {}]
  %s3 = inlined_call_operand.vmem [shape: f32[9,32,162], index: 3, kind: input, shape index: {}]
  %s4 = inlined_call_operand.vmem [shape: f32[9,8,16], index: 4, kind: input, shape index: {}]
  %s5 = inlined_call_operand.vmem [shape: f32[1,16], index: 5, kind: input, shape index: {}]
  %s6 = inlined_call_operand.vmem [shape: f32[4,8,32], index: 6, kind: input, shape index: {}]
  %s7 = inlined_call_operand.vmem [shape: f32[4,16,384], index: 7, kind: input, shape index: {}]
  %s8 = inlined_call_operand.vmem [shape: f32[1,384], index: 8, kind: input, shape index: {}]
  %s9 = inlined_call_operand.vmem [shape: f32[4,2,8], index: 9, kind: input, shape index: {}]
  %s10 = inlined_call_operand.vmem [shape: f32[4,384,10], index: 10, kind: input, shape index: {}]
  %s11 = inlined_call_operand.vmem [shape: f32[1,10], index: 11, kind: input, shape index: {}]
  %s12 = inlined_call_operand.hbm [shape: f32[2,10], index: 12, kind: output, shape index: {}]
  %s13 = sld [smem:[#allocation0]]
  $region58: #{_lambda_.1} parent=0
    _
  %s15 = ssub.s32 1, %s13
  %s16 = scalar_select 0, %s15, %s13
  $region1: #{_lambda_.1} parent=0
    #allocation2 [shape = 'u8[1024]{0}', space=vmem, size = 0x400, scoped, tag = 'output window, operand 0, single buffered']
    #allocation3 [shape = 's32[1]{0}', space=sflag, size = 0x4, scoped, tag = 'scoped memory for _lambda_.1']
    %17 = vsyncpa [#allocation3], 0
    // Predicated region
    $region2: #{_lambda_.1} parent=1 // pred_check
      _
    $region3: #{_lambda_.1} parent=1 // pred_check_branch
      %19 = sbr.rel (0) target = $region5
    $region4: #{_lambda_.1} parent=1 // pred_region
      _
    $region5: #{_lambda_.1} parent=1 // pred_fallthru
      _
    // Predicated region
    $region6: #{_lambda_.1} parent=1 // pred_check
      _
    $region7: #{_lambda_.1} parent=1 // pred_check_branch
      %21 = sbr.rel (0) target = $region9
    $region8: #{_lambda_.1} parent=1 // pred_region
      _
    $region9: #{_lambda_.1} parent=1 // pred_fallthru
      _
    // Predicated region
    $region10: #{_lambda_.1} parent=1 // pred_check
      _
    $region11: #{_lambda_.1} parent=1 // pred_check_branch
      %23 = sbr.rel (0) target = $region13
    $region12: #{_lambda_.1} parent=1 // pred_region
      _
    $region13: #{_lambda_.1} parent=1 // pred_fallthru
      _
    // Predicated region
    $region14: #{_lambda_.1} parent=1 // pred_check
      _
    $region15: #{_lambda_.1} parent=1 // pred_check_branch
      %25 = sbr.rel (0) target = $region17
    $region16: #{_lambda_.1} parent=1 // pred_region
      _
    $region17: #{_lambda_.1} parent=1 // pred_fallthru
      _
    // Predicated region
    $region18: #{_lambda_.1} parent=1 // pred_check
      _
    $region19: #{_lambda_.1} parent=1 // pred_check_branch
      %27 = sbr.rel (0) target = $region21
    $region20: #{_lambda_.1} parent=1 // pred_region
      _
    $region21: #{_lambda_.1} parent=1 // pred_fallthru
      _
    // Predicated region
    $region22: #{_lambda_.1} parent=1 // pred_check
      _
    $region23: #{_lambda_.1} parent=1 // pred_check_branch
      %29 = sbr.rel (0) target = $region25
    $region24: #{_lambda_.1} parent=1 // pred_region
      _
    $region25: #{_lambda_.1} parent=1 // pred_fallthru
      _
    // Predicated region
    $region26: #{_lambda_.1} parent=1 // pred_check
      _
    $region27: #{_lambda_.1} parent=1 // pred_check_branch
      %31 = sbr.rel (0) target = $region29
    $region28: #{_lambda_.1} parent=1 // pred_region
      _
    $region29: #{_lambda_.1} parent=1 // pred_fallthru
      _
    // Predicated region
    $region30: #{_lambda_.1} parent=1 // pred_check
      _
    $region31: #{_lambda_.1} parent=1 // pred_check_branch
      %33 = sbr.rel (0) target = $region33
    $region32: #{_lambda_.1} parent=1 // pred_region
      _
    $region33: #{_lambda_.1} parent=1 // pred_fallthru
      _
    // Predicated region
    $region34: #{_lambda_.1} parent=1 // pred_check
      _
    $region35: #{_lambda_.1} parent=1 // pred_check_branch
      %35 = sbr.rel (0) target = $region37
    $region36: #{_lambda_.1} parent=1 // pred_region
      _
    $region37: #{_lambda_.1} parent=1 // pred_fallthru
      _
    // Predicated region
    $region38: #{_lambda_.1} parent=1 // pred_check
      _
    $region39: #{_lambda_.1} parent=1 // pred_check_branch
      %37 = sbr.rel (0) target = $region41
    $region40: #{_lambda_.1} parent=1 // pred_region
      _
    $region41: #{_lambda_.1} parent=1 // pred_fallthru
      _
    // Predicated region
    $region42: #{_lambda_.1} parent=1 // pred_check
      _
    $region43: #{_lambda_.1} parent=1 // pred_check_branch
      %39 = sbr.rel (0) target = $region45
    $region44: #{_lambda_.1} parent=1 // pred_region
      _
    $region45: #{_lambda_.1} parent=1 // pred_fallthru
      _
    // Predicated region
    $region46: #{_lambda_.1} parent=1 // pred_check
      _
    $region47: #{_lambda_.1} parent=1 // pred_check_branch
      %41 = sbr.rel (0) target = $region49
    $region48: #{_lambda_.1} parent=1 // pred_region
      _
    $region49: #{_lambda_.1} parent=1 // pred_fallthru
      _
    %v42 = vld [vmem:[%s0] sm:$0xff]
    %v43 = vld [vmem:[%s0 + $0x8] sm:$0xff]
    %v44 = vld [vmem:[%s0 + $0x10] sm:$0xff]
    %v45 = vld [vmem:[%s0 + $0x18] sm:$0xff]
    %v46 = vld [vmem:[%s0 + $0x20] sm:$0xff]
    %v47 = vld [vmem:[%s0 + $0x28] sm:$0xff]
    %v48 = vld [vmem:[%s0 + $0x30] sm:$0xff]
    %v49 = vld [vmem:[%s0 + $0x38] sm:$0xff]
    %v50 = vld [vmem:[%s0 + $0x40] sm:$0xff]
    %v51 = vld [vmem:[%s0 + $0x48] sm:$0xff]
    %v52 = vld [vmem:[%s0 + $0x50] sm:$0xff]
    %v53 = vld [vmem:[%s0 + $0x58] sm:$0xff]
    %v54 = vld [vmem:[%s0 + $0x60] sm:$0xff]
    %v55 = vld [vmem:[%s0 + $0x68] sm:$0xff]
    %v56 = vld [vmem:[%s0 + $0x70] sm:$0xff]
    %v57 = vld [vmem:[%s0 + $0x78] sm:$0xff]
    %v58 = vld [vmem:[%s0 + $0x80] sm:$0xff]
    %v59 = vld [vmem:[%s0 + $0x88] sm:$0xff]
    %v60 = vld [vmem:[%s0 + $0x90] sm:$0xff]
    %v61 = vld [vmem:[%s0 + $0x98] sm:$0xff]
    %v62 = vld [vmem:[%s0 + $0xa0] sm:$0x3]
    %v63 = vld [vmem:[%s1] sm:$0xff]
    %v64 = vld [vmem:[%s1 + $0x8] sm:$0x1]
    %v65 = vld [vmem:[%s2] sm:$0x1]
    %v67 = vlaneseq
    %v68 = vshrl.u32 %v67, 7
    %v69 = vsub.s32 0, %v68
    %v70 = vrot.slane %v65, %v69
    %vm72 = vcmask 72704
    %v74 = vsel %vm72, %v42, 0
    %v77 = vsel %vm72, %v43, 0
    %v80 = vsel %vm72, %v44, 0
    %v83 = vsel %vm72, %v45, 0
    %v86 = vsel %vm72, %v46, 0
    %v89 = vsel %vm72, %v47, 0
    %v92 = vsel %vm72, %v48, 0
    %v95 = vsel %vm72, %v49, 0
    %v98 = vsel %vm72, %v50, 0
    %v101 = vsel %vm72, %v51, 0
    %v104 = vsel %vm72, %v52, 0
    %v107 = vsel %vm72, %v53, 0
    %v110 = vsel %vm72, %v54, 0
    %v113 = vsel %vm72, %v55, 0
    %v116 = vsel %vm72, %v56, 0
    %v119 = vsel %vm72, %v57, 0
    %v122 = vsel %vm72, %v58, 0
    %v125 = vsel %vm72, %v59, 0
    %v128 = vsel %vm72, %v60, 0
    %v131 = vsel %vm72, %v61, 0
    %v134 = vsel %vm72, %v62, 0
    %vm136 = vcmask 1040384
    %v138 = vsel %vm136, %v64, 0
    %140 = vmatprep.subr.mxu0 0.0
    %141 = vmatpush1.msra.mxu0 %v63
    %142 = vmatprep.subr.mxu0 0.0
    %143 = vmatpush1.msra.mxu0 %v138
    %144 = vmatprep.subr.mxu0 0.0
    %145 = vmatpush1.msra.mxu0 0.0
    %146 = vmatprep.subr.mxu0 0.0
    %147 = vmatpush1.msra.mxu0 0.0
    %148 = vmatprep.subr.mxu0 0.0
    %149 = vmatpush1.msra.mxu0 0.0
    %150 = vmatprep.subr.mxu0 0.0
    %151 = vmatpush1.msra.mxu0 0.0
    %152 = vmatprep.subr.mxu0 0.0
    %153 = vmatpush1.msra.mxu0 0.0
    %154 = vmatprep.subr.mxu0 0.0
    %155 = vmatpush1.msra.mxu0 0.0
    %156 = vmatprep.subr.mxu0 0.0
    %157 = vmatpush1.msra.mxu0 0.0
    %158 = vmatprep.subr.mxu0 0.0
    %159 = vmatpush1.msra.mxu0 0.0
    %160 = vmatprep.subr.mxu0 0.0
    %161 = vmatpush1.msra.mxu0 0.0
    %162 = vmatprep.subr.mxu0 0.0
    %163 = vmatpush1.msra.mxu0 0.0
    %164 = vmatprep.subr.mxu0 0.0
    %165 = vmatpush1.msra.mxu0 0.0
    %166 = vmatprep.subr.mxu0 0.0
    %167 = vmatpush1.msra.mxu0 0.0
    %168 = vmatprep.subr.mxu0 0.0
    %169 = vmatpush1.msra.mxu0 0.0
    %170 = vmatprep.subr.mxu0 0.0
    %171 = vmatpush1.msra.mxu0 0.0
    %172 = vmatprep.subr.mxu0 0.0
    %173 = vmatpush1.msra.mxu0 0.0
    %174 = vmatprep.subr.mxu0 0.0
    %175 = vmatpush1.msra.mxu0 0.0
    %176 = vmatprep.subr.mxu0 0.0
    %177 = vmatpush1.msra.mxu0 0.0
    %178 = vmatprep.subr.mxu0 0.0
    %179 = vmatpush1.msra.mxu0 0.0
    %180 = vmatprep.subr.mxu0 0.0
    %181 = vmatpush1.msra.mxu0 0.0
    %182 = vmatprep.subr.mxu0 0.0
    %183 = vmatpush1.msra.mxu0 0.0
    %184 = vmatprep.subr.mxu0 0.0
    %185 = vmatpush1.msra.mxu0 0.0
    %186 = vmatprep.subr.mxu0 0.0
    %187 = vmatpush1.msra.mxu0 0.0
    %188 = vmatprep.subr.mxu0 0.0
    %189 = vmatpush1.msra.mxu0 0.0
    %190 = vmatprep.subr.mxu0 0.0
    %191 = vmatpush1.msra.mxu0 0.0
    %192 = vmatprep.subr.mxu0 0.0
    %193 = vmatpush1.msra.mxu0 0.0
    %194 = vmatprep.subr.mxu0 0.0
    %195 = vmatpush1.msra.mxu0 0.0
    %196 = vmatprep.subr.mxu0 0.0
    %197 = vmatpush1.msra.mxu0 0.0
    %198 = vmatprep.subr.mxu0 0.0
    %199 = vmatpush1.msra.mxu0 0.0
    %200 = vmatprep.subr.mxu0 0.0
    %201 = vmatpush1.msra.mxu0 0.0
    %202 = vmatprep.subr.mxu0 0.0
    %203 = vmatpush1.msra.mxu0 0.0
    %204 = vmatprep.mubr.f32.mxu0 0.0
    %205 = vmatmul.mubr.f32.gmra.mrb[0].mxu0 %v74
    %v206 = vpop.f32.mrb[0].mxu0
    %v207 = vadd.f32 %v70, %v206
    %v208 = vpop.f32.mrb[0].mxu0
    %209 = vmatprep.mubr.f32.mxu0 0.0
    %210 = vmatmul.mubr.f32.gmra.mrb[0].mxu0 %v77
    %v211 = vpop.f32.mrb[0].mxu0
    %v212 = vadd.f32 %v70, %v211
    %v213 = vpop.f32.mrb[0].mxu0
    %214 = vmatprep.mubr.f32.mxu0 0.0
    %215 = vmatmul.mubr.f32.gmra.mrb[0].mxu0 %v80
    %v216 = vpop.f32.mrb[0].mxu0
    %v217 = vadd.f32 %v70, %v216
    %v218 = vpop.f32.mrb[0].mxu0
    %219 = vmatprep.mubr.f32.mxu0 0.0
    %220 = vmatmul.mubr.f32.gmra.mrb[0].mxu0 %v83
    %v221 = vpop.f32.mrb[0].mxu0
    %v222 = vadd.f32 %v70, %v221
    %v223 = vpop.f32.mrb[0].mxu0
    %224 = vmatprep.mubr.f32.mxu0 0.0
    %225 = vmatmul.mubr.f32.gmra.mrb[0].mxu0 %v86
    %v226 = vpop.f32.mrb[0].mxu0
    %v227 = vadd.f32 %v70, %v226
    %v228 = vpop.f32.mrb[0].mxu0
    %229 = vmatprep.mubr.f32.mxu0 0.0
    %230 = vmatmul.mubr.f32.gmra.mrb[0].mxu0 %v89
    %v231 = vpop.f32.mrb[0].mxu0
    %v232 = vadd.f32 %v70, %v231
    %v233 = vpop.f32.mrb[0].mxu0
    %234 = vmatprep.mubr.f32.mxu0 0.0
    %235 = vmatmul.mubr.f32.gmra.mrb[0].mxu0 %v92
    %v236 = vpop.f32.mrb[0].mxu0
    %v237 = vadd.f32 %v70, %v236
    %v238 = vpop.f32.mrb[0].mxu0
    %239 = vmatprep.mubr.f32.mxu0 0.0
    %240 = vmatmul.mubr.f32.gmra.mrb[0].mxu0 %v95
    %v241 = vpop.f32.mrb[0].mxu0
    %v242 = vadd.f32 %v70, %v241
    %v243 = vpop.f32.mrb[0].mxu0
    %244 = vmatprep.mubr.f32.mxu0 0.0
    %245 = vmatmul.mubr.f32.gmra.mrb[0].mxu0 %v98
    %v246 = vpop.f32.mrb[0].mxu0
    %v247 = vadd.f32 %v70, %v246
    %v248 = vpop.f32.mrb[0].mxu0
    %249 = vmatprep.mubr.f32.mxu0 0.0
    %250 = vmatmul.mubr.f32.gmra.mrb[0].mxu0 %v101
    %v251 = vpop.f32.mrb[0].mxu0
    %v252 = vadd.f32 %v70, %v251
    %v253 = vpop.f32.mrb[0].mxu0
    %254 = vmatprep.mubr.f32.mxu0 0.0
    %255 = vmatmul.mubr.f32.gmra.mrb[0].mxu0 %v104
    %v256 = vpop.f32.mrb[0].mxu0
    %v257 = vadd.f32 %v70, %v256
    %v258 = vpop.f32.mrb[0].mxu0
    %259 = vmatprep.mubr.f32.mxu0 0.0
    %260 = vmatmul.mubr.f32.gmra.mrb[0].mxu0 %v107
    %v261 = vpop.f32.mrb[0].mxu0
    %v262 = vadd.f32 %v70, %v261
    %v263 = vpop.f32.mrb[0].mxu0
    %264 = vmatprep.mubr.f32.mxu0 0.0
    %265 = vmatmul.mubr.f32.gmra.mrb[0].mxu0 %v110
    %v266 = vpop.f32.mrb[0].mxu0
    %v267 = vadd.f32 %v70, %v266
    %v268 = vpop.f32.mrb[0].mxu0
    %269 = vmatprep.mubr.f32.mxu0 0.0
    %270 = vmatmul.mubr.f32.gmra.mrb[0].mxu0 %v113
    %v271 = vpop.f32.mrb[0].mxu0
    %v272 = vadd.f32 %v70, %v271
    %v273 = vpop.f32.mrb[0].mxu0
    %274 = vmatprep.mubr.f32.mxu0 0.0
    %275 = vmatmul.mubr.f32.gmra.mrb[0].mxu0 %v116
    %v276 = vpop.f32.mrb[0].mxu0
    %v277 = vadd.f32 %v70, %v276
    %v278 = vpop.f32.mrb[0].mxu0
    %279 = vmatprep.mubr.f32.mxu0 0.0
    %280 = vmatmul.mubr.f32.gmra.mrb[0].mxu0 %v119
    %v281 = vpop.f32.mrb[0].mxu0
    %v282 = vadd.f32 %v70, %v281
    %v283 = vpop.f32.mrb[0].mxu0
    %284 = vmatprep.mubr.f32.mxu0 0.0
    %285 = vmatmul.mubr.f32.gmra.mrb[0].mxu0 %v122
    %v286 = vpop.f32.mrb[0].mxu0
    %v287 = vadd.f32 %v70, %v286
    %v288 = vpop.f32.mrb[0].mxu0
    %289 = vmatprep.mubr.f32.mxu0 0.0
    %290 = vmatmul.mubr.f32.gmra.mrb[0].mxu0 %v125
    %v291 = vpop.f32.mrb[0].mxu0
    %v292 = vadd.f32 %v70, %v291
    %v293 = vpop.f32.mrb[0].mxu0
    %294 = vmatprep.mubr.f32.mxu0 0.0
    %295 = vmatmul.mubr.f32.gmra.mrb[0].mxu0 %v128
    %v296 = vpop.f32.mrb[0].mxu0
    %v297 = vadd.f32 %v70, %v296
    %v298 = vpop.f32.mrb[0].mxu0
    %299 = vmatprep.mubr.f32.mxu0 0.0
    %300 = vmatmul.mubr.f32.gmra.mrb[0].mxu0 %v131
    %v301 = vpop.f32.mrb[0].mxu0
    %v302 = vadd.f32 %v70, %v301
    %v303 = vpop.f32.mrb[0].mxu0
    %304 = vmatprep.mubr.f32.mxu0 0.0
    %305 = vmatmul.mubr.f32.gmra.mrb[0].mxu0 %v134
    %v306 = vpop.f32.mrb[0].mxu0
    %v307 = vadd.f32 %v70, %v306
    %v308 = vpop.f32.mrb[0].mxu0
    %309 = vdwg.mxu0
    %vm310 = vcmp.ge.f32.partialorder %v207, 0.0
    %vm311 = vcmp.ge.f32.partialorder %v212, 0.0
    %vm312 = vcmp.ge.f32.partialorder %v217, 0.0
    %vm313 = vcmp.ge.f32.partialorder %v222, 0.0
    %vm314 = vcmp.ge.f32.partialorder %v227, 0.0
    %vm315 = vcmp.ge.f32.partialorder %v232, 0.0
    %vm316 = vcmp.ge.f32.partialorder %v237, 0.0
    %vm317 = vcmp.ge.f32.partialorder %v242, 0.0
    %vm318 = vcmp.ge.f32.partialorder %v247, 0.0
    %vm319 = vcmp.ge.f32.partialorder %v252, 0.0
    %vm320 = vcmp.ge.f32.partialorder %v257, 0.0
    %vm321 = vcmp.ge.f32.partialorder %v262, 0.0
    %vm322 = vcmp.ge.f32.partialorder %v267, 0.0
    %vm323 = vcmp.ge.f32.partialorder %v272, 0.0
    %vm324 = vcmp.ge.f32.partialorder %v277, 0.0
    %vm325 = vcmp.ge.f32.partialorder %v282, 0.0
    %vm326 = vcmp.ge.f32.partialorder %v287, 0.0
    %vm327 = vcmp.ge.f32.partialorder %v292, 0.0
    %vm328 = vcmp.ge.f32.partialorder %v297, 0.0
    %vm329 = vcmp.ge.f32.partialorder %v302, 0.0
    %vm330 = vcmp.ge.f32.partialorder %v307, 0.0
    %v331 = vmul.f32 %v207, 0.01
    %v332 = vmul.f32 %v212, 0.01
    %v333 = vmul.f32 %v217, 0.01
    %v334 = vmul.f32 %v222, 0.01
    %v335 = vmul.f32 %v227, 0.01
    %v336 = vmul.f32 %v232, 0.01
    %v337 = vmul.f32 %v237, 0.01
    %v338 = vmul.f32 %v242, 0.01
    %v339 = vmul.f32 %v247, 0.01
    %v340 = vmul.f32 %v252, 0.01
    %v341 = vmul.f32 %v257, 0.01
    %v342 = vmul.f32 %v262, 0.01
    %v343 = vmul.f32 %v267, 0.01
    %v344 = vmul.f32 %v272, 0.01
    %v345 = vmul.f32 %v277, 0.01
    %v346 = vmul.f32 %v282, 0.01
    %v347 = vmul.f32 %v287, 0.01
    %v348 = vmul.f32 %v292, 0.01
    %v349 = vmul.f32 %v297, 0.01
    %v350 = vmul.f32 %v302, 0.01
    %v351 = vmul.f32 %v307, 0.01
    %v352 = vsel %vm310, %v207, %v331
    %v353 = vsel %vm311, %v212, %v332
    %v354 = vsel %vm312, %v217, %v333
    %v355 = vsel %vm313, %v222, %v334
    %v356 = vsel %vm314, %v227, %v335
    %v357 = vsel %vm315, %v232, %v336
    %v358 = vsel %vm316, %v237, %v337
    %v359 = vsel %vm317, %v242, %v338
    %v360 = vsel %vm318, %v247, %v339
    %v361 = vsel %vm319, %v252, %v340
    %v362 = vsel %vm320, %v257, %v341
    %v363 = vsel %vm321, %v262, %v342
    %v364 = vsel %vm322, %v267, %v343
    %v365 = vsel %vm323, %v272, %v344
    %v366 = vsel %vm324, %v277, %v345
    %v367 = vsel %vm325, %v282, %v346
    %v368 = vsel %vm326, %v287, %v347
    %v369 = vsel %vm327, %v292, %v348
    %v370 = vsel %vm328, %v297, %v349
    %v371 = vsel %vm329, %v302, %v350
    %v372 = vsel %vm330, %v307, %v351
    %v373 = vld [vmem:[%s3] sm:$0xff]
    %v374 = vld [vmem:[%s3 + $0x8] sm:$0xff]
    %v375 = vld [vmem:[%s3 + $0x10] sm:$0xff]
    %v376 = vld [vmem:[%s3 + $0x18] sm:$0xff]
    %v377 = vld [vmem:[%s3 + $0x20] sm:$0xff]
    %v378 = vld [vmem:[%s3 + $0x28] sm:$0xff]
    %v379 = vld [vmem:[%s3 + $0x30] sm:$0xff]
    %v380 = vld [vmem:[%s3 + $0x38] sm:$0xff]
    %vm381 = vcmask 277504
    %v383 = vsel %vm381, %v374, 0
    %v386 = vsel %vm381, %v376, 0
    %v389 = vsel %vm381, %v378, 0
    %v392 = vsel %vm381, %v380, 0
    %vm394 = vcmask 1041408
    %v396 = vsel %vm394, %v372, 0
    %398 = vmatprep.subr.mxu0 0.0
    %399 = vmatpush1.msra.mxu0 %v352
    %400 = vmatprep.subr.mxu0 0.0
    %401 = vmatpush1.msra.mxu0 %v353
    %402 = vmatprep.subr.mxu0 0.0
    %403 = vmatpush1.msra.mxu0 %v354
    %404 = vmatprep.subr.mxu0 0.0
    %405 = vmatpush1.msra.mxu0 %v355
    %406 = vmatprep.subr.mxu0 0.0
    %407 = vmatpush1.msra.mxu0 %v356
    %408 = vmatprep.subr.mxu0 0.0
    %409 = vmatpush1.msra.mxu0 %v357
    %410 = vmatprep.subr.mxu0 0.0
    %411 = vmatpush1.msra.mxu0 %v358
    %412 = vmatprep.subr.mxu0 0.0
    %413 = vmatpush1.msra.mxu0 %v359
    %414 = vmatprep.subr.mxu0 0.0
    %415 = vmatpush1.msra.mxu0 %v360
    %416 = vmatprep.subr.mxu0 0.0
    %417 = vmatpush1.msra.mxu0 %v361
    %418 = vmatprep.subr.mxu0 0.0
    %419 = vmatpush1.msra.mxu0 %v362
    %420 = vmatprep.subr.mxu0 0.0
    %421 = vmatpush1.msra.mxu0 %v363
    %422 = vmatprep.subr.mxu0 0.0
    %423 = vmatpush1.msra.mxu0 %v364
    %424 = vmatprep.subr.mxu0 0.0
    %425 = vmatpush1.msra.mxu0 %v365
    %426 = vmatprep.subr.mxu0 0.0
    %427 = vmatpush1.msra.mxu0 %v366
    %428 = vmatprep.subr.mxu0 0.0
    %429 = vmatpush1.msra.mxu0 %v367
    %430 = vmatprep.subr.mxu0 0.0
    %431 = vmatpush1.msra.mxu0 %v368
    %432 = vmatprep.subr.mxu0 0.0
    %433 = vmatpush1.msra.mxu0 %v369
    %434 = vmatprep.subr.mxu0 0.0
    %435 = vmatpush1.msra.mxu0 %v370
    %436 = vmatprep.subr.mxu0 0.0
    %437 = vmatpush1.msra.mxu0 %v371
    %438 = vmatprep.subr.mxu0 0.0
    %439 = vmatpush1.msra.mxu0 %v396
    %440 = vmatprep.subr.mxu0 0.0
    %441 = vmatpush1.msra.mxu0 0.0
    %442 = vmatprep.subr.mxu0 0.0
    %443 = vmatpush1.msra.mxu0 0.0
    %444 = vmatprep.subr.mxu0 0.0
    %445 = vmatpush1.msra.mxu0 0.0
    %446 = vmatprep.subr.mxu0 0.0
    %447 = vmatpush1.msra.mxu0 0.0
    %448 = vmatprep.subr.mxu0 0.0
    %449 = vmatpush1.msra.mxu0 0.0
    %450 = vmatprep.subr.mxu0 0.0
    %451 = vmatpush1.msra.mxu0 0.0
    %452 = vmatprep.subr.mxu0 0.0
    %453 = vmatpush1.msra.mxu0 0.0
    %454 = vmatprep.subr.mxu0 0.0
    %455 = vmatpush1.msra.mxu0 0.0
    %456 = vmatprep.subr.mxu0 0.0
    %457 = vmatpush1.msra.mxu0 0.0
    %458 = vmatprep.subr.mxu0 0.0
    %459 = vmatpush1.msra.mxu0 0.0
    %460 = vmatprep.subr.mxu0 0.0
    %461 = vmatpush1.msra.mxu0 0.0
    %462 = vmatprep.mubr.f32.mxu0 %v383
    %463 = vmatmul.mubr.f32.gmra.mrb[0].mxu0 %v373
    %v464 = vpop.f32.mrb[0].mxu0
    %v465 = vadd.f32 0.0, %v464
    %v466 = vpop.f32.mrb[0].mxu0
    %467 = vmatprep.mubr.f32.mxu0 %v386
    %468 = vmatmul.mubr.f32.gmra.mrb[0].mxu0 %v375
    %v469 = vpop.f32.mrb[0].mxu0
    %v470 = vadd.f32 0.0, %v469
    %v471 = vpop.f32.mrb[0].mxu0
    %472 = vmatprep.mubr.f32.mxu0 %v389
    %473 = vmatmul.mubr.f32.gmra.mrb[0].mxu0 %v377
    %v474 = vpop.f32.mrb[0].mxu0
    %v475 = vadd.f32 0.0, %v474
    %v476 = vpop.f32.mrb[0].mxu0
    %477 = vmatprep.mubr.f32.mxu0 %v392
    %478 = vmatmul.mubr.f32.gmra.mrb[0].mxu0 %v379
    %v479 = vpop.f32.mrb[0].mxu0
    %v480 = vadd.f32 0.0, %v479
    %v481 = vpop.f32.mrb[0].mxu0
    %482 = vdwg.mxu0
    %v483 = vld [vmem:[%s4] sm:$0xff]
    %s484 = scalar_lea.vmem %s3, 64
    %v485 = vld [vmem:[%s484] sm:$0xff]
    %v486 = vld [vmem:[%s484 + $0x8] sm:$0xff]
    %v487 = vld [vmem:[%s484 + $0x10] sm:$0xff]
    %v488 = vld [vmem:[%s484 + $0x18] sm:$0xff]
    %v489 = vld [vmem:[%s484 + $0x20] sm:$0xff]
    %v490 = vld [vmem:[%s484 + $0x28] sm:$0xff]
    %v491 = vld [vmem:[%s484 + $0x30] sm:$0xff]
    %v492 = vld [vmem:[%s484 + $0x38] sm:$0xff]
    %v494 = vsel %vm381, %v486, 0
    %v497 = vsel %vm381, %v488, 0
    %v500 = vsel %vm381, %v490, 0
    %v503 = vsel %vm381, %v492, 0
    %505 = vmatprep.subr.mxu0 0.0
    %506 = vmatpush1.msra.mxu0 %v352
    %507 = vmatprep.subr.mxu0 0.0
    %508 = vmatpush1.msra.mxu0 %v353
    %509 = vmatprep.subr.mxu0 0.0
    %510 = vmatpush1.msra.mxu0 %v354
    %511 = vmatprep.subr.mxu0 0.0
    %512 = vmatpush1.msra.mxu0 %v355
    %513 = vmatprep.subr.mxu0 0.0
    %514 = vmatpush1.msra.mxu0 %v356
    %515 = vmatprep.subr.mxu0 0.0
    %516 = vmatpush1.msra.mxu0 %v357
    %517 = vmatprep.subr.mxu0 0.0
    %518 = vmatpush1.msra.mxu0 %v358
    %519 = vmatprep.subr.mxu0 0.0
    %520 = vmatpush1.msra.mxu0 %v359
    %521 = vmatprep.subr.mxu0 0.0
    %522 = vmatpush1.msra.mxu0 %v360
    %523 = vmatprep.subr.mxu0 0.0
    %524 = vmatpush1.msra.mxu0 %v361
    %525 = vmatprep.subr.mxu0 0.0
    %526 = vmatpush1.msra.mxu0 %v362
    %527 = vmatprep.subr.mxu0 0.0
    %528 = vmatpush1.msra.mxu0 %v363
    %529 = vmatprep.subr.mxu0 0.0
    %530 = vmatpush1.msra.mxu0 %v364
    %531 = vmatprep.subr.mxu0 0.0
    %532 = vmatpush1.msra.mxu0 %v365
    %533 = vmatprep.subr.mxu0 0.0
    %534 = vmatpush1.msra.mxu0 %v366
    %535 = vmatprep.subr.mxu0 0.0
    %536 = vmatpush1.msra.mxu0 %v367
    %537 = vmatprep.subr.mxu0 0.0
    %538 = vmatpush1.msra.mxu0 %v368
    %539 = vmatprep.subr.mxu0 0.0
    %540 = vmatpush1.msra.mxu0 %v369
    %541 = vmatprep.subr.mxu0 0.0
    %542 = vmatpush1.msra.mxu0 %v370
    %543 = vmatprep.subr.mxu0 0.0
    %544 = vmatpush1.msra.mxu0 %v371
    %545 = vmatprep.subr.mxu0 0.0
    %546 = vmatpush1.msra.mxu0 %v396
    %547 = vmatprep.subr.mxu0 0.0
    %548 = vmatpush1.msra.mxu0 0.0
    %549 = vmatprep.subr.mxu0 0.0
    %550 = vmatpush1.msra.mxu0 0.0
    %551 = vmatprep.subr.mxu0 0.0
    %552 = vmatpush1.msra.mxu0 0.0
    %553 = vmatprep.subr.mxu0 0.0
    %554 = vmatpush1.msra.mxu0 0.0
    %555 = vmatprep.subr.mxu0 0.0
    %556 = vmatpush1.msra.mxu0 0.0
    %557 = vmatprep.subr.mxu0 0.0
    %558 = vmatpush1.msra.mxu0 0.0
    %559 = vmatprep.subr.mxu0 0.0
    %560 = vmatpush1.msra.mxu0 0.0
    %561 = vmatprep.subr.mxu0 0.0
    %562 = vmatpush1.msra.mxu0 0.0
    %563 = vmatprep.subr.mxu0 0.0
    %564 = vmatpush1.msra.mxu0 0.0
    %565 = vmatprep.subr.mxu0 0.0
    %566 = vmatpush1.msra.mxu0 0.0
    %567 = vmatprep.subr.mxu0 0.0
    %568 = vmatpush1.msra.mxu0 0.0
    %569 = vmatprep.mubr.f32.mxu0 %v494
    %570 = vmatmul.mubr.f32.gmra.mrb[0].mxu0 %v485
    %v571 = vpop.f32.mrb[0].mxu0
    %v572 = vadd.f32 0.0, %v571
    %v573 = vpop.f32.mrb[0].mxu0
    %574 = vmatprep.mubr.f32.mxu0 %v497
    %575 = vmatmul.mubr.f32.gmra.mrb[0].mxu0 %v487
    %v576 = vpop.f32.mrb[0].mxu0
    %v577 = vadd.f32 0.0, %v576
    %v578 = vpop.f32.mrb[0].mxu0
    %579 = vmatprep.mubr.f32.mxu0 %v500
    %580 = vmatmul.mubr.f32.gmra.mrb[0].mxu0 %v489
    %v581 = vpop.f32.mrb[0].mxu0
    %v582 = vadd.f32 0.0, %v581
    %v583 = vpop.f32.mrb[0].mxu0
    %584 = vmatprep.mubr.f32.mxu0 %v503
    %585 = vmatmul.mubr.f32.gmra.mrb[0].mxu0 %v491
    %v586 = vpop.f32.mrb[0].mxu0
    %v587 = vadd.f32 0.0, %v586
    %v588 = vpop.f32.mrb[0].mxu0
    %589 = vdwg.mxu0
    %s590 = scalar_lea.vmem %s4, 8
    %v591 = vld [vmem:[%s590] sm:$0xff]
    %vm592 = vcmask 64512
    %v594 = vsel %vm592, %v572, 0
    %v597 = vsel %vm592, %v577, 0
    %v600 = vsel %vm592, %v582, 0
    %v603 = vsel %vm592, %v587, 0
    %605 = vmatprep.subr.mxu0 0.0
    %606 = vmatpush1.msra.mxu0 %v591
    %607 = vmatprep.subr.mxu0 0.0
    %608 = vmatpush1.msra.mxu0 0.0
    %609 = vmatprep.subr.mxu0 0.0
    %610 = vmatpush1.msra.mxu0 0.0
    %611 = vmatprep.subr.mxu0 0.0
    %612 = vmatpush1.msra.mxu0 0.0
    %613 = vmatprep.subr.mxu0 0.0
    %614 = vmatpush1.msra.mxu0 0.0
    %615 = vmatprep.subr.mxu0 0.0
    %616 = vmatpush1.msra.mxu0 0.0
    %617 = vmatprep.subr.mxu0 0.0
    %618 = vmatpush1.msra.mxu0 0.0
    %619 = vmatprep.subr.mxu0 0.0
    %620 = vmatpush1.msra.mxu0 0.0
    %621 = vmatprep.subr.mxu0 0.0
    %622 = vmatpush1.msra.mxu0 0.0
    %623 = vmatprep.subr.mxu0 0.0
    %624 = vmatpush1.msra.mxu0 0.0
    %625 = vmatprep.subr.mxu0 0.0
    %626 = vmatpush1.msra.mxu0 0.0
    %627 = vmatprep.subr.mxu0 0.0
    %628 = vmatpush1.msra.mxu0 0.0
    %629 = vmatprep.subr.mxu0 0.0
    %630 = vmatpush1.msra.mxu0 0.0
    %631 = vmatprep.subr.mxu0 0.0
    %632 = vmatpush1.msra.mxu0 0.0
    %633 = vmatprep.subr.mxu0 0.0
    %634 = vmatpush1.msra.mxu0 0.0
    %635 = vmatprep.subr.mxu0 0.0
    %636 = vmatpush1.msra.mxu0 0.0
    %637 = vmatprep.subr.mxu0 0.0
    %638 = vmatpush1.msra.mxu0 0.0
    %639 = vmatprep.subr.mxu0 0.0
    %640 = vmatpush1.msra.mxu0 0.0
    %641 = vmatprep.subr.mxu0 0.0
    %642 = vmatpush1.msra.mxu0 0.0
    %643 = vmatprep.subr.mxu0 0.0
    %644 = vmatpush1.msra.mxu0 0.0
    %645 = vmatprep.subr.mxu0 0.0
    %646 = vmatpush1.msra.mxu0 0.0
    %647 = vmatprep.subr.mxu0 0.0
    %648 = vmatpush1.msra.mxu0 0.0
    %649 = vmatprep.subr.mxu0 0.0
    %650 = vmatpush1.msra.mxu0 0.0
    %651 = vmatprep.subr.mxu0 0.0
    %652 = vmatpush1.msra.mxu0 0.0
    %653 = vmatprep.subr.mxu0 0.0
    %654 = vmatpush1.msra.mxu0 0.0
    %655 = vmatprep.subr.mxu0 0.0
    %656 = vmatpush1.msra.mxu0 0.0
    %657 = vmatprep.subr.mxu0 0.0
    %658 = vmatpush1.msra.mxu0 0.0
    %659 = vmatprep.subr.mxu0 0.0
    %660 = vmatpush1.msra.mxu0 0.0
    %661 = vmatprep.subr.mxu0 0.0
    %662 = vmatpush1.msra.mxu0 0.0
    %663 = vmatprep.subr.mxu0 0.0
    %664 = vmatpush1.msra.mxu0 0.0
    %665 = vmatprep.subr.mxu0 0.0
    %666 = vmatpush1.msra.mxu0 0.0
    %667 = vmatprep.subr.mxu0 0.0
    %668 = vmatpush1.msra.mxu0 0.0
    %669 = vmatprep.mubr.f32.mxu0 0.0
    %670 = vmatmul.mubr.f32.gmra.mrb[0].mxu0 %v594
    %v671 = vpop.f32.mrb[0].mxu0
    %v672 = vadd.f32 0.0, %v671
    %v673 = vpop.f32.mrb[0].mxu0
    %674 = vmatprep.mubr.f32.mxu0 0.0
    %675 = vmatmul.mubr.f32.gmra.mrb[0].mxu0 %v597
    %v676 = vpop.f32.mrb[0].mxu0
    %v677 = vadd.f32 0.0, %v676
    %v678 = vpop.f32.mrb[0].mxu0
    %679 = vmatprep.mubr.f32.mxu0 0.0
    %680 = vmatmul.mubr.f32.gmra.mrb[0].mxu0 %v600
    %v681 = vpop.f32.mrb[0].mxu0
    %v682 = vadd.f32 0.0, %v681
    %v683 = vpop.f32.mrb[0].mxu0
    %684 = vmatprep.mubr.f32.mxu0 0.0
    %685 = vmatmul.mubr.f32.gmra.mrb[0].mxu0 %v603
    %v686 = vpop.f32.mrb[0].mxu0
    %v687 = vadd.f32 0.0, %v686
    %v688 = vpop.f32.mrb[0].mxu0
    %689 = vdwg.mxu0
    %v691 = vsel %vm592, %v465, 0
    %v694 = vsel %vm592, %v470, 0
    %v697 = vsel %vm592, %v475, 0
    %v700 = vsel %vm592, %v480, 0
    %702 = vmatprep.subr.mxu0 0.0
    %703 = vmatpush1.msra.mxu0 %v483
    %704 = vmatprep.subr.mxu0 0.0
    %705 = vmatpush1.msra.mxu0 0.0
    %706 = vmatprep.subr.mxu0 0.0
    %707 = vmatpush1.msra.mxu0 0.0
    %708 = vmatprep.subr.mxu0 0.0
    %709 = vmatpush1.msra.mxu0 0.0
    %710 = vmatprep.subr.mxu0 0.0
    %711 = vmatpush1.msra.mxu0 0.0
    %712 = vmatprep.subr.mxu0 0.0
    %713 = vmatpush1.msra.mxu0 0.0
    %714 = vmatprep.subr.mxu0 0.0
    %715 = vmatpush1.msra.mxu0 0.0
    %716 = vmatprep.subr.mxu0 0.0
    %717 = vmatpush1.msra.mxu0 0.0
    %718 = vmatprep.subr.mxu0 0.0
    %719 = vmatpush1.msra.mxu0 0.0
    %720 = vmatprep.subr.mxu0 0.0
    %721 = vmatpush1.msra.mxu0 0.0
    %722 = vmatprep.subr.mxu0 0.0
    %723 = vmatpush1.msra.mxu0 0.0
    %724 = vmatprep.subr.mxu0 0.0
    %725 = vmatpush1.msra.mxu0 0.0
    %726 = vmatprep.subr.mxu0 0.0
    %727 = vmatpush1.msra.mxu0 0.0
    %728 = vmatprep.subr.mxu0 0.0
    %729 = vmatpush1.msra.mxu0 0.0
    %730 = vmatprep.subr.mxu0 0.0
    %731 = vmatpush1.msra.mxu0 0.0
    %732 = vmatprep.subr.mxu0 0.0
    %733 = vmatpush1.msra.mxu0 0.0
    %734 = vmatprep.subr.mxu0 0.0
    %735 = vmatpush1.msra.mxu0 0.0
    %736 = vmatprep.subr.mxu0 0.0
    %737 = vmatpush1.msra.mxu0 0.0
    %738 = vmatprep.subr.mxu0 0.0
    %739 = vmatpush1.msra.mxu0 0.0
    %740 = vmatprep.subr.mxu0 0.0
    %741 = vmatpush1.msra.mxu0 0.0
    %742 = vmatprep.subr.mxu0 0.0
    %743 = vmatpush1.msra.mxu0 0.0
    %744 = vmatprep.subr.mxu0 0.0
    %745 = vmatpush1.msra.mxu0 0.0
    %746 = vmatprep.subr.mxu0 0.0
    %747 = vmatpush1.msra.mxu0 0.0
    %748 = vmatprep.subr.mxu0 0.0
    %749 = vmatpush1.msra.mxu0 0.0
    %750 = vmatprep.subr.mxu0 0.0
    %751 = vmatpush1.msra.mxu0 0.0
    %752 = vmatprep.subr.mxu0 0.0
    %753 = vmatpush1.msra.mxu0 0.0
    %754 = vmatprep.subr.mxu0 0.0
    %755 = vmatpush1.msra.mxu0 0.0
    %756 = vmatprep.subr.mxu0 0.0
    %757 = vmatpush1.msra.mxu0 0.0
    %758 = vmatprep.subr.mxu0 0.0
    %759 = vmatpush1.msra.mxu0 0.0
    %760 = vmatprep.subr.mxu0 0.0
    %761 = vmatpush1.msra.mxu0 0.0
    %762 = vmatprep.subr.mxu0 0.0
    %763 = vmatpush1.msra.mxu0 0.0
    %764 = vmatprep.subr.mxu0 0.0
    %765 = vmatpush1.msra.mxu0 0.0
    %766 = vmatprep.mubr.f32.mxu0 0.0
    %767 = vmatmul.mubr.f32.gmra.mrb[0].mxu0 %v691
    %v768 = vpop.f32.mrb[0].mxu0
    %v769 = vadd.f32 %v672, %v768
    %v770 = vpop.f32.mrb[0].mxu0
    %771 = vmatprep.mubr.f32.mxu0 0.0
    %772 = vmatmul.mubr.f32.gmra.mrb[0].mxu0 %v694
    %v773 = vpop.f32.mrb[0].mxu0
    %v774 = vadd.f32 %v677, %v773
    %v775 = vpop.f32.mrb[0].mxu0
    %776 = vmatprep.mubr.f32.mxu0 0.0
    %777 = vmatmul.mubr.f32.gmra.mrb[0].mxu0 %v697
    %v778 = vpop.f32.mrb[0].mxu0
    %v779 = vadd.f32 %v682, %v778
    %v780 = vpop.f32.mrb[0].mxu0
    %781 = vmatprep.mubr.f32.mxu0 0.0
    %782 = vmatmul.mubr.f32.gmra.mrb[0].mxu0 %v700
    %v783 = vpop.f32.mrb[0].mxu0
    %v784 = vadd.f32 %v687, %v783
    %v785 = vpop.f32.mrb[0].mxu0
    %786 = vdwg.mxu0
    %s787 = scalar_lea.vmem %s3, 128
    %v788 = vld [vmem:[%s787] sm:$0xff]
    %v789 = vld [vmem:[%s787 + $0x8] sm:$0xff]
    %v790 = vld [vmem:[%s787 + $0x10] sm:$0xff]
    %v791 = vld [vmem:[%s787 + $0x18] sm:$0xff]
    %v792 = vld [vmem:[%s787 + $0x20] sm:$0xff]
    %v793 = vld [vmem:[%s787 + $0x28] sm:$0xff]
    %v794 = vld [vmem:[%s787 + $0x30] sm:$0xff]
    %v795 = vld [vmem:[%s787 + $0x38] sm:$0xff]
    %v797 = vsel %vm381, %v789, 0
    %v800 = vsel %vm381, %v791, 0
    %v803 = vsel %vm381, %v793, 0
    %v806 = vsel %vm381, %v795, 0
    %808 = vmatprep.subr.mxu0 0.0
    %809 = vmatpush1.msra.mxu0 %v352
    %810 = vmatprep.subr.mxu0 0.0
    %811 = vmatpush1.msra.mxu0 %v353
    %812 = vmatprep.subr.mxu0 0.0
    %813 = vmatpush1.msra.mxu0 %v354
    %814 = vmatprep.subr.mxu0 0.0
    %815 = vmatpush1.msra.mxu0 %v355
    %816 = vmatprep.subr.mxu0 0.0
    %817 = vmatpush1.msra.mxu0 %v356
    %818 = vmatprep.subr.mxu0 0.0
    %819 = vmatpush1.msra.mxu0 %v357
    %820 = vmatprep.subr.mxu0 0.0
    %821 = vmatpush1.msra.mxu0 %v358
    %822 = vmatprep.subr.mxu0 0.0
    %823 = vmatpush1.msra.mxu0 %v359
    %824 = vmatprep.subr.mxu0 0.0
    %825 = vmatpush1.msra.mxu0 %v360
    %826 = vmatprep.subr.mxu0 0.0
    %827 = vmatpush1.msra.mxu0 %v361
    %828 = vmatprep.subr.mxu0 0.0
    %829 = vmatpush1.msra.mxu0 %v362
    %830 = vmatprep.subr.mxu0 0.0
    %831 = vmatpush1.msra.mxu0 %v363
    %832 = vmatprep.subr.mxu0 0.0
    %833 = vmatpush1.msra.mxu0 %v364
    %834 = vmatprep.subr.mxu0 0.0
    %835 = vmatpush1.msra.mxu0 %v365
    %836 = vmatprep.subr.mxu0 0.0
    %837 = vmatpush1.msra.mxu0 %v366
    %838 = vmatprep.subr.mxu0 0.0
    %839 = vmatpush1.msra.mxu0 %v367
    %840 = vmatprep.subr.mxu0 0.0
    %841 = vmatpush1.msra.mxu0 %v368
    %842 = vmatprep.subr.mxu0 0.0
    %843 = vmatpush1.msra.mxu0 %v369
    %844 = vmatprep.subr.mxu0 0.0
    %845 = vmatpush1.msra.mxu0 %v370
    %846 = vmatprep.subr.mxu0 0.0
    %847 = vmatpush1.msra.mxu0 %v371
    %848 = vmatprep.subr.mxu0 0.0
    %849 = vmatpush1.msra.mxu0 %v396
    %850 = vmatprep.subr.mxu0 0.0
    %851 = vmatpush1.msra.mxu0 0.0
    %852 = vmatprep.subr.mxu0 0.0
    %853 = vmatpush1.msra.mxu0 0.0
    %854 = vmatprep.subr.mxu0 0.0
    %855 = vmatpush1.msra.mxu0 0.0
    %856 = vmatprep.subr.mxu0 0.0
    %857 = vmatpush1.msra.mxu0 0.0
    %858 = vmatprep.subr.mxu0 0.0
    %859 = vmatpush1.msra.mxu0 0.0
    %860 = vmatprep.subr.mxu0 0.0
    %861 = vmatpush1.msra.mxu0 0.0
    %862 = vmatprep.subr.mxu0 0.0
    %863 = vmatpush1.msra.mxu0 0.0
    %864 = vmatprep.subr.mxu0 0.0
    %865 = vmatpush1.msra.mxu0 0.0
    %866 = vmatprep.subr.mxu0 0.0
    %867 = vmatpush1.msra.mxu0 0.0
    %868 = vmatprep.subr.mxu0 0.0
    %869 = vmatpush1.msra.mxu0 0.0
    %870 = vmatprep.subr.mxu0 0.0
    %871 = vmatpush1.msra.mxu0 0.0
    %872 = vmatprep.mubr.f32.mxu0 %v797
    %873 = vmatmul.mubr.f32.gmra.mrb[0].mxu0 %v788
    %v874 = vpop.f32.mrb[0].mxu0
    %v875 = vadd.f32 0.0, %v874
    %v876 = vpop.f32.mrb[0].mxu0
    %877 = vmatprep.mubr.f32.mxu0 %v800
    %878 = vmatmul.mubr.f32.gmra.mrb[0].mxu0 %v790
    %v879 = vpop.f32.mrb[0].mxu0
    %v880 = vadd.f32 0.0, %v879
    %v881 = vpop.f32.mrb[0].mxu0
    %882 = vmatprep.mubr.f32.mxu0 %v803
    %883 = vmatmul.mubr.f32.gmra.mrb[0].mxu0 %v792
    %v884 = vpop.f32.mrb[0].mxu0
    %v885 = vadd.f32 0.0, %v884
    %v886 = vpop.f32.mrb[0].mxu0
    %887 = vmatprep.mubr.f32.mxu0 %v806
    %888 = vmatmul.mubr.f32.gmra.mrb[0].mxu0 %v794
    %v889 = vpop.f32.mrb[0].mxu0
    %v890 = vadd.f32 0.0, %v889
    %v891 = vpop.f32.mrb[0].mxu0
    %892 = vdwg.mxu0
    %s893 = scalar_lea.vmem %s4, 16
    %v894 = vld [vmem:[%s893] sm:$0xff]
    %v896 = vsel %vm592, %v875, 0
    %v899 = vsel %vm592, %v880, 0
    %v902 = vsel %vm592, %v885, 0
    %v905 = vsel %vm592, %v890, 0
    %907 = vmatprep.subr.mxu0 0.0
    %908 = vmatpush1.msra.mxu0 %v894
    %909 = vmatprep.subr.mxu0 0.0
    %910 = vmatpush1.msra.mxu0 0.0
    %911 = vmatprep.subr.mxu0 0.0
    %912 = vmatpush1.msra.mxu0 0.0
    %913 = vmatprep.subr.mxu0 0.0
    %914 = vmatpush1.msra.mxu0 0.0
    %915 = vmatprep.subr.mxu0 0.0
    %916 = vmatpush1.msra.mxu0 0.0
    %917 = vmatprep.subr.mxu0 0.0
    %918 = vmatpush1.msra.mxu0 0.0
    %919 = vmatprep.subr.mxu0 0.0
    %920 = vmatpush1.msra.mxu0 0.0
    %921 = vmatprep.subr.mxu0 0.0
    %922 = vmatpush1.msra.mxu0 0.0
    %923 = vmatprep.subr.mxu0 0.0
    %924 = vmatpush1.msra.mxu0 0.0
    %925 = vmatprep.subr.mxu0 0.0
    %926 = vmatpush1.msra.mxu0 0.0
    %927 = vmatprep.subr.mxu0 0.0
    %928 = vmatpush1.msra.mxu0 0.0
    %929 = vmatprep.subr.mxu0 0.0
    %930 = vmatpush1.msra.mxu0 0.0
    %931 = vmatprep.subr.mxu0 0.0
    %932 = vmatpush1.msra.mxu0 0.0
    %933 = vmatprep.subr.mxu0 0.0
    %934 = vmatpush1.msra.mxu0 0.0
    %935 = vmatprep.subr.mxu0 0.0
    %936 = vmatpush1.msra.mxu0 0.0
    %937 = vmatprep.subr.mxu0 0.0
    %938 = vmatpush1.msra.mxu0 0.0
    %939 = vmatprep.subr.mxu0 0.0
    %940 = vmatpush1.msra.mxu0 0.0
    %941 = vmatprep.subr.mxu0 0.0
    %942 = vmatpush1.msra.mxu0 0.0
    %943 = vmatprep.subr.mxu0 0.0
    %944 = vmatpush1.msra.mxu0 0.0
    %945 = vmatprep.subr.mxu0 0.0
    %946 = vmatpush1.msra.mxu0 0.0
    %947 = vmatprep.subr.mxu0 0.0
    %948 = vmatpush1.msra.mxu0 0.0
    %949 = vmatprep.subr.mxu0 0.0
    %950 = vmatpush1.msra.mxu0 0.0
    %951 = vmatprep.subr.mxu0 0.0
    %952 = vmatpush1.msra.mxu0 0.0
    %953 = vmatprep.subr.mxu0 0.0
    %954 = vmatpush1.msra.mxu0 0.0
    %955 = vmatprep.subr.mxu0 0.0
    %956 = vmatpush1.msra.mxu0 0.0
    %957 = vmatprep.subr.mxu0 0.0
    %958 = vmatpush1.msra.mxu0 0.0
    %959 = vmatprep.subr.mxu0 0.0
    %960 = vmatpush1.msra.mxu0 0.0
    %961 = vmatprep.subr.mxu0 0.0
    %962 = vmatpush1.msra.mxu0 0.0
    %963 = vmatprep.subr.mxu0 0.0
    %964 = vmatpush1.msra.mxu0 0.0
    %965 = vmatprep.subr.mxu0 0.0
    %966 = vmatpush1.msra.mxu0 0.0
    %967 = vmatprep.subr.mxu0 0.0
    %968 = vmatpush1.msra.mxu0 0.0
    %969 = vmatprep.subr.mxu0 0.0
    %970 = vmatpush1.msra.mxu0 0.0
    %971 = vmatprep.mubr.f32.mxu0 0.0
    %972 = vmatmul.mubr.f32.gmra.mrb[0].mxu0 %v896
    %v973 = vpop.f32.mrb[0].mxu0
    %v974 = vadd.f32 0.0, %v973
    %v975 = vpop.f32.mrb[0].mxu0
    %976 = vmatprep.mubr.f32.mxu0 0.0
    %977 = vmatmul.mubr.f32.gmra.mrb[0].mxu0 %v899
    %v978 = vpop.f32.mrb[0].mxu0
    %v979 = vadd.f32 0.0, %v978
    %v980 = vpop.f32.mrb[0].mxu0
    %981 = vmatprep.mubr.f32.mxu0 0.0
    %982 = vmatmul.mubr.f32.gmra.mrb[0].mxu0 %v902
    %v983 = vpop.f32.mrb[0].mxu0
    %v984 = vadd.f32 0.0, %v983
    %v985 = vpop.f32.mrb[0].mxu0
    %986 = vmatprep.mubr.f32.mxu0 0.0
    %987 = vmatmul.mubr.f32.gmra.mrb[0].mxu0 %v905
    %v988 = vpop.f32.mrb[0].mxu0
    %v989 = vadd.f32 0.0, %v988
    %v990 = vpop.f32.mrb[0].mxu0
    %991 = vdwg.mxu0
    %v992 = vadd.f32 %v769, %v974
    %v993 = vadd.f32 %v774, %v979
    %v994 = vadd.f32 %v779, %v984
    %v995 = vadd.f32 %v784, %v989
    %s996 = scalar_lea.vmem %s3, 192
    %v997 = vld [vmem:[%s996] sm:$0xff]
    %v998 = vld [vmem:[%s996 + $0x8] sm:$0xff]
    %v999 = vld [vmem:[%s996 + $0x10] sm:$0xff]
    %v1000 = vld [vmem:[%s996 + $0x18] sm:$0xff]
    %v1001 = vld [vmem:[%s996 + $0x20] sm:$0xff]
    %v1002 = vld [vmem:[%s996 + $0x28] sm:$0xff]
    %v1003 = vld [vmem:[%s996 + $0x30] sm:$0xff]
    %v1004 = vld [vmem:[%s996 + $0x38] sm:$0xff]
    %v1006 = vsel %vm381, %v998, 0
    %v1009 = vsel %vm381, %v1000, 0
    %v1012 = vsel %vm381, %v1002, 0
    %v1015 = vsel %vm381, %v1004, 0
    %1017 = vmatprep.subr.mxu0 0.0
    %1018 = vmatpush1.msra.mxu0 %v352
    %1019 = vmatprep.subr.mxu0 0.0
    %1020 = vmatpush1.msra.mxu0 %v353
    %1021 = vmatprep.subr.mxu0 0.0
    %1022 = vmatpush1.msra.mxu0 %v354
    %1023 = vmatprep.subr.mxu0 0.0
    %1024 = vmatpush1.msra.mxu0 %v355
    %1025 = vmatprep.subr.mxu0 0.0
    %1026 = vmatpush1.msra.mxu0 %v356
    %1027 = vmatprep.subr.mxu0 0.0
    %1028 = vmatpush1.msra.mxu0 %v357
    %1029 = vmatprep.subr.mxu0 0.0
    %1030 = vmatpush1.msra.mxu0 %v358
    %1031 = vmatprep.subr.mxu0 0.0
    %1032 = vmatpush1.msra.mxu0 %v359
    %1033 = vmatprep.subr.mxu0 0.0
    %1034 = vmatpush1.msra.mxu0 %v360
    %1035 = vmatprep.subr.mxu0 0.0
    %1036 = vmatpush1.msra.mxu0 %v361
    %1037 = vmatprep.subr.mxu0 0.0
    %1038 = vmatpush1.msra.mxu0 %v362
    %1039 = vmatprep.subr.mxu0 0.0
    %1040 = vmatpush1.msra.mxu0 %v363
    %1041 = vmatprep.subr.mxu0 0.0
    %1042 = vmatpush1.msra.mxu0 %v364
    %1043 = vmatprep.subr.mxu0 0.0
    %1044 = vmatpush1.msra.mxu0 %v365
    %1045 = vmatprep.subr.mxu0 0.0
    %1046 = vmatpush1.msra.mxu0 %v366
    %1047 = vmatprep.subr.mxu0 0.0
    %1048 = vmatpush1.msra.mxu0 %v367
    %1049 = vmatprep.subr.mxu0 0.0
    %1050 = vmatpush1.msra.mxu0 %v368
    %1051 = vmatprep.subr.mxu0 0.0
    %1052 = vmatpush1.msra.mxu0 %v369
    %1053 = vmatprep.subr.mxu0 0.0
    %1054 = vmatpush1.msra.mxu0 %v370
    %1055 = vmatprep.subr.mxu0 0.0
    %1056 = vmatpush1.msra.mxu0 %v371
    %1057 = vmatprep.subr.mxu0 0.0
    %1058 = vmatpush1.msra.mxu0 %v396
    %1059 = vmatprep.subr.mxu0 0.0
    %1060 = vmatpush1.msra.mxu0 0.0
    %1061 = vmatprep.subr.mxu0 0.0
    %1062 = vmatpush1.msra.mxu0 0.0
    %1063 = vmatprep.subr.mxu0 0.0
    %1064 = vmatpush1.msra.mxu0 0.0
    %1065 = vmatprep.subr.mxu0 0.0
    %1066 = vmatpush1.msra.mxu0 0.0
    %1067 = vmatprep.subr.mxu0 0.0
    %1068 = vmatpush1.msra.mxu0 0.0
    %1069 = vmatprep.subr.mxu0 0.0
    %1070 = vmatpush1.msra.mxu0 0.0
    %1071 = vmatprep.subr.mxu0 0.0
    %1072 = vmatpush1.msra.mxu0 0.0
    %1073 = vmatprep.subr.mxu0 0.0
    %1074 = vmatpush1.msra.mxu0 0.0
    %1075 = vmatprep.subr.mxu0 0.0
    %1076 = vmatpush1.msra.mxu0 0.0
    %1077 = vmatprep.subr.mxu0 0.0
    %1078 = vmatpush1.msra.mxu0 0.0
    %1079 = vmatprep.subr.mxu0 0.0
    %1080 = vmatpush1.msra.mxu0 0.0
    %1081 = vmatprep.mubr.f32.mxu0 %v1006
    %1082 = vmatmul.mubr.f32.gmra.mrb[0].mxu0 %v997
    %v1083 = vpop.f32.mrb[0].mxu0
    %v1084 = vadd.f32 0.0, %v1083
    %v1085 = vpop.f32.mrb[0].mxu0
    %1086 = vmatprep.mubr.f32.mxu0 %v1009
    %1087 = vmatmul.mubr.f32.gmra.mrb[0].mxu0 %v999
    %v1088 = vpop.f32.mrb[0].mxu0
    %v1089 = vadd.f32 0.0, %v1088
    %v1090 = vpop.f32.mrb[0].mxu0
    %1091 = vmatprep.mubr.f32.mxu0 %v1012
    %1092 = vmatmul.mubr.f32.gmra.mrb[0].mxu0 %v1001
    %v1093 = vpop.f32.mrb[0].mxu0
    %v1094 = vadd.f32 0.0, %v1093
    %v1095 = vpop.f32.mrb[0].mxu0
    %1096 = vmatprep.mubr.f32.mxu0 %v1015
    %1097 = vmatmul.mubr.f32.gmra.mrb[0].mxu0 %v1003
    %v1098 = vpop.f32.mrb[0].mxu0
    %v1099 = vadd.f32 0.0, %v1098
    %v1100 = vpop.f32.mrb[0].mxu0
    %1101 = vdwg.mxu0
    %s1102 = scalar_lea.vmem %s4, 24
    %v1103 = vld [vmem:[%s1102] sm:$0xff]
    %v1105 = vsel %vm592, %v1084, 0
    %v1108 = vsel %vm592, %v1089, 0
    %v1111 = vsel %vm592, %v1094, 0
    %v1114 = vsel %vm592, %v1099, 0
    %1116 = vmatprep.subr.mxu0 0.0
    %1117 = vmatpush1.msra.mxu0 %v1103
    %1118 = vmatprep.subr.mxu0 0.0
    %1119 = vmatpush1.msra.mxu0 0.0
    %1120 = vmatprep.subr.mxu0 0.0
    %1121 = vmatpush1.msra.mxu0 0.0
    %1122 = vmatprep.subr.mxu0 0.0
    %1123 = vmatpush1.msra.mxu0 0.0
    %1124 = vmatprep.subr.mxu0 0.0
    %1125 = vmatpush1.msra.mxu0 0.0
    %1126 = vmatprep.subr.mxu0 0.0
    %1127 = vmatpush1.msra.mxu0 0.0
    %1128 = vmatprep.subr.mxu0 0.0
    %1129 = vmatpush1.msra.mxu0 0.0
    %1130 = vmatprep.subr.mxu0 0.0
    %1131 = vmatpush1.msra.mxu0 0.0
    %1132 = vmatprep.subr.mxu0 0.0
    %1133 = vmatpush1.msra.mxu0 0.0
    %1134 = vmatprep.subr.mxu0 0.0
    %1135 = vmatpush1.msra.mxu0 0.0
    %1136 = vmatprep.subr.mxu0 0.0
    %1137 = vmatpush1.msra.mxu0 0.0
    %1138 = vmatprep.subr.mxu0 0.0
    %1139 = vmatpush1.msra.mxu0 0.0
    %1140 = vmatprep.subr.mxu0 0.0
    %1141 = vmatpush1.msra.mxu0 0.0
    %1142 = vmatprep.subr.mxu0 0.0
    %1143 = vmatpush1.msra.mxu0 0.0
    %1144 = vmatprep.subr.mxu0 0.0
    %1145 = vmatpush1.msra.mxu0 0.0
    %1146 = vmatprep.subr.mxu0 0.0
    %1147 = vmatpush1.msra.mxu0 0.0
    %1148 = vmatprep.subr.mxu0 0.0
    %1149 = vmatpush1.msra.mxu0 0.0
    %1150 = vmatprep.subr.mxu0 0.0
    %1151 = vmatpush1.msra.mxu0 0.0
    %1152 = vmatprep.subr.mxu0 0.0
    %1153 = vmatpush1.msra.mxu0 0.0
    %1154 = vmatprep.subr.mxu0 0.0
    %1155 = vmatpush1.msra.mxu0 0.0
    %1156 = vmatprep.subr.mxu0 0.0
    %1157 = vmatpush1.msra.mxu0 0.0
    %1158 = vmatprep.subr.mxu0 0.0
    %1159 = vmatpush1.msra.mxu0 0.0
    %1160 = vmatprep.subr.mxu0 0.0
    %1161 = vmatpush1.msra.mxu0 0.0
    %1162 = vmatprep.subr.mxu0 0.0
    %1163 = vmatpush1.msra.mxu0 0.0
    %1164 = vmatprep.subr.mxu0 0.0
    %1165 = vmatpush1.msra.mxu0 0.0
    %1166 = vmatprep.subr.mxu0 0.0
    %1167 = vmatpush1.msra.mxu0 0.0
    %1168 = vmatprep.subr.mxu0 0.0
    %1169 = vmatpush1.msra.mxu0 0.0
    %1170 = vmatprep.subr.mxu0 0.0
    %1171 = vmatpush1.msra.mxu0 0.0
    %1172 = vmatprep.subr.mxu0 0.0
    %1173 = vmatpush1.msra.mxu0 0.0
    %1174 = vmatprep.subr.mxu0 0.0
    %1175 = vmatpush1.msra.mxu0 0.0
    %1176 = vmatprep.subr.mxu0 0.0
    %1177 = vmatpush1.msra.mxu0 0.0
    %1178 = vmatprep.subr.mxu0 0.0
    %1179 = vmatpush1.msra.mxu0 0.0
    %1180 = vmatprep.mubr.f32.mxu0 0.0
    %1181 = vmatmul.mubr.f32.gmra.mrb[0].mxu0 %v1105
    %v1182 = vpop.f32.mrb[0].mxu0
    %v1183 = vadd.f32 0.0, %v1182
    %v1184 = vpop.f32.mrb[0].mxu0
    %1185 = vmatprep.mubr.f32.mxu0 0.0
    %1186 = vmatmul.mubr.f32.gmra.mrb[0].mxu0 %v1108
    %v1187 = vpop.f32.mrb[0].mxu0
    %v1188 = vadd.f32 0.0, %v1187
    %v1189 = vpop.f32.mrb[0].mxu0
    %1190 = vmatprep.mubr.f32.mxu0 0.0
    %1191 = vmatmul.mubr.f32.gmra.mrb[0].mxu0 %v1111
    %v1192 = vpop.f32.mrb[0].mxu0
    %v1193 = vadd.f32 0.0, %v1192
    %v1194 = vpop.f32.mrb[0].mxu0
    %1195 = vmatprep.mubr.f32.mxu0 0.0
    %1196 = vmatmul.mubr.f32.gmra.mrb[0].mxu0 %v1114
    %v1197 = vpop.f32.mrb[0].mxu0
    %v1198 = vadd.f32 0.0, %v1197
    %v1199 = vpop.f32.mrb[0].mxu0
    %1200 = vdwg.mxu0
    %v1201 = vadd.f32 %v992, %v1183
    %v1202 = vadd.f32 %v993, %v1188
    %v1203 = vadd.f32 %v994, %v1193
    %v1204 = vadd.f32 %v995, %v1198
    %s1205 = scalar_lea.vmem %s3, 256
    %v1206 = vld [vmem:[%s1205] sm:$0xff]
    %v1207 = vld [vmem:[%s1205 + $0x8] sm:$0xff]
    %v1208 = vld [vmem:[%s1205 + $0x10] sm:$0xff]
    %v1209 = vld [vmem:[%s1205 + $0x18] sm:$0xff]
    %v1210 = vld [vmem:[%s1205 + $0x20] sm:$0xff]
    %v1211 = vld [vmem:[%s1205 + $0x28] sm:$0xff]
    %v1212 = vld [vmem:[%s1205 + $0x30] sm:$0xff]
    %v1213 = vld [vmem:[%s1205 + $0x38] sm:$0xff]
    %v1215 = vsel %vm381, %v1207, 0
    %v1218 = vsel %vm381, %v1209, 0
    %v1221 = vsel %vm381, %v1211, 0
    %v1224 = vsel %vm381, %v1213, 0
    %1226 = vmatprep.subr.mxu0 0.0
    %1227 = vmatpush1.msra.mxu0 %v352
    %1228 = vmatprep.subr.mxu0 0.0
    %1229 = vmatpush1.msra.mxu0 %v353
    %1230 = vmatprep.subr.mxu0 0.0
    %1231 = vmatpush1.msra.mxu0 %v354
    %1232 = vmatprep.subr.mxu0 0.0
    %1233 = vmatpush1.msra.mxu0 %v355
    %1234 = vmatprep.subr.mxu0 0.0
    %1235 = vmatpush1.msra.mxu0 %v356
    %1236 = vmatprep.subr.mxu0 0.0
    %1237 = vmatpush1.msra.mxu0 %v357
    %1238 = vmatprep.subr.mxu0 0.0
    %1239 = vmatpush1.msra.mxu0 %v358
    %1240 = vmatprep.subr.mxu0 0.0
    %1241 = vmatpush1.msra.mxu0 %v359
    %1242 = vmatprep.subr.mxu0 0.0
    %1243 = vmatpush1.msra.mxu0 %v360
    %1244 = vmatprep.subr.mxu0 0.0
    %1245 = vmatpush1.msra.mxu0 %v361
    %1246 = vmatprep.subr.mxu0 0.0
    %1247 = vmatpush1.msra.mxu0 %v362
    %1248 = vmatprep.subr.mxu0 0.0
    %1249 = vmatpush1.msra.mxu0 %v363
    %1250 = vmatprep.subr.mxu0 0.0
    %1251 = vmatpush1.msra.mxu0 %v364
    %1252 = vmatprep.subr.mxu0 0.0
    %1253 = vmatpush1.msra.mxu0 %v365
    %1254 = vmatprep.subr.mxu0 0.0
    %1255 = vmatpush1.msra.mxu0 %v366
    %1256 = vmatprep.subr.mxu0 0.0
    %1257 = vmatpush1.msra.mxu0 %v367
    %1258 = vmatprep.subr.mxu0 0.0
    %1259 = vmatpush1.msra.mxu0 %v368
    %1260 = vmatprep.subr.mxu0 0.0
    %1261 = vmatpush1.msra.mxu0 %v369
    %1262 = vmatprep.subr.mxu0 0.0
    %1263 = vmatpush1.msra.mxu0 %v370
    %1264 = vmatprep.subr.mxu0 0.0
    %1265 = vmatpush1.msra.mxu0 %v371
    %1266 = vmatprep.subr.mxu0 0.0
    %1267 = vmatpush1.msra.mxu0 %v396
    %1268 = vmatprep.subr.mxu0 0.0
    %1269 = vmatpush1.msra.mxu0 0.0
    %1270 = vmatprep.subr.mxu0 0.0
    %1271 = vmatpush1.msra.mxu0 0.0
    %1272 = vmatprep.subr.mxu0 0.0
    %1273 = vmatpush1.msra.mxu0 0.0
    %1274 = vmatprep.subr.mxu0 0.0
    %1275 = vmatpush1.msra.mxu0 0.0
    %1276 = vmatprep.subr.mxu0 0.0
    %1277 = vmatpush1.msra.mxu0 0.0
    %1278 = vmatprep.subr.mxu0 0.0
    %1279 = vmatpush1.msra.mxu0 0.0
    %1280 = vmatprep.subr.mxu0 0.0
    %1281 = vmatpush1.msra.mxu0 0.0
    %1282 = vmatprep.subr.mxu0 0.0
    %1283 = vmatpush1.msra.mxu0 0.0
    %1284 = vmatprep.subr.mxu0 0.0
    %1285 = vmatpush1.msra.mxu0 0.0
    %1286 = vmatprep.subr.mxu0 0.0
    %1287 = vmatpush1.msra.mxu0 0.0
    %1288 = vmatprep.subr.mxu0 0.0
    %1289 = vmatpush1.msra.mxu0 0.0
    %1290 = vmatprep.mubr.f32.mxu0 %v1215
    %1291 = vmatmul.mubr.f32.gmra.mrb[0].mxu0 %v1206
    %v1292 = vpop.f32.mrb[0].mxu0
    %v1293 = vadd.f32 0.0, %v1292
    %v1294 = vpop.f32.mrb[0].mxu0
    %1295 = vmatprep.mubr.f32.mxu0 %v1218
    %1296 = vmatmul.mubr.f32.gmra.mrb[0].mxu0 %v1208
    %v1297 = vpop.f32.mrb[0].mxu0
    %v1298 = vadd.f32 0.0, %v1297
    %v1299 = vpop.f32.mrb[0].mxu0
    %1300 = vmatprep.mubr.f32.mxu0 %v1221
    %1301 = vmatmul.mubr.f32.gmra.mrb[0].mxu0 %v1210
    %v1302 = vpop.f32.mrb[0].mxu0
    %v1303 = vadd.f32 0.0, %v1302
    %v1304 = vpop.f32.mrb[0].mxu0
    %1305 = vmatprep.mubr.f32.mxu0 %v1224
    %1306 = vmatmul.mubr.f32.gmra.mrb[0].mxu0 %v1212
    %v1307 = vpop.f32.mrb[0].mxu0
    %v1308 = vadd.f32 0.0, %v1307
    %v1309 = vpop.f32.mrb[0].mxu0
    %1310 = vdwg.mxu0
    %s1311 = scalar_lea.vmem %s4, 32
    %v1312 = vld [vmem:[%s1311] sm:$0xff]
    %v1314 = vsel %vm592, %v1293, 0
    %v1317 = vsel %vm592, %v1298, 0
    %v1320 = vsel %vm592, %v1303, 0
    %v1323 = vsel %vm592, %v1308, 0
    %1325 = vmatprep.subr.mxu0 0.0
    %1326 = vmatpush1.msra.mxu0 %v1312
    %1327 = vmatprep.subr.mxu0 0.0
    %1328 = vmatpush1.msra.mxu0 0.0
    %1329 = vmatprep.subr.mxu0 0.0
    %1330 = vmatpush1.msra.mxu0 0.0
    %1331 = vmatprep.subr.mxu0 0.0
    %1332 = vmatpush1.msra.mxu0 0.0
    %1333 = vmatprep.subr.mxu0 0.0
    %1334 = vmatpush1.msra.mxu0 0.0
    %1335 = vmatprep.subr.mxu0 0.0
    %1336 = vmatpush1.msra.mxu0 0.0
    %1337 = vmatprep.subr.mxu0 0.0
    %1338 = vmatpush1.msra.mxu0 0.0
    %1339 = vmatprep.subr.mxu0 0.0
    %1340 = vmatpush1.msra.mxu0 0.0
    %1341 = vmatprep.subr.mxu0 0.0
    %1342 = vmatpush1.msra.mxu0 0.0
    %1343 = vmatprep.subr.mxu0 0.0
    %1344 = vmatpush1.msra.mxu0 0.0
    %1345 = vmatprep.subr.mxu0 0.0
    %1346 = vmatpush1.msra.mxu0 0.0
    %1347 = vmatprep.subr.mxu0 0.0
    %1348 = vmatpush1.msra.mxu0 0.0
    %1349 = vmatprep.subr.mxu0 0.0
    %1350 = vmatpush1.msra.mxu0 0.0
    %1351 = vmatprep.subr.mxu0 0.0
    %1352 = vmatpush1.msra.mxu0 0.0
    %1353 = vmatprep.subr.mxu0 0.0
    %1354 = vmatpush1.msra.mxu0 0.0
    %1355 = vmatprep.subr.mxu0 0.0
    %1356 = vmatpush1.msra.mxu0 0.0
    %1357 = vmatprep.subr.mxu0 0.0
    %1358 = vmatpush1.msra.mxu0 0.0
    %1359 = vmatprep.subr.mxu0 0.0
    %1360 = vmatpush1.msra.mxu0 0.0
    %1361 = vmatprep.subr.mxu0 0.0
    %1362 = vmatpush1.msra.mxu0 0.0
    %1363 = vmatprep.subr.mxu0 0.0
    %1364 = vmatpush1.msra.mxu0 0.0
    %1365 = vmatprep.subr.mxu0 0.0
    %1366 = vmatpush1.msra.mxu0 0.0
    %1367 = vmatprep.subr.mxu0 0.0
    %1368 = vmatpush1.msra.mxu0 0.0
    %1369 = vmatprep.subr.mxu0 0.0
    %1370 = vmatpush1.msra.mxu0 0.0
    %1371 = vmatprep.subr.mxu0 0.0
    %1372 = vmatpush1.msra.mxu0 0.0
    %1373 = vmatprep.subr.mxu0 0.0
    %1374 = vmatpush1.msra.mxu0 0.0
    %1375 = vmatprep.subr.mxu0 0.0
    %1376 = vmatpush1.msra.mxu0 0.0
    %1377 = vmatprep.subr.mxu0 0.0
    %1378 = vmatpush1.msra.mxu0 0.0
    %1379 = vmatprep.subr.mxu0 0.0
    %1380 = vmatpush1.msra.mxu0 0.0
    %1381 = vmatprep.subr.mxu0 0.0
    %1382 = vmatpush1.msra.mxu0 0.0
    %1383 = vmatprep.subr.mxu0 0.0
    %1384 = vmatpush1.msra.mxu0 0.0
    %1385 = vmatprep.subr.mxu0 0.0
    %1386 = vmatpush1.msra.mxu0 0.0
    %1387 = vmatprep.subr.mxu0 0.0
    %1388 = vmatpush1.msra.mxu0 0.0
    %1389 = vmatprep.mubr.f32.mxu0 0.0
    %1390 = vmatmul.mubr.f32.gmra.mrb[0].mxu0 %v1314
    %v1391 = vpop.f32.mrb[0].mxu0
    %v1392 = vadd.f32 0.0, %v1391
    %v1393 = vpop.f32.mrb[0].mxu0
    %1394 = vmatprep.mubr.f32.mxu0 0.0
    %1395 = vmatmul.mubr.f32.gmra.mrb[0].mxu0 %v1317
    %v1396 = vpop.f32.mrb[0].mxu0
    %v1397 = vadd.f32 0.0, %v1396
    %v1398 = vpop.f32.mrb[0].mxu0
    %1399 = vmatprep.mubr.f32.mxu0 0.0
    %1400 = vmatmul.mubr.f32.gmra.mrb[0].mxu0 %v1320
    %v1401 = vpop.f32.mrb[0].mxu0
    %v1402 = vadd.f32 0.0, %v1401
    %v1403 = vpop.f32.mrb[0].mxu0
    %1404 = vmatprep.mubr.f32.mxu0 0.0
    %1405 = vmatmul.mubr.f32.gmra.mrb[0].mxu0 %v1323
    %v1406 = vpop.f32.mrb[0].mxu0
    %v1407 = vadd.f32 0.0, %v1406
    %v1408 = vpop.f32.mrb[0].mxu0
    %1409 = vdwg.mxu0
    %v1410 = vadd.f32 %v1201, %v1392
    %v1411 = vadd.f32 %v1202, %v1397
    %v1412 = vadd.f32 %v1203, %v1402
    %v1413 = vadd.f32 %v1204, %v1407
    %s1414 = scalar_lea.vmem %s3, 320
    %v1415 = vld [vmem:[%s1414] sm:$0xff]
    %v1416 = vld [vmem:[%s1414 + $0x8] sm:$0xff]
    %v1417 = vld [vmem:[%s1414 + $0x10] sm:$0xff]
    %v1418 = vld [vmem:[%s1414 + $0x18] sm:$0xff]
    %v1419 = vld [vmem:[%s1414 + $0x20] sm:$0xff]
    %v1420 = vld [vmem:[%s1414 + $0x28] sm:$0xff]
    %v1421 = vld [vmem:[%s1414 + $0x30] sm:$0xff]
    %v1422 = vld [vmem:[%s1414 + $0x38] sm:$0xff]
    %v1424 = vsel %vm381, %v1416, 0
    %v1427 = vsel %vm381, %v1418, 0
    %v1430 = vsel %vm381, %v1420, 0
    %v1433 = vsel %vm381, %v1422, 0
    %1435 = vmatprep.subr.mxu0 0.0
    %1436 = vmatpush1.msra.mxu0 %v352
    %1437 = vmatprep.subr.mxu0 0.0
    %1438 = vmatpush1.msra.mxu0 %v353
    %1439 = vmatprep.subr.mxu0 0.0
    %1440 = vmatpush1.msra.mxu0 %v354
    %1441 = vmatprep.subr.mxu0 0.0
    %1442 = vmatpush1.msra.mxu0 %v355
    %1443 = vmatprep.subr.mxu0 0.0
    %1444 = vmatpush1.msra.mxu0 %v356
    %1445 = vmatprep.subr.mxu0 0.0
    %1446 = vmatpush1.msra.mxu0 %v357
    %1447 = vmatprep.subr.mxu0 0.0
    %1448 = vmatpush1.msra.mxu0 %v358
    %1449 = vmatprep.subr.mxu0 0.0
    %1450 = vmatpush1.msra.mxu0 %v359
    %1451 = vmatprep.subr.mxu0 0.0
    %1452 = vmatpush1.msra.mxu0 %v360
    %1453 = vmatprep.subr.mxu0 0.0
    %1454 = vmatpush1.msra.mxu0 %v361
    %1455 = vmatprep.subr.mxu0 0.0
    %1456 = vmatpush1.msra.mxu0 %v362
    %1457 = vmatprep.subr.mxu0 0.0
    %1458 = vmatpush1.msra.mxu0 %v363
    %1459 = vmatprep.subr.mxu0 0.0
    %1460 = vmatpush1.msra.mxu0 %v364
    %1461 = vmatprep.subr.mxu0 0.0
    %1462 = vmatpush1.msra.mxu0 %v365
    %1463 = vmatprep.subr.mxu0 0.0
    %1464 = vmatpush1.msra.mxu0 %v366
    %1465 = vmatprep.subr.mxu0 0.0
    %1466 = vmatpush1.msra.mxu0 %v367
    %1467 = vmatprep.subr.mxu0 0.0
    %1468 = vmatpush1.msra.mxu0 %v368
    %1469 = vmatprep.subr.mxu0 0.0
    %1470 = vmatpush1.msra.mxu0 %v369
    %1471 = vmatprep.subr.mxu0 0.0
    %1472 = vmatpush1.msra.mxu0 %v370
    %1473 = vmatprep.subr.mxu0 0.0
    %1474 = vmatpush1.msra.mxu0 %v371
    %1475 = vmatprep.subr.mxu0 0.0
    %1476 = vmatpush1.msra.mxu0 %v396
    %1477 = vmatprep.subr.mxu0 0.0
    %1478 = vmatpush1.msra.mxu0 0.0
    %1479 = vmatprep.subr.mxu0 0.0
    %1480 = vmatpush1.msra.mxu0 0.0
    %1481 = vmatprep.subr.mxu0 0.0
    %1482 = vmatpush1.msra.mxu0 0.0
    %1483 = vmatprep.subr.mxu0 0.0
    %1484 = vmatpush1.msra.mxu0 0.0
    %1485 = vmatprep.subr.mxu0 0.0
    %1486 = vmatpush1.msra.mxu0 0.0
    %1487 = vmatprep.subr.mxu0 0.0
    %1488 = vmatpush1.msra.mxu0 0.0
    %1489 = vmatprep.subr.mxu0 0.0
    %1490 = vmatpush1.msra.mxu0 0.0
    %1491 = vmatprep.subr.mxu0 0.0
    %1492 = vmatpush1.msra.mxu0 0.0
    %1493 = vmatprep.subr.mxu0 0.0
    %1494 = vmatpush1.msra.mxu0 0.0
    %1495 = vmatprep.subr.mxu0 0.0
    %1496 = vmatpush1.msra.mxu0 0.0
    %1497 = vmatprep.subr.mxu0 0.0
    %1498 = vmatpush1.msra.mxu0 0.0
    %1499 = vmatprep.mubr.f32.mxu0 %v1424
    %1500 = vmatmul.mubr.f32.gmra.mrb[0].mxu0 %v1415
    %v1501 = vpop.f32.mrb[0].mxu0
    %v1502 = vadd.f32 0.0, %v1501
    %v1503 = vpop.f32.mrb[0].mxu0
    %1504 = vmatprep.mubr.f32.mxu0 %v1427
    %1505 = vmatmul.mubr.f32.gmra.mrb[0].mxu0 %v1417
    %v1506 = vpop.f32.mrb[0].mxu0
    %v1507 = vadd.f32 0.0, %v1506
    %v1508 = vpop.f32.mrb[0].mxu0
    %1509 = vmatprep.mubr.f32.mxu0 %v1430
    %1510 = vmatmul.mubr.f32.gmra.mrb[0].mxu0 %v1419
    %v1511 = vpop.f32.mrb[0].mxu0
    %v1512 = vadd.f32 0.0, %v1511
    %v1513 = vpop.f32.mrb[0].mxu0
    %1514 = vmatprep.mubr.f32.mxu0 %v1433
    %1515 = vmatmul.mubr.f32.gmra.mrb[0].mxu0 %v1421
    %v1516 = vpop.f32.mrb[0].mxu0
    %v1517 = vadd.f32 0.0, %v1516
    %v1518 = vpop.f32.mrb[0].mxu0
    %1519 = vdwg.mxu0
    %s1520 = scalar_lea.vmem %s4, 40
    %v1521 = vld [vmem:[%s1520] sm:$0xff]
    %v1523 = vsel %vm592, %v1502, 0
    %v1526 = vsel %vm592, %v1507, 0
    %v1529 = vsel %vm592, %v1512, 0
    %v1532 = vsel %vm592, %v1517, 0
    %1534 = vmatprep.subr.mxu0 0.0
    %1535 = vmatpush1.msra.mxu0 %v1521
    %1536 = vmatprep.subr.mxu0 0.0
    %1537 = vmatpush1.msra.mxu0 0.0
    %1538 = vmatprep.subr.mxu0 0.0
    %1539 = vmatpush1.msra.mxu0 0.0
    %1540 = vmatprep.subr.mxu0 0.0
    %1541 = vmatpush1.msra.mxu0 0.0
    %1542 = vmatprep.subr.mxu0 0.0
    %1543 = vmatpush1.msra.mxu0 0.0
    %1544 = vmatprep.subr.mxu0 0.0
    %1545 = vmatpush1.msra.mxu0 0.0
    %1546 = vmatprep.subr.mxu0 0.0
    %1547 = vmatpush1.msra.mxu0 0.0
    %1548 = vmatprep.subr.mxu0 0.0
    %1549 = vmatpush1.msra.mxu0 0.0
    %1550 = vmatprep.subr.mxu0 0.0
    %1551 = vmatpush1.msra.mxu0 0.0
    %1552 = vmatprep.subr.mxu0 0.0
    %1553 = vmatpush1.msra.mxu0 0.0
    %1554 = vmatprep.subr.mxu0 0.0
    %1555 = vmatpush1.msra.mxu0 0.0
    %1556 = vmatprep.subr.mxu0 0.0
    %1557 = vmatpush1.msra.mxu0 0.0
    %1558 = vmatprep.subr.mxu0 0.0
    %1559 = vmatpush1.msra.mxu0 0.0
    %1560 = vmatprep.subr.mxu0 0.0
    %1561 = vmatpush1.msra.mxu0 0.0
    %1562 = vmatprep.subr.mxu0 0.0
    %1563 = vmatpush1.msra.mxu0 0.0
    %1564 = vmatprep.subr.mxu0 0.0
    %1565 = vmatpush1.msra.mxu0 0.0
    %1566 = vmatprep.subr.mxu0 0.0
    %1567 = vmatpush1.msra.mxu0 0.0
    %1568 = vmatprep.subr.mxu0 0.0
    %1569 = vmatpush1.msra.mxu0 0.0
    %1570 = vmatprep.subr.mxu0 0.0
    %1571 = vmatpush1.msra.mxu0 0.0
    %1572 = vmatprep.subr.mxu0 0.0
    %1573 = vmatpush1.msra.mxu0 0.0
    %1574 = vmatprep.subr.mxu0 0.0
    %1575 = vmatpush1.msra.mxu0 0.0
    %1576 = vmatprep.subr.mxu0 0.0
    %1577 = vmatpush1.msra.mxu0 0.0
    %1578 = vmatprep.subr.mxu0 0.0
    %1579 = vmatpush1.msra.mxu0 0.0
    %1580 = vmatprep.subr.mxu0 0.0
    %1581 = vmatpush1.msra.mxu0 0.0
    %1582 = vmatprep.subr.mxu0 0.0
    %1583 = vmatpush1.msra.mxu0 0.0
    %1584 = vmatprep.subr.mxu0 0.0
    %1585 = vmatpush1.msra.mxu0 0.0
    %1586 = vmatprep.subr.mxu0 0.0
    %1587 = vmatpush1.msra.mxu0 0.0
    %1588 = vmatprep.subr.mxu0 0.0
    %1589 = vmatpush1.msra.mxu0 0.0
    %1590 = vmatprep.subr.mxu0 0.0
    %1591 = vmatpush1.msra.mxu0 0.0
    %1592 = vmatprep.subr.mxu0 0.0
    %1593 = vmatpush1.msra.mxu0 0.0
    %1594 = vmatprep.subr.mxu0 0.0
    %1595 = vmatpush1.msra.mxu0 0.0
    %1596 = vmatprep.subr.mxu0 0.0
    %1597 = vmatpush1.msra.mxu0 0.0
    %1598 = vmatprep.mubr.f32.mxu0 0.0
    %1599 = vmatmul.mubr.f32.gmra.mrb[0].mxu0 %v1523
    %v1600 = vpop.f32.mrb[0].mxu0
    %v1601 = vadd.f32 0.0, %v1600
    %v1602 = vpop.f32.mrb[0].mxu0
    %1603 = vmatprep.mubr.f32.mxu0 0.0
    %1604 = vmatmul.mubr.f32.gmra.mrb[0].mxu0 %v1526
    %v1605 = vpop.f32.mrb[0].mxu0
    %v1606 = vadd.f32 0.0, %v1605
    %v1607 = vpop.f32.mrb[0].mxu0
    %1608 = vmatprep.mubr.f32.mxu0 0.0
    %1609 = vmatmul.mubr.f32.gmra.mrb[0].mxu0 %v1529
    %v1610 = vpop.f32.mrb[0].mxu0
    %v1611 = vadd.f32 0.0, %v1610
    %v1612 = vpop.f32.mrb[0].mxu0
    %1613 = vmatprep.mubr.f32.mxu0 0.0
    %1614 = vmatmul.mubr.f32.gmra.mrb[0].mxu0 %v1532
    %v1615 = vpop.f32.mrb[0].mxu0
    %v1616 = vadd.f32 0.0, %v1615
    %v1617 = vpop.f32.mrb[0].mxu0
    %1618 = vdwg.mxu0
    %v1619 = vadd.f32 %v1410, %v1601
    %v1620 = vadd.f32 %v1411, %v1606
    %v1621 = vadd.f32 %v1412, %v1611
    %v1622 = vadd.f32 %v1413, %v1616
    %s1623 = scalar_lea.vmem %s3, 384
    %v1624 = vld [vmem:[%s1623] sm:$0xff]
    %v1625 = vld [vmem:[%s1623 + $0x8] sm:$0xff]
    %v1626 = vld [vmem:[%s1623 + $0x10] sm:$0xff]
    %v1627 = vld [vmem:[%s1623 + $0x18] sm:$0xff]
    %v1628 = vld [vmem:[%s1623 + $0x20] sm:$0xff]
    %v1629 = vld [vmem:[%s1623 + $0x28] sm:$0xff]
    %v1630 = vld [vmem:[%s1623 + $0x30] sm:$0xff]
    %v1631 = vld [vmem:[%s1623 + $0x38] sm:$0xff]
    %v1633 = vsel %vm381, %v1625, 0
    %v1636 = vsel %vm381, %v1627, 0
    %v1639 = vsel %vm381, %v1629, 0
    %v1642 = vsel %vm381, %v1631, 0
    %1644 = vmatprep.subr.mxu0 0.0
    %1645 = vmatpush1.msra.mxu0 %v352
    %1646 = vmatprep.subr.mxu0 0.0
    %1647 = vmatpush1.msra.mxu0 %v353
    %1648 = vmatprep.subr.mxu0 0.0
    %1649 = vmatpush1.msra.mxu0 %v354
    %1650 = vmatprep.subr.mxu0 0.0
    %1651 = vmatpush1.msra.mxu0 %v355
    %1652 = vmatprep.subr.mxu0 0.0
    %1653 = vmatpush1.msra.mxu0 %v356
    %1654 = vmatprep.subr.mxu0 0.0
    %1655 = vmatpush1.msra.mxu0 %v357
    %1656 = vmatprep.subr.mxu0 0.0
    %1657 = vmatpush1.msra.mxu0 %v358
    %1658 = vmatprep.subr.mxu0 0.0
    %1659 = vmatpush1.msra.mxu0 %v359
    %1660 = vmatprep.subr.mxu0 0.0
    %1661 = vmatpush1.msra.mxu0 %v360
    %1662 = vmatprep.subr.mxu0 0.0
    %1663 = vmatpush1.msra.mxu0 %v361
    %1664 = vmatprep.subr.mxu0 0.0
    %1665 = vmatpush1.msra.mxu0 %v362
    %1666 = vmatprep.subr.mxu0 0.0
    %1667 = vmatpush1.msra.mxu0 %v363
    %1668 = vmatprep.subr.mxu0 0.0
    %1669 = vmatpush1.msra.mxu0 %v364
    %1670 = vmatprep.subr.mxu0 0.0
    %1671 = vmatpush1.msra.mxu0 %v365
    %1672 = vmatprep.subr.mxu0 0.0
    %1673 = vmatpush1.msra.mxu0 %v366
    %1674 = vmatprep.subr.mxu0 0.0
    %1675 = vmatpush1.msra.mxu0 %v367
    %1676 = vmatprep.subr.mxu0 0.0
    %1677 = vmatpush1.msra.mxu0 %v368
    %1678 = vmatprep.subr.mxu0 0.0
    %1679 = vmatpush1.msra.mxu0 %v369
    %1680 = vmatprep.subr.mxu0 0.0
    %1681 = vmatpush1.msra.mxu0 %v370
    %1682 = vmatprep.subr.mxu0 0.0
    %1683 = vmatpush1.msra.mxu0 %v371
    %1684 = vmatprep.subr.mxu0 0.0
    %1685 = vmatpush1.msra.mxu0 %v396
    %1686 = vmatprep.subr.mxu0 0.0
    %1687 = vmatpush1.msra.mxu0 0.0
    %1688 = vmatprep.subr.mxu0 0.0
    %1689 = vmatpush1.msra.mxu0 0.0
    %1690 = vmatprep.subr.mxu0 0.0
    %1691 = vmatpush1.msra.mxu0 0.0
    %1692 = vmatprep.subr.mxu0 0.0
    %1693 = vmatpush1.msra.mxu0 0.0
    %1694 = vmatprep.subr.mxu0 0.0
    %1695 = vmatpush1.msra.mxu0 0.0
    %1696 = vmatprep.subr.mxu0 0.0
    %1697 = vmatpush1.msra.mxu0 0.0
    %1698 = vmatprep.subr.mxu0 0.0
    %1699 = vmatpush1.msra.mxu0 0.0
    %1700 = vmatprep.subr.mxu0 0.0
    %1701 = vmatpush1.msra.mxu0 0.0
    %1702 = vmatprep.subr.mxu0 0.0
    %1703 = vmatpush1.msra.mxu0 0.0
    %1704 = vmatprep.subr.mxu0 0.0
    %1705 = vmatpush1.msra.mxu0 0.0
    %1706 = vmatprep.subr.mxu0 0.0
    %1707 = vmatpush1.msra.mxu0 0.0
    %1708 = vmatprep.mubr.f32.mxu0 %v1633
    %1709 = vmatmul.mubr.f32.gmra.mrb[0].mxu0 %v1624
    %v1710 = vpop.f32.mrb[0].mxu0
    %v1711 = vadd.f32 0.0, %v1710
    %v1712 = vpop.f32.mrb[0].mxu0
    %1713 = vmatprep.mubr.f32.mxu0 %v1636
    %1714 = vmatmul.mubr.f32.gmra.mrb[0].mxu0 %v1626
    %v1715 = vpop.f32.mrb[0].mxu0
    %v1716 = vadd.f32 0.0, %v1715
    %v1717 = vpop.f32.mrb[0].mxu0
    %1718 = vmatprep.mubr.f32.mxu0 %v1639
    %1719 = vmatmul.mubr.f32.gmra.mrb[0].mxu0 %v1628
    %v1720 = vpop.f32.mrb[0].mxu0
    %v1721 = vadd.f32 0.0, %v1720
    %v1722 = vpop.f32.mrb[0].mxu0
    %1723 = vmatprep.mubr.f32.mxu0 %v1642
    %1724 = vmatmul.mubr.f32.gmra.mrb[0].mxu0 %v1630
    %v1725 = vpop.f32.mrb[0].mxu0
    %v1726 = vadd.f32 0.0, %v1725
    %v1727 = vpop.f32.mrb[0].mxu0
    %1728 = vdwg.mxu0
    %s1729 = scalar_lea.vmem %s4, 48
    %v1730 = vld [vmem:[%s1729] sm:$0xff]
    %v1732 = vsel %vm592, %v1711, 0
    %v1735 = vsel %vm592, %v1716, 0
    %v1738 = vsel %vm592, %v1721, 0
    %v1741 = vsel %vm592, %v1726, 0
    %1743 = vmatprep.subr.mxu0 0.0
    %1744 = vmatpush1.msra.mxu0 %v1730
    %1745 = vmatprep.subr.mxu0 0.0
    %1746 = vmatpush1.msra.mxu0 0.0
    %1747 = vmatprep.subr.mxu0 0.0
    %1748 = vmatpush1.msra.mxu0 0.0
    %1749 = vmatprep.subr.mxu0 0.0
    %1750 = vmatpush1.msra.mxu0 0.0
    %1751 = vmatprep.subr.mxu0 0.0
    %1752 = vmatpush1.msra.mxu0 0.0
    %1753 = vmatprep.subr.mxu0 0.0
    %1754 = vmatpush1.msra.mxu0 0.0
    %1755 = vmatprep.subr.mxu0 0.0
    %1756 = vmatpush1.msra.mxu0 0.0
    %1757 = vmatprep.subr.mxu0 0.0
    %1758 = vmatpush1.msra.mxu0 0.0
    %1759 = vmatprep.subr.mxu0 0.0
    %1760 = vmatpush1.msra.mxu0 0.0
    %1761 = vmatprep.subr.mxu0 0.0
    %1762 = vmatpush1.msra.mxu0 0.0
    %1763 = vmatprep.subr.mxu0 0.0
    %1764 = vmatpush1.msra.mxu0 0.0
    %1765 = vmatprep.subr.mxu0 0.0
    %1766 = vmatpush1.msra.mxu0 0.0
    %1767 = vmatprep.subr.mxu0 0.0
    %1768 = vmatpush1.msra.mxu0 0.0
    %1769 = vmatprep.subr.mxu0 0.0
    %1770 = vmatpush1.msra.mxu0 0.0
    %1771 = vmatprep.subr.mxu0 0.0
    %1772 = vmatpush1.msra.mxu0 0.0
    %1773 = vmatprep.subr.mxu0 0.0
    %1774 = vmatpush1.msra.mxu0 0.0
    %1775 = vmatprep.subr.mxu0 0.0
    %1776 = vmatpush1.msra.mxu0 0.0
    %1777 = vmatprep.subr.mxu0 0.0
    %1778 = vmatpush1.msra.mxu0 0.0
    %1779 = vmatprep.subr.mxu0 0.0
    %1780 = vmatpush1.msra.mxu0 0.0
    %1781 = vmatprep.subr.mxu0 0.0
    %1782 = vmatpush1.msra.mxu0 0.0
    %1783 = vmatprep.subr.mxu0 0.0
    %1784 = vmatpush1.msra.mxu0 0.0
    %1785 = vmatprep.subr.mxu0 0.0
    %1786 = vmatpush1.msra.mxu0 0.0
    %1787 = vmatprep.subr.mxu0 0.0
    %1788 = vmatpush1.msra.mxu0 0.0
    %1789 = vmatprep.subr.mxu0 0.0
    %1790 = vmatpush1.msra.mxu0 0.0
    %1791 = vmatprep.subr.mxu0 0.0
    %1792 = vmatpush1.msra.mxu0 0.0
    %1793 = vmatprep.subr.mxu0 0.0
    %1794 = vmatpush1.msra.mxu0 0.0
    %1795 = vmatprep.subr.mxu0 0.0
    %1796 = vmatpush1.msra.mxu0 0.0
    %1797 = vmatprep.subr.mxu0 0.0
    %1798 = vmatpush1.msra.mxu0 0.0
    %1799 = vmatprep.subr.mxu0 0.0
    %1800 = vmatpush1.msra.mxu0 0.0
    %1801 = vmatprep.subr.mxu0 0.0
    %1802 = vmatpush1.msra.mxu0 0.0
    %1803 = vmatprep.subr.mxu0 0.0
    %1804 = vmatpush1.msra.mxu0 0.0
    %1805 = vmatprep.subr.mxu0 0.0
    %1806 = vmatpush1.msra.mxu0 0.0
    %1807 = vmatprep.mubr.f32.mxu0 0.0
    %1808 = vmatmul.mubr.f32.gmra.mrb[0].mxu0 %v1732
    %v1809 = vpop.f32.mrb[0].mxu0
    %v1810 = vadd.f32 0.0, %v1809
    %v1811 = vpop.f32.mrb[0].mxu0
    %1812 = vmatprep.mubr.f32.mxu0 0.0
    %1813 = vmatmul.mubr.f32.gmra.mrb[0].mxu0 %v1735
    %v1814 = vpop.f32.mrb[0].mxu0
    %v1815 = vadd.f32 0.0, %v1814
    %v1816 = vpop.f32.mrb[0].mxu0
    %1817 = vmatprep.mubr.f32.mxu0 0.0
    %1818 = vmatmul.mubr.f32.gmra.mrb[0].mxu0 %v1738
    %v1819 = vpop.f32.mrb[0].mxu0
    %v1820 = vadd.f32 0.0, %v1819
    %v1821 = vpop.f32.mrb[0].mxu0
    %1822 = vmatprep.mubr.f32.mxu0 0.0
    %1823 = vmatmul.mubr.f32.gmra.mrb[0].mxu0 %v1741
    %v1824 = vpop.f32.mrb[0].mxu0
    %v1825 = vadd.f32 0.0, %v1824
    %v1826 = vpop.f32.mrb[0].mxu0
    %1827 = vdwg.mxu0
    %v1828 = vadd.f32 %v1619, %v1810
    %v1829 = vadd.f32 %v1620, %v1815
    %v1830 = vadd.f32 %v1621, %v1820
    %v1831 = vadd.f32 %v1622, %v1825
    %s1832 = scalar_lea.vmem %s3, 448
    %v1833 = vld [vmem:[%s1832] sm:$0xff]
    %v1834 = vld [vmem:[%s1832 + $0x8] sm:$0xff]
    %v1835 = vld [vmem:[%s1832 + $0x10] sm:$0xff]
    %v1836 = vld [vmem:[%s1832 + $0x18] sm:$0xff]
    %v1837 = vld [vmem:[%s1832 + $0x20] sm:$0xff]
    %v1838 = vld [vmem:[%s1832 + $0x28] sm:$0xff]
    %v1839 = vld [vmem:[%s1832 + $0x30] sm:$0xff]
    %v1840 = vld [vmem:[%s1832 + $0x38] sm:$0xff]
    %v1842 = vsel %vm381, %v1834, 0
    %v1845 = vsel %vm381, %v1836, 0
    %v1848 = vsel %vm381, %v1838, 0
    %v1851 = vsel %vm381, %v1840, 0
    %1853 = vmatprep.subr.mxu0 0.0
    %1854 = vmatpush1.msra.mxu0 %v352
    %1855 = vmatprep.subr.mxu0 0.0
    %1856 = vmatpush1.msra.mxu0 %v353
    %1857 = vmatprep.subr.mxu0 0.0
    %1858 = vmatpush1.msra.mxu0 %v354
    %1859 = vmatprep.subr.mxu0 0.0
    %1860 = vmatpush1.msra.mxu0 %v355
    %1861 = vmatprep.subr.mxu0 0.0
    %1862 = vmatpush1.msra.mxu0 %v356
    %1863 = vmatprep.subr.mxu0 0.0
    %1864 = vmatpush1.msra.mxu0 %v357
    %1865 = vmatprep.subr.mxu0 0.0
    %1866 = vmatpush1.msra.mxu0 %v358
    %1867 = vmatprep.subr.mxu0 0.0
    %1868 = vmatpush1.msra.mxu0 %v359
    %1869 = vmatprep.subr.mxu0 0.0
    %1870 = vmatpush1.msra.mxu0 %v360
    %1871 = vmatprep.subr.mxu0 0.0
    %1872 = vmatpush1.msra.mxu0 %v361
    %1873 = vmatprep.subr.mxu0 0.0
    %1874 = vmatpush1.msra.mxu0 %v362
    %1875 = vmatprep.subr.mxu0 0.0
    %1876 = vmatpush1.msra.mxu0 %v363
    %1877 = vmatprep.subr.mxu0 0.0
    %1878 = vmatpush1.msra.mxu0 %v364
    %1879 = vmatprep.subr.mxu0 0.0
    %1880 = vmatpush1.msra.mxu0 %v365
    %1881 = vmatprep.subr.mxu0 0.0
    %1882 = vmatpush1.msra.mxu0 %v366
    %1883 = vmatprep.subr.mxu0 0.0
    %1884 = vmatpush1.msra.mxu0 %v367
    %1885 = vmatprep.subr.mxu0 0.0
    %1886 = vmatpush1.msra.mxu0 %v368
    %1887 = vmatprep.subr.mxu0 0.0
    %1888 = vmatpush1.msra.mxu0 %v369
    %1889 = vmatprep.subr.mxu0 0.0
    %1890 = vmatpush1.msra.mxu0 %v370
    %1891 = vmatprep.subr.mxu0 0.0
    %1892 = vmatpush1.msra.mxu0 %v371
    %1893 = vmatprep.subr.mxu0 0.0
    %1894 = vmatpush1.msra.mxu0 %v396
    %1895 = vmatprep.subr.mxu0 0.0
    %1896 = vmatpush1.msra.mxu0 0.0
    %1897 = vmatprep.subr.mxu0 0.0
    %1898 = vmatpush1.msra.mxu0 0.0
    %1899 = vmatprep.subr.mxu0 0.0
    %1900 = vmatpush1.msra.mxu0 0.0
    %1901 = vmatprep.subr.mxu0 0.0
    %1902 = vmatpush1.msra.mxu0 0.0
    %1903 = vmatprep.subr.mxu0 0.0
    %1904 = vmatpush1.msra.mxu0 0.0
    %1905 = vmatprep.subr.mxu0 0.0
    %1906 = vmatpush1.msra.mxu0 0.0
    %1907 = vmatprep.subr.mxu0 0.0
    %1908 = vmatpush1.msra.mxu0 0.0
    %1909 = vmatprep.subr.mxu0 0.0
    %1910 = vmatpush1.msra.mxu0 0.0
    %1911 = vmatprep.subr.mxu0 0.0
    %1912 = vmatpush1.msra.mxu0 0.0
    %1913 = vmatprep.subr.mxu0 0.0
    %1914 = vmatpush1.msra.mxu0 0.0
    %1915 = vmatprep.subr.mxu0 0.0
    %1916 = vmatpush1.msra.mxu0 0.0
    %1917 = vmatprep.mubr.f32.mxu0 %v1842
    %1918 = vmatmul.mubr.f32.gmra.mrb[0].mxu0 %v1833
    %v1919 = vpop.f32.mrb[0].mxu0
    %v1920 = vadd.f32 0.0, %v1919
    %v1921 = vpop.f32.mrb[0].mxu0
    %1922 = vmatprep.mubr.f32.mxu0 %v1845
    %1923 = vmatmul.mubr.f32.gmra.mrb[0].mxu0 %v1835
    %v1924 = vpop.f32.mrb[0].mxu0
    %v1925 = vadd.f32 0.0, %v1924
    %v1926 = vpop.f32.mrb[0].mxu0
    %1927 = vmatprep.mubr.f32.mxu0 %v1848
    %1928 = vmatmul.mubr.f32.gmra.mrb[0].mxu0 %v1837
    %v1929 = vpop.f32.mrb[0].mxu0
    %v1930 = vadd.f32 0.0, %v1929
    %v1931 = vpop.f32.mrb[0].mxu0
    %1932 = vmatprep.mubr.f32.mxu0 %v1851
    %1933 = vmatmul.mubr.f32.gmra.mrb[0].mxu0 %v1839
    %v1934 = vpop.f32.mrb[0].mxu0
    %v1935 = vadd.f32 0.0, %v1934
    %v1936 = vpop.f32.mrb[0].mxu0
    %1937 = vdwg.mxu0
    %s1938 = scalar_lea.vmem %s4, 56
    %v1939 = vld [vmem:[%s1938] sm:$0xff]
    %v1941 = vsel %vm592, %v1920, 0
    %v1944 = vsel %vm592, %v1925, 0
    %v1947 = vsel %vm592, %v1930, 0
    %v1950 = vsel %vm592, %v1935, 0
    %1952 = vmatprep.subr.mxu0 0.0
    %1953 = vmatpush1.msra.mxu0 %v1939
    %1954 = vmatprep.subr.mxu0 0.0
    %1955 = vmatpush1.msra.mxu0 0.0
    %1956 = vmatprep.subr.mxu0 0.0
    %1957 = vmatpush1.msra.mxu0 0.0
    %1958 = vmatprep.subr.mxu0 0.0
    %1959 = vmatpush1.msra.mxu0 0.0
    %1960 = vmatprep.subr.mxu0 0.0
    %1961 = vmatpush1.msra.mxu0 0.0
    %1962 = vmatprep.subr.mxu0 0.0
    %1963 = vmatpush1.msra.mxu0 0.0
    %1964 = vmatprep.subr.mxu0 0.0
    %1965 = vmatpush1.msra.mxu0 0.0
    %1966 = vmatprep.subr.mxu0 0.0
    %1967 = vmatpush1.msra.mxu0 0.0
    %1968 = vmatprep.subr.mxu0 0.0
    %1969 = vmatpush1.msra.mxu0 0.0
    %1970 = vmatprep.subr.mxu0 0.0
    %1971 = vmatpush1.msra.mxu0 0.0
    %1972 = vmatprep.subr.mxu0 0.0
    %1973 = vmatpush1.msra.mxu0 0.0
    %1974 = vmatprep.subr.mxu0 0.0
    %1975 = vmatpush1.msra.mxu0 0.0
    %1976 = vmatprep.subr.mxu0 0.0
    %1977 = vmatpush1.msra.mxu0 0.0
    %1978 = vmatprep.subr.mxu0 0.0
    %1979 = vmatpush1.msra.mxu0 0.0
    %1980 = vmatprep.subr.mxu0 0.0
    %1981 = vmatpush1.msra.mxu0 0.0
    %1982 = vmatprep.subr.mxu0 0.0
    %1983 = vmatpush1.msra.mxu0 0.0
    %1984 = vmatprep.subr.mxu0 0.0
    %1985 = vmatpush1.msra.mxu0 0.0
    %1986 = vmatprep.subr.mxu0 0.0
    %1987 = vmatpush1.msra.mxu0 0.0
    %1988 = vmatprep.subr.mxu0 0.0
    %1989 = vmatpush1.msra.mxu0 0.0
    %1990 = vmatprep.subr.mxu0 0.0
    %1991 = vmatpush1.msra.mxu0 0.0
    %1992 = vmatprep.subr.mxu0 0.0
    %1993 = vmatpush1.msra.mxu0 0.0
    %1994 = vmatprep.subr.mxu0 0.0
    %1995 = vmatpush1.msra.mxu0 0.0
    %1996 = vmatprep.subr.mxu0 0.0
    %1997 = vmatpush1.msra.mxu0 0.0
    %1998 = vmatprep.subr.mxu0 0.0
    %1999 = vmatpush1.msra.mxu0 0.0
    %2000 = vmatprep.subr.mxu0 0.0
    %2001 = vmatpush1.msra.mxu0 0.0
    %2002 = vmatprep.subr.mxu0 0.0
    %2003 = vmatpush1.msra.mxu0 0.0
    %2004 = vmatprep.subr.mxu0 0.0
    %2005 = vmatpush1.msra.mxu0 0.0
    %2006 = vmatprep.subr.mxu0 0.0
    %2007 = vmatpush1.msra.mxu0 0.0
    %2008 = vmatprep.subr.mxu0 0.0
    %2009 = vmatpush1.msra.mxu0 0.0
    %2010 = vmatprep.subr.mxu0 0.0
    %2011 = vmatpush1.msra.mxu0 0.0
    %2012 = vmatprep.subr.mxu0 0.0
    %2013 = vmatpush1.msra.mxu0 0.0
    %2014 = vmatprep.subr.mxu0 0.0
    %2015 = vmatpush1.msra.mxu0 0.0
    %2016 = vmatprep.mubr.f32.mxu0 0.0
    %2017 = vmatmul.mubr.f32.gmra.mrb[0].mxu0 %v1941
    %v2018 = vpop.f32.mrb[0].mxu0
    %v2019 = vadd.f32 0.0, %v2018
    %v2020 = vpop.f32.mrb[0].mxu0
    %2021 = vmatprep.mubr.f32.mxu0 0.0
    %2022 = vmatmul.mubr.f32.gmra.mrb[0].mxu0 %v1944
    %v2023 = vpop.f32.mrb[0].mxu0
    %v2024 = vadd.f32 0.0, %v2023
    %v2025 = vpop.f32.mrb[0].mxu0
    %2026 = vmatprep.mubr.f32.mxu0 0.0
    %2027 = vmatmul.mubr.f32.gmra.mrb[0].mxu0 %v1947
    %v2028 = vpop.f32.mrb[0].mxu0
    %v2029 = vadd.f32 0.0, %v2028
    %v2030 = vpop.f32.mrb[0].mxu0
    %2031 = vmatprep.mubr.f32.mxu0 0.0
    %2032 = vmatmul.mubr.f32.gmra.mrb[0].mxu0 %v1950
    %v2033 = vpop.f32.mrb[0].mxu0
    %v2034 = vadd.f32 0.0, %v2033
    %v2035 = vpop.f32.mrb[0].mxu0
    %2036 = vdwg.mxu0
    %v2037 = vadd.f32 %v1828, %v2019
    %v2038 = vadd.f32 %v1829, %v2024
    %v2039 = vadd.f32 %v1830, %v2029
    %v2040 = vadd.f32 %v1831, %v2034
    %s2041 = scalar_lea.vmem %s3, 512
    %v2042 = vld [vmem:[%s2041] sm:$0xff]
    %v2043 = vld [vmem:[%s2041 + $0x8] sm:$0xff]
    %v2044 = vld [vmem:[%s2041 + $0x10] sm:$0xff]
    %v2045 = vld [vmem:[%s2041 + $0x18] sm:$0xff]
    %v2046 = vld [vmem:[%s2041 + $0x20] sm:$0xff]
    %v2047 = vld [vmem:[%s2041 + $0x28] sm:$0xff]
    %v2048 = vld [vmem:[%s2041 + $0x30] sm:$0xff]
    %v2049 = vld [vmem:[%s2041 + $0x38] sm:$0xff]
    %v2051 = vsel %vm381, %v2043, 0
    %v2054 = vsel %vm381, %v2045, 0
    %v2057 = vsel %vm381, %v2047, 0
    %v2060 = vsel %vm381, %v2049, 0
    %2062 = vmatprep.subr.mxu0 0.0
    %2063 = vmatpush1.msra.mxu0 %v352
    %2064 = vmatprep.subr.mxu0 0.0
    %2065 = vmatpush1.msra.mxu0 %v353
    %2066 = vmatprep.subr.mxu0 0.0
    %2067 = vmatpush1.msra.mxu0 %v354
    %2068 = vmatprep.subr.mxu0 0.0
    %2069 = vmatpush1.msra.mxu0 %v355
    %2070 = vmatprep.subr.mxu0 0.0
    %2071 = vmatpush1.msra.mxu0 %v356
    %2072 = vmatprep.subr.mxu0 0.0
    %2073 = vmatpush1.msra.mxu0 %v357
    %2074 = vmatprep.subr.mxu0 0.0
    %2075 = vmatpush1.msra.mxu0 %v358
    %2076 = vmatprep.subr.mxu0 0.0
    %2077 = vmatpush1.msra.mxu0 %v359
    %2078 = vmatprep.subr.mxu0 0.0
    %2079 = vmatpush1.msra.mxu0 %v360
    %2080 = vmatprep.subr.mxu0 0.0
    %2081 = vmatpush1.msra.mxu0 %v361
    %2082 = vmatprep.subr.mxu0 0.0
    %2083 = vmatpush1.msra.mxu0 %v362
    %2084 = vmatprep.subr.mxu0 0.0
    %2085 = vmatpush1.msra.mxu0 %v363
    %2086 = vmatprep.subr.mxu0 0.0
    %2087 = vmatpush1.msra.mxu0 %v364
    %2088 = vmatprep.subr.mxu0 0.0
    %2089 = vmatpush1.msra.mxu0 %v365
    %2090 = vmatprep.subr.mxu0 0.0
    %2091 = vmatpush1.msra.mxu0 %v366
    %2092 = vmatprep.subr.mxu0 0.0
    %2093 = vmatpush1.msra.mxu0 %v367
    %2094 = vmatprep.subr.mxu0 0.0
    %2095 = vmatpush1.msra.mxu0 %v368
    %2096 = vmatprep.subr.mxu0 0.0
    %2097 = vmatpush1.msra.mxu0 %v369
    %2098 = vmatprep.subr.mxu0 0.0
    %2099 = vmatpush1.msra.mxu0 %v370
    %2100 = vmatprep.subr.mxu0 0.0
    %2101 = vmatpush1.msra.mxu0 %v371
    %2102 = vmatprep.subr.mxu0 0.0
    %2103 = vmatpush1.msra.mxu0 %v396
    %2104 = vmatprep.subr.mxu0 0.0
    %2105 = vmatpush1.msra.mxu0 0.0
    %2106 = vmatprep.subr.mxu0 0.0
    %2107 = vmatpush1.msra.mxu0 0.0
    %2108 = vmatprep.subr.mxu0 0.0
    %2109 = vmatpush1.msra.mxu0 0.0
    %2110 = vmatprep.subr.mxu0 0.0
    %2111 = vmatpush1.msra.mxu0 0.0
    %2112 = vmatprep.subr.mxu0 0.0
    %2113 = vmatpush1.msra.mxu0 0.0
    %2114 = vmatprep.subr.mxu0 0.0
    %2115 = vmatpush1.msra.mxu0 0.0
    %2116 = vmatprep.subr.mxu0 0.0
    %2117 = vmatpush1.msra.mxu0 0.0
    %2118 = vmatprep.subr.mxu0 0.0
    %2119 = vmatpush1.msra.mxu0 0.0
    %2120 = vmatprep.subr.mxu0 0.0
    %2121 = vmatpush1.msra.mxu0 0.0
    %2122 = vmatprep.subr.mxu0 0.0
    %2123 = vmatpush1.msra.mxu0 0.0
    %2124 = vmatprep.subr.mxu0 0.0
    %2125 = vmatpush1.msra.mxu0 0.0
    %2126 = vmatprep.mubr.f32.mxu0 %v2051
    %2127 = vmatmul.mubr.f32.gmra.mrb[0].mxu0 %v2042
    %v2128 = vpop.f32.mrb[0].mxu0
    %v2129 = vadd.f32 0.0, %v2128
    %v2130 = vpop.f32.mrb[0].mxu0
    %2131 = vmatprep.mubr.f32.mxu0 %v2054
    %2132 = vmatmul.mubr.f32.gmra.mrb[0].mxu0 %v2044
    %v2133 = vpop.f32.mrb[0].mxu0
    %v2134 = vadd.f32 0.0, %v2133
    %v2135 = vpop.f32.mrb[0].mxu0
    %2136 = vmatprep.mubr.f32.mxu0 %v2057
    %2137 = vmatmul.mubr.f32.gmra.mrb[0].mxu0 %v2046
    %v2138 = vpop.f32.mrb[0].mxu0
    %v2139 = vadd.f32 0.0, %v2138
    %v2140 = vpop.f32.mrb[0].mxu0
    %2141 = vmatprep.mubr.f32.mxu0 %v2060
    %2142 = vmatmul.mubr.f32.gmra.mrb[0].mxu0 %v2048
    %v2143 = vpop.f32.mrb[0].mxu0
    %v2144 = vadd.f32 0.0, %v2143
    %v2145 = vpop.f32.mrb[0].mxu0
    %2146 = vdwg.mxu0
    %s2147 = scalar_lea.vmem %s4, 64
    %v2148 = vld [vmem:[%s2147] sm:$0xff]
    %v2150 = vsel %vm592, %v2129, 0
    %v2153 = vsel %vm592, %v2134, 0
    %v2156 = vsel %vm592, %v2139, 0
    %v2159 = vsel %vm592, %v2144, 0
    %2161 = vmatprep.subr.mxu0 0.0
    %2162 = vmatpush1.msra.mxu0 %v2148
    %2163 = vmatprep.subr.mxu0 0.0
    %2164 = vmatpush1.msra.mxu0 0.0
    %2165 = vmatprep.subr.mxu0 0.0
    %2166 = vmatpush1.msra.mxu0 0.0
    %2167 = vmatprep.subr.mxu0 0.0
    %2168 = vmatpush1.msra.mxu0 0.0
    %2169 = vmatprep.subr.mxu0 0.0
    %2170 = vmatpush1.msra.mxu0 0.0
    %2171 = vmatprep.subr.mxu0 0.0
    %2172 = vmatpush1.msra.mxu0 0.0
    %2173 = vmatprep.subr.mxu0 0.0
    %2174 = vmatpush1.msra.mxu0 0.0
    %2175 = vmatprep.subr.mxu0 0.0
    %2176 = vmatpush1.msra.mxu0 0.0
    %2177 = vmatprep.subr.mxu0 0.0
    %2178 = vmatpush1.msra.mxu0 0.0
    %2179 = vmatprep.subr.mxu0 0.0
    %2180 = vmatpush1.msra.mxu0 0.0
    %2181 = vmatprep.subr.mxu0 0.0
    %2182 = vmatpush1.msra.mxu0 0.0
    %2183 = vmatprep.subr.mxu0 0.0
    %2184 = vmatpush1.msra.mxu0 0.0
    %2185 = vmatprep.subr.mxu0 0.0
    %2186 = vmatpush1.msra.mxu0 0.0
    %2187 = vmatprep.subr.mxu0 0.0
    %2188 = vmatpush1.msra.mxu0 0.0
    %2189 = vmatprep.subr.mxu0 0.0
    %2190 = vmatpush1.msra.mxu0 0.0
    %2191 = vmatprep.subr.mxu0 0.0
    %2192 = vmatpush1.msra.mxu0 0.0
    %2193 = vmatprep.subr.mxu0 0.0
    %2194 = vmatpush1.msra.mxu0 0.0
    %2195 = vmatprep.subr.mxu0 0.0
    %2196 = vmatpush1.msra.mxu0 0.0
    %2197 = vmatprep.subr.mxu0 0.0
    %2198 = vmatpush1.msra.mxu0 0.0
    %2199 = vmatprep.subr.mxu0 0.0
    %2200 = vmatpush1.msra.mxu0 0.0
    %2201 = vmatprep.subr.mxu0 0.0
    %2202 = vmatpush1.msra.mxu0 0.0
    %2203 = vmatprep.subr.mxu0 0.0
    %2204 = vmatpush1.msra.mxu0 0.0
    %2205 = vmatprep.subr.mxu0 0.0
    %2206 = vmatpush1.msra.mxu0 0.0
    %2207 = vmatprep.subr.mxu0 0.0
    %2208 = vmatpush1.msra.mxu0 0.0
    %2209 = vmatprep.subr.mxu0 0.0
    %2210 = vmatpush1.msra.mxu0 0.0
    %2211 = vmatprep.subr.mxu0 0.0
    %2212 = vmatpush1.msra.mxu0 0.0
    %2213 = vmatprep.subr.mxu0 0.0
    %2214 = vmatpush1.msra.mxu0 0.0
    %2215 = vmatprep.subr.mxu0 0.0
    %2216 = vmatpush1.msra.mxu0 0.0
    %2217 = vmatprep.subr.mxu0 0.0
    %2218 = vmatpush1.msra.mxu0 0.0
    %2219 = vmatprep.subr.mxu0 0.0
    %2220 = vmatpush1.msra.mxu0 0.0
    %2221 = vmatprep.subr.mxu0 0.0
    %2222 = vmatpush1.msra.mxu0 0.0
    %2223 = vmatprep.subr.mxu0 0.0
    %2224 = vmatpush1.msra.mxu0 0.0
    %2225 = vmatprep.mubr.f32.mxu0 0.0
    %2226 = vmatmul.mubr.f32.gmra.mrb[0].mxu0 %v2150
    %v2227 = vpop.f32.mrb[0].mxu0
    %v2228 = vadd.f32 0.0, %v2227
    %v2229 = vpop.f32.mrb[0].mxu0
    %2230 = vmatprep.mubr.f32.mxu0 0.0
    %2231 = vmatmul.mubr.f32.gmra.mrb[0].mxu0 %v2153
    %v2232 = vpop.f32.mrb[0].mxu0
    %v2233 = vadd.f32 0.0, %v2232
    %v2234 = vpop.f32.mrb[0].mxu0
    %2235 = vmatprep.mubr.f32.mxu0 0.0
    %2236 = vmatmul.mubr.f32.gmra.mrb[0].mxu0 %v2156
    %v2237 = vpop.f32.mrb[0].mxu0
    %v2238 = vadd.f32 0.0, %v2237
    %v2239 = vpop.f32.mrb[0].mxu0
    %2240 = vmatprep.mubr.f32.mxu0 0.0
    %2241 = vmatmul.mubr.f32.gmra.mrb[0].mxu0 %v2159
    %v2242 = vpop.f32.mrb[0].mxu0
    %v2243 = vadd.f32 0.0, %v2242
    %v2244 = vpop.f32.mrb[0].mxu0
    %2245 = vdwg.mxu0
    %v2246 = vadd.f32 %v2037, %v2228
    %v2247 = vadd.f32 %v2038, %v2233
    %v2248 = vadd.f32 %v2039, %v2238
    %v2249 = vadd.f32 %v2040, %v2243
    %v2250 = vld [vmem:[%s5] sm:$0x1]
    %v2252 = vlaneseq
    %v2253 = vshrl.u32 %v2252, 7
    %v2254 = vsub.s32 0, %v2253
    %v2255 = vrot.slane %v2250, %v2254
    %v2257 = vadd.f32 %v2246, %v2255
    %v2258 = vadd.f32 %v2247, %v2255
    %v2259 = vadd.f32 %v2248, %v2255
    %v2260 = vadd.f32 %v2249, %v2255
    %v2261 = vld [vmem:[%s6] sm:$0xff]
    %vm2262 = vcmask 261120
    %v2264 = vsel %vm2262, %v2261, 0
    %2266 = vmatprep.subr.mxu0 0.0
    %2267 = vmatpush1.msra.mxu0 %v2257
    %2268 = vmatprep.subr.mxu0 0.0
    %2269 = vmatpush1.msra.mxu0 %v2258
    %2270 = vmatprep.subr.mxu0 0.0
    %2271 = vmatpush1.msra.mxu0 %v2259
    %2272 = vmatprep.subr.mxu0 0.0
    %2273 = vmatpush1.msra.mxu0 %v2260
    %2274 = vmatprep.subr.mxu0 0.0
    %2275 = vmatpush1.msra.mxu0 0.0
    %2276 = vmatprep.subr.mxu0 0.0
    %2277 = vmatpush1.msra.mxu0 0.0
    %2278 = vmatprep.subr.mxu0 0.0
    %2279 = vmatpush1.msra.mxu0 0.0
    %2280 = vmatprep.subr.mxu0 0.0
    %2281 = vmatpush1.msra.mxu0 0.0
    %2282 = vmatprep.subr.mxu0 0.0
    %2283 = vmatpush1.msra.mxu0 0.0
    %2284 = vmatprep.subr.mxu0 0.0
    %2285 = vmatpush1.msra.mxu0 0.0
    %2286 = vmatprep.subr.mxu0 0.0
    %2287 = vmatpush1.msra.mxu0 0.0
    %2288 = vmatprep.subr.mxu0 0.0
    %2289 = vmatpush1.msra.mxu0 0.0
    %2290 = vmatprep.subr.mxu0 0.0
    %2291 = vmatpush1.msra.mxu0 0.0
    %2292 = vmatprep.subr.mxu0 0.0
    %2293 = vmatpush1.msra.mxu0 0.0
    %2294 = vmatprep.subr.mxu0 0.0
    %2295 = vmatpush1.msra.mxu0 0.0
    %2296 = vmatprep.subr.mxu0 0.0
    %2297 = vmatpush1.msra.mxu0 0.0
    %2298 = vmatprep.subr.mxu0 0.0
    %2299 = vmatpush1.msra.mxu0 0.0
    %2300 = vmatprep.subr.mxu0 0.0
    %2301 = vmatpush1.msra.mxu0 0.0
    %2302 = vmatprep.subr.mxu0 0.0
    %2303 = vmatpush1.msra.mxu0 0.0
    %2304 = vmatprep.subr.mxu0 0.0
    %2305 = vmatpush1.msra.mxu0 0.0
    %2306 = vmatprep.subr.mxu0 0.0
    %2307 = vmatpush1.msra.mxu0 0.0
    %2308 = vmatprep.subr.mxu0 0.0
    %2309 = vmatpush1.msra.mxu0 0.0
    %2310 = vmatprep.subr.mxu0 0.0
    %2311 = vmatpush1.msra.mxu0 0.0
    %2312 = vmatprep.subr.mxu0 0.0
    %2313 = vmatpush1.msra.mxu0 0.0
    %2314 = vmatprep.subr.mxu0 0.0
    %2315 = vmatpush1.msra.mxu0 0.0
    %2316 = vmatprep.subr.mxu0 0.0
    %2317 = vmatpush1.msra.mxu0 0.0
    %2318 = vmatprep.subr.mxu0 0.0
    %2319 = vmatpush1.msra.mxu0 0.0
    %2320 = vmatprep.subr.mxu0 0.0
    %2321 = vmatpush1.msra.mxu0 0.0
    %2322 = vmatprep.subr.mxu0 0.0
    %2323 = vmatpush1.msra.mxu0 0.0
    %2324 = vmatprep.subr.mxu0 0.0
    %2325 = vmatpush1.msra.mxu0 0.0
    %2326 = vmatprep.subr.mxu0 0.0
    %2327 = vmatpush1.msra.mxu0 0.0
    %2328 = vmatprep.subr.mxu0 0.0
    %2329 = vmatpush1.msra.mxu0 0.0
    %2330 = vmatprep.mubr.f32.mxu0 0.0
    %2331 = vmatmul.mubr.f32.gmra.mrb[0].mxu0 %v2264
    %v2332 = vpop.f32.mrb[0].mxu0
    %v2333 = vadd.f32 0.0, %v2332
    %v2334 = vpop.f32.mrb[0].mxu0
    %2335 = vdwg.mxu0
    %v2336 = vld [vmem:[%s7] sm:$0xff]
    %v2337 = vld [vmem:[%s7 + $0x8] sm:$0xff]
    %v2338 = vld [vmem:[%s7 + $0x10] sm:$0xff]
    %v2339 = vld [vmem:[%s7 + $0x18] sm:$0xff]
    %v2340 = vld [vmem:[%s7 + $0x20] sm:$0xff]
    %v2341 = vld [vmem:[%s7 + $0x28] sm:$0xff]
    %s2342 = scalar_lea.vmem %s6, 8
    %v2343 = vld [vmem:[%s2342] sm:$0xff]
    %v2345 = vsel %vm2262, %v2343, 0
    %2347 = vmatprep.subr.mxu0 0.0
    %2348 = vmatpush1.msra.mxu0 %v2257
    %2349 = vmatprep.subr.mxu0 0.0
    %2350 = vmatpush1.msra.mxu0 %v2258
    %2351 = vmatprep.subr.mxu0 0.0
    %2352 = vmatpush1.msra.mxu0 %v2259
    %2353 = vmatprep.subr.mxu0 0.0
    %2354 = vmatpush1.msra.mxu0 %v2260
    %2355 = vmatprep.subr.mxu0 0.0
    %2356 = vmatpush1.msra.mxu0 0.0
    %2357 = vmatprep.subr.mxu0 0.0
    %2358 = vmatpush1.msra.mxu0 0.0
    %2359 = vmatprep.subr.mxu0 0.0
    %2360 = vmatpush1.msra.mxu0 0.0
    %2361 = vmatprep.subr.mxu0 0.0
    %2362 = vmatpush1.msra.mxu0 0.0
    %2363 = vmatprep.subr.mxu0 0.0
    %2364 = vmatpush1.msra.mxu0 0.0
    %2365 = vmatprep.subr.mxu0 0.0
    %2366 = vmatpush1.msra.mxu0 0.0
    %2367 = vmatprep.subr.mxu0 0.0
    %2368 = vmatpush1.msra.mxu0 0.0
    %2369 = vmatprep.subr.mxu0 0.0
    %2370 = vmatpush1.msra.mxu0 0.0
    %2371 = vmatprep.subr.mxu0 0.0
    %2372 = vmatpush1.msra.mxu0 0.0
    %2373 = vmatprep.subr.mxu0 0.0
    %2374 = vmatpush1.msra.mxu0 0.0
    %2375 = vmatprep.subr.mxu0 0.0
    %2376 = vmatpush1.msra.mxu0 0.0
    %2377 = vmatprep.subr.mxu0 0.0
    %2378 = vmatpush1.msra.mxu0 0.0
    %2379 = vmatprep.subr.mxu0 0.0
    %2380 = vmatpush1.msra.mxu0 0.0
    %2381 = vmatprep.subr.mxu0 0.0
    %2382 = vmatpush1.msra.mxu0 0.0
    %2383 = vmatprep.subr.mxu0 0.0
    %2384 = vmatpush1.msra.mxu0 0.0
    %2385 = vmatprep.subr.mxu0 0.0
    %2386 = vmatpush1.msra.mxu0 0.0
    %2387 = vmatprep.subr.mxu0 0.0
    %2388 = vmatpush1.msra.mxu0 0.0
    %2389 = vmatprep.subr.mxu0 0.0
    %2390 = vmatpush1.msra.mxu0 0.0
    %2391 = vmatprep.subr.mxu0 0.0
    %2392 = vmatpush1.msra.mxu0 0.0
    %2393 = vmatprep.subr.mxu0 0.0
    %2394 = vmatpush1.msra.mxu0 0.0
    %2395 = vmatprep.subr.mxu0 0.0
    %2396 = vmatpush1.msra.mxu0 0.0
    %2397 = vmatprep.subr.mxu0 0.0
    %2398 = vmatpush1.msra.mxu0 0.0
    %2399 = vmatprep.subr.mxu0 0.0
    %2400 = vmatpush1.msra.mxu0 0.0
    %2401 = vmatprep.subr.mxu0 0.0
    %2402 = vmatpush1.msra.mxu0 0.0
    %2403 = vmatprep.subr.mxu0 0.0
    %2404 = vmatpush1.msra.mxu0 0.0
    %2405 = vmatprep.subr.mxu0 0.0
    %2406 = vmatpush1.msra.mxu0 0.0
    %2407 = vmatprep.subr.mxu0 0.0
    %2408 = vmatpush1.msra.mxu0 0.0
    %2409 = vmatprep.subr.mxu0 0.0
    %2410 = vmatpush1.msra.mxu0 0.0
    %2411 = vmatprep.mubr.f32.mxu0 0.0
    %2412 = vmatmul.mubr.f32.gmra.mrb[0].mxu0 %v2345
    %v2413 = vpop.f32.mrb[0].mxu0
    %v2414 = vadd.f32 0.0, %v2413
    %v2415 = vpop.f32.mrb[0].mxu0
    %2416 = vdwg.mxu0
    %s2417 = scalar_lea.vmem %s7, 48
    %v2418 = vld [vmem:[%s2417] sm:$0xff]
    %v2419 = vld [vmem:[%s2417 + $0x8] sm:$0xff]
    %v2420 = vld [vmem:[%s2417 + $0x10] sm:$0xff]
    %v2421 = vld [vmem:[%s2417 + $0x18] sm:$0xff]
    %v2422 = vld [vmem:[%s2417 + $0x20] sm:$0xff]
    %v2423 = vld [vmem:[%s2417 + $0x28] sm:$0xff]
    %vm2424 = vcmask 130048
    %v2426 = vsel %vm2424, %v2414, 0
    %2428 = vmatprep.subr.mxu0 %v2419
    %2429 = vmatpush1.msra.mxu0 %v2418
    %2430 = vmatprep.subr.mxu0 %v2422
    %2431 = vmatpush1.msra.mxu0 %v2421
    %2432 = vmatprep.subr.mxu0 0.0
    %2433 = vmatpush1.msra.mxu0 0.0
    %2434 = vmatprep.subr.mxu0 0.0
    %2435 = vmatpush1.msra.mxu0 0.0
    %2436 = vmatprep.subr.mxu0 0.0
    %2437 = vmatpush1.msra.mxu0 0.0
    %2438 = vmatprep.subr.mxu0 0.0
    %2439 = vmatpush1.msra.mxu0 0.0
    %2440 = vmatprep.subr.mxu0 0.0
    %2441 = vmatpush1.msra.mxu0 0.0
    %2442 = vmatprep.subr.mxu0 0.0
    %2443 = vmatpush1.msra.mxu0 0.0
    %2444 = vmatprep.subr.mxu0 0.0
    %2445 = vmatpush1.msra.mxu0 0.0
    %2446 = vmatprep.subr.mxu0 0.0
    %2447 = vmatpush1.msra.mxu0 0.0
    %2448 = vmatprep.subr.mxu0 0.0
    %2449 = vmatpush1.msra.mxu0 0.0
    %2450 = vmatprep.subr.mxu0 0.0
    %2451 = vmatpush1.msra.mxu0 0.0
    %2452 = vmatprep.subr.mxu0 0.0
    %2453 = vmatpush1.msra.mxu0 0.0
    %2454 = vmatprep.subr.mxu0 0.0
    %2455 = vmatpush1.msra.mxu0 0.0
    %2456 = vmatprep.subr.mxu0 0.0
    %2457 = vmatpush1.msra.mxu0 0.0
    %2458 = vmatprep.subr.mxu0 0.0
    %2459 = vmatpush1.msra.mxu0 0.0
    %2460 = vmatprep.subr.mxu0 0.0
    %2461 = vmatpush1.msra.mxu0 0.0
    %2462 = vmatprep.subr.mxu0 0.0
    %2463 = vmatpush1.msra.mxu0 0.0
    %2464 = vmatprep.subr.mxu0 0.0
    %2465 = vmatpush1.msra.mxu0 0.0
    %2466 = vmatprep.subr.mxu0 0.0
    %2467 = vmatpush1.msra.mxu0 0.0
    %2468 = vmatprep.subr.mxu0 0.0
    %2469 = vmatpush1.msra.mxu0 0.0
    %2470 = vmatprep.subr.mxu0 0.0
    %2471 = vmatpush1.msra.mxu0 0.0
    %2472 = vmatprep.subr.mxu0 0.0
    %2473 = vmatpush1.msra.mxu0 0.0
    %2474 = vmatprep.subr.mxu0 0.0
    %2475 = vmatpush1.msra.mxu0 0.0
    %2476 = vmatprep.subr.mxu0 0.0
    %2477 = vmatpush1.msra.mxu0 0.0
    %2478 = vmatprep.subr.mxu0 0.0
    %2479 = vmatpush1.msra.mxu0 0.0
    %2480 = vmatprep.subr.mxu0 0.0
    %2481 = vmatpush1.msra.mxu0 0.0
    %2482 = vmatprep.subr.mxu0 0.0
    %2483 = vmatpush1.msra.mxu0 0.0
    %2484 = vmatprep.subr.mxu0 0.0
    %2485 = vmatpush1.msra.mxu0 0.0
    %2486 = vmatprep.subr.mxu0 0.0
    %2487 = vmatpush1.msra.mxu0 0.0
    %2488 = vmatprep.subr.mxu0 0.0
    %2489 = vmatpush1.msra.mxu0 0.0
    %2490 = vmatprep.subr.mxu0 0.0
    %2491 = vmatpush1.msra.mxu0 0.0
    %2492 = vmatprep.mubr.f32.mxu0 0.0
    %2493 = vmatmul.mubr.f32.gmra.mrb[0].mxu0 %v2426
    %v2494 = vpop.f32.mrb[0].mxu0
    %v2495 = vadd.f32 0.0, %v2494
    %v2496 = vpop.f32.mrb[0].mxu0
    %v2497 = vadd.f32 0.0, %v2496
    %2498 = vdwg.mxu0
    %2499 = vmatprep.subr.mxu0 0.0
    %2500 = vmatpush1.msra.mxu0 %v2420
    %2501 = vmatprep.subr.mxu0 0.0
    %2502 = vmatpush1.msra.mxu0 %v2423
    %2503 = vmatprep.subr.mxu0 0.0
    %2504 = vmatpush1.msra.mxu0 0.0
    %2505 = vmatprep.subr.mxu0 0.0
    %2506 = vmatpush1.msra.mxu0 0.0
    %2507 = vmatprep.subr.mxu0 0.0
    %2508 = vmatpush1.msra.mxu0 0.0
    %2509 = vmatprep.subr.mxu0 0.0
    %2510 = vmatpush1.msra.mxu0 0.0
    %2511 = vmatprep.subr.mxu0 0.0
    %2512 = vmatpush1.msra.mxu0 0.0
    %2513 = vmatprep.subr.mxu0 0.0
    %2514 = vmatpush1.msra.mxu0 0.0
    %2515 = vmatprep.subr.mxu0 0.0
    %2516 = vmatpush1.msra.mxu0 0.0
    %2517 = vmatprep.subr.mxu0 0.0
    %2518 = vmatpush1.msra.mxu0 0.0
    %2519 = vmatprep.subr.mxu0 0.0
    %2520 = vmatpush1.msra.mxu0 0.0
    %2521 = vmatprep.subr.mxu0 0.0
    %2522 = vmatpush1.msra.mxu0 0.0
    %2523 = vmatprep.subr.mxu0 0.0
    %2524 = vmatpush1.msra.mxu0 0.0
    %2525 = vmatprep.subr.mxu0 0.0
    %2526 = vmatpush1.msra.mxu0 0.0
    %2527 = vmatprep.subr.mxu0 0.0
    %2528 = vmatpush1.msra.mxu0 0.0
    %2529 = vmatprep.subr.mxu0 0.0
    %2530 = vmatpush1.msra.mxu0 0.0
    %2531 = vmatprep.subr.mxu0 0.0
    %2532 = vmatpush1.msra.mxu0 0.0
    %2533 = vmatprep.subr.mxu0 0.0
    %2534 = vmatpush1.msra.mxu0 0.0
    %2535 = vmatprep.subr.mxu0 0.0
    %2536 = vmatpush1.msra.mxu0 0.0
    %2537 = vmatprep.subr.mxu0 0.0
    %2538 = vmatpush1.msra.mxu0 0.0
    %2539 = vmatprep.subr.mxu0 0.0
    %2540 = vmatpush1.msra.mxu0 0.0
    %2541 = vmatprep.subr.mxu0 0.0
    %2542 = vmatpush1.msra.mxu0 0.0
    %2543 = vmatprep.subr.mxu0 0.0
    %2544 = vmatpush1.msra.mxu0 0.0
    %2545 = vmatprep.subr.mxu0 0.0
    %2546 = vmatpush1.msra.mxu0 0.0
    %2547 = vmatprep.subr.mxu0 0.0
    %2548 = vmatpush1.msra.mxu0 0.0
    %2549 = vmatprep.subr.mxu0 0.0
    %2550 = vmatpush1.msra.mxu0 0.0
    %2551 = vmatprep.subr.mxu0 0.0
    %2552 = vmatpush1.msra.mxu0 0.0
    %2553 = vmatprep.subr.mxu0 0.0
    %2554 = vmatpush1.msra.mxu0 0.0
    %2555 = vmatprep.subr.mxu0 0.0
    %2556 = vmatpush1.msra.mxu0 0.0
    %2557 = vmatprep.subr.mxu0 0.0
    %2558 = vmatpush1.msra.mxu0 0.0
    %2559 = vmatprep.subr.mxu0 0.0
    %2560 = vmatpush1.msra.mxu0 0.0
    %2561 = vmatprep.subr.mxu0 0.0
    %2562 = vmatpush1.msra.mxu0 0.0
    %2563 = vmatprep.mubr.f32.mxu0 0.0
    %2564 = vmatmul.mubr.f32.gmra.mrb[0].mxu0 %v2426
    %v2565 = vpop.f32.mrb[0].mxu0
    %v2566 = vadd.f32 0.0, %v2565
    %v2567 = vpop.f32.mrb[0].mxu0
    %2568 = vdwg.mxu0
    %v2570 = vsel %vm2424, %v2333, 0
    %2572 = vmatprep.subr.mxu0 %v2337
    %2573 = vmatpush1.msra.mxu0 %v2336
    %2574 = vmatprep.subr.mxu0 %v2340
    %2575 = vmatpush1.msra.mxu0 %v2339
    %2576 = vmatprep.subr.mxu0 0.0
    %2577 = vmatpush1.msra.mxu0 0.0
    %2578 = vmatprep.subr.mxu0 0.0
    %2579 = vmatpush1.msra.mxu0 0.0
    %2580 = vmatprep.subr.mxu0 0.0
    %2581 = vmatpush1.msra.mxu0 0.0
    %2582 = vmatprep.subr.mxu0 0.0
    %2583 = vmatpush1.msra.mxu0 0.0
    %2584 = vmatprep.subr.mxu0 0.0
    %2585 = vmatpush1.msra.mxu0 0.0
    %2586 = vmatprep.subr.mxu0 0.0
    %2587 = vmatpush1.msra.mxu0 0.0
    %2588 = vmatprep.subr.mxu0 0.0
    %2589 = vmatpush1.msra.mxu0 0.0
    %2590 = vmatprep.subr.mxu0 0.0
    %2591 = vmatpush1.msra.mxu0 0.0
    %2592 = vmatprep.subr.mxu0 0.0
    %2593 = vmatpush1.msra.mxu0 0.0
    %2594 = vmatprep.subr.mxu0 0.0
    %2595 = vmatpush1.msra.mxu0 0.0
    %2596 = vmatprep.subr.mxu0 0.0
    %2597 = vmatpush1.msra.mxu0 0.0
    %2598 = vmatprep.subr.mxu0 0.0
    %2599 = vmatpush1.msra.mxu0 0.0
    %2600 = vmatprep.subr.mxu0 0.0
    %2601 = vmatpush1.msra.mxu0 0.0
    %2602 = vmatprep.subr.mxu0 0.0
    %2603 = vmatpush1.msra.mxu0 0.0
    %2604 = vmatprep.subr.mxu0 0.0
    %2605 = vmatpush1.msra.mxu0 0.0
    %2606 = vmatprep.subr.mxu0 0.0
    %2607 = vmatpush1.msra.mxu0 0.0
    %2608 = vmatprep.subr.mxu0 0.0
    %2609 = vmatpush1.msra.mxu0 0.0
    %2610 = vmatprep.subr.mxu0 0.0
    %2611 = vmatpush1.msra.mxu0 0.0
    %2612 = vmatprep.subr.mxu0 0.0
    %2613 = vmatpush1.msra.mxu0 0.0
    %2614 = vmatprep.subr.mxu0 0.0
    %2615 = vmatpush1.msra.mxu0 0.0
    %2616 = vmatprep.subr.mxu0 0.0
    %2617 = vmatpush1.msra.mxu0 0.0
    %2618 = vmatprep.subr.mxu0 0.0
    %2619 = vmatpush1.msra.mxu0 0.0
    %2620 = vmatprep.subr.mxu0 0.0
    %2621 = vmatpush1.msra.mxu0 0.0
    %2622 = vmatprep.subr.mxu0 0.0
    %2623 = vmatpush1.msra.mxu0 0.0
    %2624 = vmatprep.subr.mxu0 0.0
    %2625 = vmatpush1.msra.mxu0 0.0
    %2626 = vmatprep.subr.mxu0 0.0
    %2627 = vmatpush1.msra.mxu0 0.0
    %2628 = vmatprep.subr.mxu0 0.0
    %2629 = vmatpush1.msra.mxu0 0.0
    %2630 = vmatprep.subr.mxu0 0.0
    %2631 = vmatpush1.msra.mxu0 0.0
    %2632 = vmatprep.subr.mxu0 0.0
    %2633 = vmatpush1.msra.mxu0 0.0
    %2634 = vmatprep.subr.mxu0 0.0
    %2635 = vmatpush1.msra.mxu0 0.0
    %2636 = vmatprep.mubr.f32.mxu0 0.0
    %2637 = vmatmul.mubr.f32.gmra.mrb[0].mxu0 %v2570
    %v2638 = vpop.f32.mrb[0].mxu0
    %v2639 = vadd.f32 %v2495, %v2638
    %v2640 = vpop.f32.mrb[0].mxu0
    %v2641 = vadd.f32 %v2497, %v2640
    %2642 = vdwg.mxu0
    %2643 = vmatprep.subr.mxu0 0.0
    %2644 = vmatpush1.msra.mxu0 %v2338
    %2645 = vmatprep.subr.mxu0 0.0
    %2646 = vmatpush1.msra.mxu0 %v2341
    %2647 = vmatprep.subr.mxu0 0.0
    %2648 = vmatpush1.msra.mxu0 0.0
    %2649 = vmatprep.subr.mxu0 0.0
    %2650 = vmatpush1.msra.mxu0 0.0
    %2651 = vmatprep.subr.mxu0 0.0
    %2652 = vmatpush1.msra.mxu0 0.0
    %2653 = vmatprep.subr.mxu0 0.0
    %2654 = vmatpush1.msra.mxu0 0.0
    %2655 = vmatprep.subr.mxu0 0.0
    %2656 = vmatpush1.msra.mxu0 0.0
    %2657 = vmatprep.subr.mxu0 0.0
    %2658 = vmatpush1.msra.mxu0 0.0
    %2659 = vmatprep.subr.mxu0 0.0
    %2660 = vmatpush1.msra.mxu0 0.0
    %2661 = vmatprep.subr.mxu0 0.0
    %2662 = vmatpush1.msra.mxu0 0.0
    %2663 = vmatprep.subr.mxu0 0.0
    %2664 = vmatpush1.msra.mxu0 0.0
    %2665 = vmatprep.subr.mxu0 0.0
    %2666 = vmatpush1.msra.mxu0 0.0
    %2667 = vmatprep.subr.mxu0 0.0
    %2668 = vmatpush1.msra.mxu0 0.0
    %2669 = vmatprep.subr.mxu0 0.0
    %2670 = vmatpush1.msra.mxu0 0.0
    %2671 = vmatprep.subr.mxu0 0.0
    %2672 = vmatpush1.msra.mxu0 0.0
    %2673 = vmatprep.subr.mxu0 0.0
    %2674 = vmatpush1.msra.mxu0 0.0
    %2675 = vmatprep.subr.mxu0 0.0
    %2676 = vmatpush1.msra.mxu0 0.0
    %2677 = vmatprep.subr.mxu0 0.0
    %2678 = vmatpush1.msra.mxu0 0.0
    %2679 = vmatprep.subr.mxu0 0.0
    %2680 = vmatpush1.msra.mxu0 0.0
    %2681 = vmatprep.subr.mxu0 0.0
    %2682 = vmatpush1.msra.mxu0 0.0
    %2683 = vmatprep.subr.mxu0 0.0
    %2684 = vmatpush1.msra.mxu0 0.0
    %2685 = vmatprep.subr.mxu0 0.0
    %2686 = vmatpush1.msra.mxu0 0.0
    %2687 = vmatprep.subr.mxu0 0.0
    %2688 = vmatpush1.msra.mxu0 0.0
    %2689 = vmatprep.subr.mxu0 0.0
    %2690 = vmatpush1.msra.mxu0 0.0
    %2691 = vmatprep.subr.mxu0 0.0
    %2692 = vmatpush1.msra.mxu0 0.0
    %2693 = vmatprep.subr.mxu0 0.0
    %2694 = vmatpush1.msra.mxu0 0.0
    %2695 = vmatprep.subr.mxu0 0.0
    %2696 = vmatpush1.msra.mxu0 0.0
    %2697 = vmatprep.subr.mxu0 0.0
    %2698 = vmatpush1.msra.mxu0 0.0
    %2699 = vmatprep.subr.mxu0 0.0
    %2700 = vmatpush1.msra.mxu0 0.0
    %2701 = vmatprep.subr.mxu0 0.0
    %2702 = vmatpush1.msra.mxu0 0.0
    %2703 = vmatprep.subr.mxu0 0.0
    %2704 = vmatpush1.msra.mxu0 0.0
    %2705 = vmatprep.subr.mxu0 0.0
    %2706 = vmatpush1.msra.mxu0 0.0
    %2707 = vmatprep.mubr.f32.mxu0 0.0
    %2708 = vmatmul.mubr.f32.gmra.mrb[0].mxu0 %v2570
    %v2709 = vpop.f32.mrb[0].mxu0
    %v2710 = vadd.f32 %v2566, %v2709
    %v2711 = vpop.f32.mrb[0].mxu0
    %2712 = vdwg.mxu0
    %s2713 = scalar_lea.vmem %s6, 16
    %v2714 = vld [vmem:[%s2713] sm:$0xff]
    %v2716 = vsel %vm2262, %v2714, 0
    %2718 = vmatprep.subr.mxu0 0.0
    %2719 = vmatpush1.msra.mxu0 %v2257
    %2720 = vmatprep.subr.mxu0 0.0
    %2721 = vmatpush1.msra.mxu0 %v2258
    %2722 = vmatprep.subr.mxu0 0.0
    %2723 = vmatpush1.msra.mxu0 %v2259
    %2724 = vmatprep.subr.mxu0 0.0
    %2725 = vmatpush1.msra.mxu0 %v2260
    %2726 = vmatprep.subr.mxu0 0.0
    %2727 = vmatpush1.msra.mxu0 0.0
    %2728 = vmatprep.subr.mxu0 0.0
    %2729 = vmatpush1.msra.mxu0 0.0
    %2730 = vmatprep.subr.mxu0 0.0
    %2731 = vmatpush1.msra.mxu0 0.0
    %2732 = vmatprep.subr.mxu0 0.0
    %2733 = vmatpush1.msra.mxu0 0.0
    %2734 = vmatprep.subr.mxu0 0.0
    %2735 = vmatpush1.msra.mxu0 0.0
    %2736 = vmatprep.subr.mxu0 0.0
    %2737 = vmatpush1.msra.mxu0 0.0
    %2738 = vmatprep.subr.mxu0 0.0
    %2739 = vmatpush1.msra.mxu0 0.0
    %2740 = vmatprep.subr.mxu0 0.0
    %2741 = vmatpush1.msra.mxu0 0.0
    %2742 = vmatprep.subr.mxu0 0.0
    %2743 = vmatpush1.msra.mxu0 0.0
    %2744 = vmatprep.subr.mxu0 0.0
    %2745 = vmatpush1.msra.mxu0 0.0
    %2746 = vmatprep.subr.mxu0 0.0
    %2747 = vmatpush1.msra.mxu0 0.0
    %2748 = vmatprep.subr.mxu0 0.0
    %2749 = vmatpush1.msra.mxu0 0.0
    %2750 = vmatprep.subr.mxu0 0.0
    %2751 = vmatpush1.msra.mxu0 0.0
    %2752 = vmatprep.subr.mxu0 0.0
    %2753 = vmatpush1.msra.mxu0 0.0
    %2754 = vmatprep.subr.mxu0 0.0
    %2755 = vmatpush1.msra.mxu0 0.0
    %2756 = vmatprep.subr.mxu0 0.0
    %2757 = vmatpush1.msra.mxu0 0.0
    %2758 = vmatprep.subr.mxu0 0.0
    %2759 = vmatpush1.msra.mxu0 0.0
    %2760 = vmatprep.subr.mxu0 0.0
    %2761 = vmatpush1.msra.mxu0 0.0
    %2762 = vmatprep.subr.mxu0 0.0
    %2763 = vmatpush1.msra.mxu0 0.0
    %2764 = vmatprep.subr.mxu0 0.0
    %2765 = vmatpush1.msra.mxu0 0.0
    %2766 = vmatprep.subr.mxu0 0.0
    %2767 = vmatpush1.msra.mxu0 0.0
    %2768 = vmatprep.subr.mxu0 0.0
    %2769 = vmatpush1.msra.mxu0 0.0
    %2770 = vmatprep.subr.mxu0 0.0
    %2771 = vmatpush1.msra.mxu0 0.0
    %2772 = vmatprep.subr.mxu0 0.0
    %2773 = vmatpush1.msra.mxu0 0.0
    %2774 = vmatprep.subr.mxu0 0.0
    %2775 = vmatpush1.msra.mxu0 0.0
    %2776 = vmatprep.subr.mxu0 0.0
    %2777 = vmatpush1.msra.mxu0 0.0
    %2778 = vmatprep.subr.mxu0 0.0
    %2779 = vmatpush1.msra.mxu0 0.0
    %2780 = vmatprep.subr.mxu0 0.0
    %2781 = vmatpush1.msra.mxu0 0.0
    %2782 = vmatprep.mubr.f32.mxu0 0.0
    %2783 = vmatmul.mubr.f32.gmra.mrb[0].mxu0 %v2716
    %v2784 = vpop.f32.mrb[0].mxu0
    %v2785 = vadd.f32 0.0, %v2784
    %v2786 = vpop.f32.mrb[0].mxu0
    %2787 = vdwg.mxu0
    %s2788 = scalar_lea.vmem %s7, 96
    %v2789 = vld [vmem:[%s2788] sm:$0xff]
    %v2790 = vld [vmem:[%s2788 + $0x8] sm:$0xff]
    %v2791 = vld [vmem:[%s2788 + $0x10] sm:$0xff]
    %v2792 = vld [vmem:[%s2788 + $0x18] sm:$0xff]
    %v2793 = vld [vmem:[%s2788 + $0x20] sm:$0xff]
    %v2794 = vld [vmem:[%s2788 + $0x28] sm:$0xff]
    %v2796 = vsel %vm2424, %v2785, 0
    %2798 = vmatprep.subr.mxu0 %v2790
    %2799 = vmatpush1.msra.mxu0 %v2789
    %2800 = vmatprep.subr.mxu0 %v2793
    %2801 = vmatpush1.msra.mxu0 %v2792
    %2802 = vmatprep.subr.mxu0 0.0
    %2803 = vmatpush1.msra.mxu0 0.0
    %2804 = vmatprep.subr.mxu0 0.0
    %2805 = vmatpush1.msra.mxu0 0.0
    %2806 = vmatprep.subr.mxu0 0.0
    %2807 = vmatpush1.msra.mxu0 0.0
    %2808 = vmatprep.subr.mxu0 0.0
    %2809 = vmatpush1.msra.mxu0 0.0
    %2810 = vmatprep.subr.mxu0 0.0
    %2811 = vmatpush1.msra.mxu0 0.0
    %2812 = vmatprep.subr.mxu0 0.0
    %2813 = vmatpush1.msra.mxu0 0.0
    %2814 = vmatprep.subr.mxu0 0.0
    %2815 = vmatpush1.msra.mxu0 0.0
    %2816 = vmatprep.subr.mxu0 0.0
    %2817 = vmatpush1.msra.mxu0 0.0
    %2818 = vmatprep.subr.mxu0 0.0
    %2819 = vmatpush1.msra.mxu0 0.0
    %2820 = vmatprep.subr.mxu0 0.0
    %2821 = vmatpush1.msra.mxu0 0.0
    %2822 = vmatprep.subr.mxu0 0.0
    %2823 = vmatpush1.msra.mxu0 0.0
    %2824 = vmatprep.subr.mxu0 0.0
    %2825 = vmatpush1.msra.mxu0 0.0
    %2826 = vmatprep.subr.mxu0 0.0
    %2827 = vmatpush1.msra.mxu0 0.0
    %2828 = vmatprep.subr.mxu0 0.0
    %2829 = vmatpush1.msra.mxu0 0.0
    %2830 = vmatprep.subr.mxu0 0.0
    %2831 = vmatpush1.msra.mxu0 0.0
    %2832 = vmatprep.subr.mxu0 0.0
    %2833 = vmatpush1.msra.mxu0 0.0
    %2834 = vmatprep.subr.mxu0 0.0
    %2835 = vmatpush1.msra.mxu0 0.0
    %2836 = vmatprep.subr.mxu0 0.0
    %2837 = vmatpush1.msra.mxu0 0.0
    %2838 = vmatprep.subr.mxu0 0.0
    %2839 = vmatpush1.msra.mxu0 0.0
    %2840 = vmatprep.subr.mxu0 0.0
    %2841 = vmatpush1.msra.mxu0 0.0
    %2842 = vmatprep.subr.mxu0 0.0
    %2843 = vmatpush1.msra.mxu0 0.0
    %2844 = vmatprep.subr.mxu0 0.0
    %2845 = vmatpush1.msra.mxu0 0.0
    %2846 = vmatprep.subr.mxu0 0.0
    %2847 = vmatpush1.msra.mxu0 0.0
    %2848 = vmatprep.subr.mxu0 0.0
    %2849 = vmatpush1.msra.mxu0 0.0
    %2850 = vmatprep.subr.mxu0 0.0
    %2851 = vmatpush1.msra.mxu0 0.0
    %2852 = vmatprep.subr.mxu0 0.0
    %2853 = vmatpush1.msra.mxu0 0.0
    %2854 = vmatprep.subr.mxu0 0.0
    %2855 = vmatpush1.msra.mxu0 0.0
    %2856 = vmatprep.subr.mxu0 0.0
    %2857 = vmatpush1.msra.mxu0 0.0
    %2858 = vmatprep.subr.mxu0 0.0
    %2859 = vmatpush1.msra.mxu0 0.0
    %2860 = vmatprep.subr.mxu0 0.0
    %2861 = vmatpush1.msra.mxu0 0.0
    %2862 = vmatprep.mubr.f32.mxu0 0.0
    %2863 = vmatmul.mubr.f32.gmra.mrb[0].mxu0 %v2796
    %v2864 = vpop.f32.mrb[0].mxu0
    %v2865 = vadd.f32 0.0, %v2864
    %v2866 = vpop.f32.mrb[0].mxu0
    %v2867 = vadd.f32 0.0, %v2866
    %2868 = vdwg.mxu0
    %2869 = vmatprep.subr.mxu0 0.0
    %2870 = vmatpush1.msra.mxu0 %v2791
    %2871 = vmatprep.subr.mxu0 0.0
    %2872 = vmatpush1.msra.mxu0 %v2794
    %2873 = vmatprep.subr.mxu0 0.0
    %2874 = vmatpush1.msra.mxu0 0.0
    %2875 = vmatprep.subr.mxu0 0.0
    %2876 = vmatpush1.msra.mxu0 0.0
    %2877 = vmatprep.subr.mxu0 0.0
    %2878 = vmatpush1.msra.mxu0 0.0
    %2879 = vmatprep.subr.mxu0 0.0
    %2880 = vmatpush1.msra.mxu0 0.0
    %2881 = vmatprep.subr.mxu0 0.0
    %2882 = vmatpush1.msra.mxu0 0.0
    %2883 = vmatprep.subr.mxu0 0.0
    %2884 = vmatpush1.msra.mxu0 0.0
    %2885 = vmatprep.subr.mxu0 0.0
    %2886 = vmatpush1.msra.mxu0 0.0
    %2887 = vmatprep.subr.mxu0 0.0
    %2888 = vmatpush1.msra.mxu0 0.0
    %2889 = vmatprep.subr.mxu0 0.0
    %2890 = vmatpush1.msra.mxu0 0.0
    %2891 = vmatprep.subr.mxu0 0.0
    %2892 = vmatpush1.msra.mxu0 0.0
    %2893 = vmatprep.subr.mxu0 0.0
    %2894 = vmatpush1.msra.mxu0 0.0
    %2895 = vmatprep.subr.mxu0 0.0
    %2896 = vmatpush1.msra.mxu0 0.0
    %2897 = vmatprep.subr.mxu0 0.0
    %2898 = vmatpush1.msra.mxu0 0.0
    %2899 = vmatprep.subr.mxu0 0.0
    %2900 = vmatpush1.msra.mxu0 0.0
    %2901 = vmatprep.subr.mxu0 0.0
    %2902 = vmatpush1.msra.mxu0 0.0
    %2903 = vmatprep.subr.mxu0 0.0
    %2904 = vmatpush1.msra.mxu0 0.0
    %2905 = vmatprep.subr.mxu0 0.0
    %2906 = vmatpush1.msra.mxu0 0.0
    %2907 = vmatprep.subr.mxu0 0.0
    %2908 = vmatpush1.msra.mxu0 0.0
    %2909 = vmatprep.subr.mxu0 0.0
    %2910 = vmatpush1.msra.mxu0 0.0
    %2911 = vmatprep.subr.mxu0 0.0
    %2912 = vmatpush1.msra.mxu0 0.0
    %2913 = vmatprep.subr.mxu0 0.0
    %2914 = vmatpush1.msra.mxu0 0.0
    %2915 = vmatprep.subr.mxu0 0.0
    %2916 = vmatpush1.msra.mxu0 0.0
    %2917 = vmatprep.subr.mxu0 0.0
    %2918 = vmatpush1.msra.mxu0 0.0
    %2919 = vmatprep.subr.mxu0 0.0
    %2920 = vmatpush1.msra.mxu0 0.0
    %2921 = vmatprep.subr.mxu0 0.0
    %2922 = vmatpush1.msra.mxu0 0.0
    %2923 = vmatprep.subr.mxu0 0.0
    %2924 = vmatpush1.msra.mxu0 0.0
    %2925 = vmatprep.subr.mxu0 0.0
    %2926 = vmatpush1.msra.mxu0 0.0
    %2927 = vmatprep.subr.mxu0 0.0
    %2928 = vmatpush1.msra.mxu0 0.0
    %2929 = vmatprep.subr.mxu0 0.0
    %2930 = vmatpush1.msra.mxu0 0.0
    %2931 = vmatprep.subr.mxu0 0.0
    %2932 = vmatpush1.msra.mxu0 0.0
    %2933 = vmatprep.mubr.f32.mxu0 0.0
    %2934 = vmatmul.mubr.f32.gmra.mrb[0].mxu0 %v2796
    %v2935 = vpop.f32.mrb[0].mxu0
    %v2936 = vadd.f32 0.0, %v2935
    %v2937 = vpop.f32.mrb[0].mxu0
    %2938 = vdwg.mxu0
    %v2939 = vadd.f32 %v2639, %v2865
    %v2940 = vadd.f32 %v2641, %v2867
    %v2941 = vadd.f32 %v2710, %v2936
    %s2942 = scalar_lea.vmem %s6, 24
    %v2943 = vld [vmem:[%s2942] sm:$0xff]
    %v2945 = vsel %vm2262, %v2943, 0
    %2947 = vmatprep.subr.mxu0 0.0
    %2948 = vmatpush1.msra.mxu0 %v2257
    %2949 = vmatprep.subr.mxu0 0.0
    %2950 = vmatpush1.msra.mxu0 %v2258
    %2951 = vmatprep.subr.mxu0 0.0
    %2952 = vmatpush1.msra.mxu0 %v2259
    %2953 = vmatprep.subr.mxu0 0.0
    %2954 = vmatpush1.msra.mxu0 %v2260
    %2955 = vmatprep.subr.mxu0 0.0
    %2956 = vmatpush1.msra.mxu0 0.0
    %2957 = vmatprep.subr.mxu0 0.0
    %2958 = vmatpush1.msra.mxu0 0.0
    %2959 = vmatprep.subr.mxu0 0.0
    %2960 = vmatpush1.msra.mxu0 0.0
    %2961 = vmatprep.subr.mxu0 0.0
    %2962 = vmatpush1.msra.mxu0 0.0
    %2963 = vmatprep.subr.mxu0 0.0
    %2964 = vmatpush1.msra.mxu0 0.0
    %2965 = vmatprep.subr.mxu0 0.0
    %2966 = vmatpush1.msra.mxu0 0.0
    %2967 = vmatprep.subr.mxu0 0.0
    %2968 = vmatpush1.msra.mxu0 0.0
    %2969 = vmatprep.subr.mxu0 0.0
    %2970 = vmatpush1.msra.mxu0 0.0
    %2971 = vmatprep.subr.mxu0 0.0
    %2972 = vmatpush1.msra.mxu0 0.0
    %2973 = vmatprep.subr.mxu0 0.0
    %2974 = vmatpush1.msra.mxu0 0.0
    %2975 = vmatprep.subr.mxu0 0.0
    %2976 = vmatpush1.msra.mxu0 0.0
    %2977 = vmatprep.subr.mxu0 0.0
    %2978 = vmatpush1.msra.mxu0 0.0
    %2979 = vmatprep.subr.mxu0 0.0
    %2980 = vmatpush1.msra.mxu0 0.0
    %2981 = vmatprep.subr.mxu0 0.0
    %2982 = vmatpush1.msra.mxu0 0.0
    %2983 = vmatprep.subr.mxu0 0.0
    %2984 = vmatpush1.msra.mxu0 0.0
    %2985 = vmatprep.subr.mxu0 0.0
    %2986 = vmatpush1.msra.mxu0 0.0
    %2987 = vmatprep.subr.mxu0 0.0
    %2988 = vmatpush1.msra.mxu0 0.0
    %2989 = vmatprep.subr.mxu0 0.0
    %2990 = vmatpush1.msra.mxu0 0.0
    %2991 = vmatprep.subr.mxu0 0.0
    %2992 = vmatpush1.msra.mxu0 0.0
    %2993 = vmatprep.subr.mxu0 0.0
    %2994 = vmatpush1.msra.mxu0 0.0
    %2995 = vmatprep.subr.mxu0 0.0
    %2996 = vmatpush1.msra.mxu0 0.0
    %2997 = vmatprep.subr.mxu0 0.0
    %2998 = vmatpush1.msra.mxu0 0.0
    %2999 = vmatprep.subr.mxu0 0.0
    %3000 = vmatpush1.msra.mxu0 0.0
    %3001 = vmatprep.subr.mxu0 0.0
    %3002 = vmatpush1.msra.mxu0 0.0
    %3003 = vmatprep.subr.mxu0 0.0
    %3004 = vmatpush1.msra.mxu0 0.0
    %3005 = vmatprep.subr.mxu0 0.0
    %3006 = vmatpush1.msra.mxu0 0.0
    %3007 = vmatprep.subr.mxu0 0.0
    %3008 = vmatpush1.msra.mxu0 0.0
    %3009 = vmatprep.subr.mxu0 0.0
    %3010 = vmatpush1.msra.mxu0 0.0
    %3011 = vmatprep.mubr.f32.mxu0 0.0
    %3012 = vmatmul.mubr.f32.gmra.mrb[0].mxu0 %v2945
    %v3013 = vpop.f32.mrb[0].mxu0
    %v3014 = vadd.f32 0.0, %v3013
    %v3015 = vpop.f32.mrb[0].mxu0
    %3016 = vdwg.mxu0
    %s3017 = scalar_lea.vmem %s7, 144
    %v3018 = vld [vmem:[%s3017] sm:$0xff]
    %v3019 = vld [vmem:[%s3017 + $0x8] sm:$0xff]
    %v3020 = vld [vmem:[%s3017 + $0x10] sm:$0xff]
    %v3021 = vld [vmem:[%s3017 + $0x18] sm:$0xff]
    %v3022 = vld [vmem:[%s3017 + $0x20] sm:$0xff]
    %v3023 = vld [vmem:[%s3017 + $0x28] sm:$0xff]
    %v3025 = vsel %vm2424, %v3014, 0
    %3027 = vmatprep.subr.mxu0 %v3019
    %3028 = vmatpush1.msra.mxu0 %v3018
    %3029 = vmatprep.subr.mxu0 %v3022
    %3030 = vmatpush1.msra.mxu0 %v3021
    %3031 = vmatprep.subr.mxu0 0.0
    %3032 = vmatpush1.msra.mxu0 0.0
    %3033 = vmatprep.subr.mxu0 0.0
    %3034 = vmatpush1.msra.mxu0 0.0
    %3035 = vmatprep.subr.mxu0 0.0
    %3036 = vmatpush1.msra.mxu0 0.0
    %3037 = vmatprep.subr.mxu0 0.0
    %3038 = vmatpush1.msra.mxu0 0.0
    %3039 = vmatprep.subr.mxu0 0.0
    %3040 = vmatpush1.msra.mxu0 0.0
    %3041 = vmatprep.subr.mxu0 0.0
    %3042 = vmatpush1.msra.mxu0 0.0
    %3043 = vmatprep.subr.mxu0 0.0
    %3044 = vmatpush1.msra.mxu0 0.0
    %3045 = vmatprep.subr.mxu0 0.0
    %3046 = vmatpush1.msra.mxu0 0.0
    %3047 = vmatprep.subr.mxu0 0.0
    %3048 = vmatpush1.msra.mxu0 0.0
    %3049 = vmatprep.subr.mxu0 0.0
    %3050 = vmatpush1.msra.mxu0 0.0
    %3051 = vmatprep.subr.mxu0 0.0
    %3052 = vmatpush1.msra.mxu0 0.0
    %3053 = vmatprep.subr.mxu0 0.0
    %3054 = vmatpush1.msra.mxu0 0.0
    %3055 = vmatprep.subr.mxu0 0.0
    %3056 = vmatpush1.msra.mxu0 0.0
    %3057 = vmatprep.subr.mxu0 0.0
    %3058 = vmatpush1.msra.mxu0 0.0
    %3059 = vmatprep.subr.mxu0 0.0
    %3060 = vmatpush1.msra.mxu0 0.0
    %3061 = vmatprep.subr.mxu0 0.0
    %3062 = vmatpush1.msra.mxu0 0.0
    %3063 = vmatprep.subr.mxu0 0.0
    %3064 = vmatpush1.msra.mxu0 0.0
    %3065 = vmatprep.subr.mxu0 0.0
    %3066 = vmatpush1.msra.mxu0 0.0
    %3067 = vmatprep.subr.mxu0 0.0
    %3068 = vmatpush1.msra.mxu0 0.0
    %3069 = vmatprep.subr.mxu0 0.0
    %3070 = vmatpush1.msra.mxu0 0.0
    %3071 = vmatprep.subr.mxu0 0.0
    %3072 = vmatpush1.msra.mxu0 0.0
    %3073 = vmatprep.subr.mxu0 0.0
    %3074 = vmatpush1.msra.mxu0 0.0
    %3075 = vmatprep.subr.mxu0 0.0
    %3076 = vmatpush1.msra.mxu0 0.0
    %3077 = vmatprep.subr.mxu0 0.0
    %3078 = vmatpush1.msra.mxu0 0.0
    %3079 = vmatprep.subr.mxu0 0.0
    %3080 = vmatpush1.msra.mxu0 0.0
    %3081 = vmatprep.subr.mxu0 0.0
    %3082 = vmatpush1.msra.mxu0 0.0
    %3083 = vmatprep.subr.mxu0 0.0
    %3084 = vmatpush1.msra.mxu0 0.0
    %3085 = vmatprep.subr.mxu0 0.0
    %3086 = vmatpush1.msra.mxu0 0.0
    %3087 = vmatprep.subr.mxu0 0.0
    %3088 = vmatpush1.msra.mxu0 0.0
    %3089 = vmatprep.subr.mxu0 0.0
    %3090 = vmatpush1.msra.mxu0 0.0
    %3091 = vmatprep.mubr.f32.mxu0 0.0
    %3092 = vmatmul.mubr.f32.gmra.mrb[0].mxu0 %v3025
    %v3093 = vpop.f32.mrb[0].mxu0
    %v3094 = vadd.f32 0.0, %v3093
    %v3095 = vpop.f32.mrb[0].mxu0
    %v3096 = vadd.f32 0.0, %v3095
    %3097 = vdwg.mxu0
    %3098 = vmatprep.subr.mxu0 0.0
    %3099 = vmatpush1.msra.mxu0 %v3020
    %3100 = vmatprep.subr.mxu0 0.0
    %3101 = vmatpush1.msra.mxu0 %v3023
    %3102 = vmatprep.subr.mxu0 0.0
    %3103 = vmatpush1.msra.mxu0 0.0
    %3104 = vmatprep.subr.mxu0 0.0
    %3105 = vmatpush1.msra.mxu0 0.0
    %3106 = vmatprep.subr.mxu0 0.0
    %3107 = vmatpush1.msra.mxu0 0.0
    %3108 = vmatprep.subr.mxu0 0.0
    %3109 = vmatpush1.msra.mxu0 0.0
    %3110 = vmatprep.subr.mxu0 0.0
    %3111 = vmatpush1.msra.mxu0 0.0
    %3112 = vmatprep.subr.mxu0 0.0
    %3113 = vmatpush1.msra.mxu0 0.0
    %3114 = vmatprep.subr.mxu0 0.0
    %3115 = vmatpush1.msra.mxu0 0.0
    %3116 = vmatprep.subr.mxu0 0.0
    %3117 = vmatpush1.msra.mxu0 0.0
    %3118 = vmatprep.subr.mxu0 0.0
    %3119 = vmatpush1.msra.mxu0 0.0
    %3120 = vmatprep.subr.mxu0 0.0
    %3121 = vmatpush1.msra.mxu0 0.0
    %3122 = vmatprep.subr.mxu0 0.0
    %3123 = vmatpush1.msra.mxu0 0.0
    %3124 = vmatprep.subr.mxu0 0.0
    %3125 = vmatpush1.msra.mxu0 0.0
    %3126 = vmatprep.subr.mxu0 0.0
    %3127 = vmatpush1.msra.mxu0 0.0
    %3128 = vmatprep.subr.mxu0 0.0
    %3129 = vmatpush1.msra.mxu0 0.0
    %3130 = vmatprep.subr.mxu0 0.0
    %3131 = vmatpush1.msra.mxu0 0.0
    %3132 = vmatprep.subr.mxu0 0.0
    %3133 = vmatpush1.msra.mxu0 0.0
    %3134 = vmatprep.subr.mxu0 0.0
    %3135 = vmatpush1.msra.mxu0 0.0
    %3136 = vmatprep.subr.mxu0 0.0
    %3137 = vmatpush1.msra.mxu0 0.0
    %3138 = vmatprep.subr.mxu0 0.0
    %3139 = vmatpush1.msra.mxu0 0.0
    %3140 = vmatprep.subr.mxu0 0.0
    %3141 = vmatpush1.msra.mxu0 0.0
    %3142 = vmatprep.subr.mxu0 0.0
    %3143 = vmatpush1.msra.mxu0 0.0
    %3144 = vmatprep.subr.mxu0 0.0
    %3145 = vmatpush1.msra.mxu0 0.0
    %3146 = vmatprep.subr.mxu0 0.0
    %3147 = vmatpush1.msra.mxu0 0.0
    %3148 = vmatprep.subr.mxu0 0.0
    %3149 = vmatpush1.msra.mxu0 0.0
    %3150 = vmatprep.subr.mxu0 0.0
    %3151 = vmatpush1.msra.mxu0 0.0
    %3152 = vmatprep.subr.mxu0 0.0
    %3153 = vmatpush1.msra.mxu0 0.0
    %3154 = vmatprep.subr.mxu0 0.0
    %3155 = vmatpush1.msra.mxu0 0.0
    %3156 = vmatprep.subr.mxu0 0.0
    %3157 = vmatpush1.msra.mxu0 0.0
    %3158 = vmatprep.subr.mxu0 0.0
    %3159 = vmatpush1.msra.mxu0 0.0
    %3160 = vmatprep.subr.mxu0 0.0
    %3161 = vmatpush1.msra.mxu0 0.0
    %3162 = vmatprep.mubr.f32.mxu0 0.0
    %3163 = vmatmul.mubr.f32.gmra.mrb[0].mxu0 %v3025
    %v3164 = vpop.f32.mrb[0].mxu0
    %v3165 = vadd.f32 0.0, %v3164
    %v3166 = vpop.f32.mrb[0].mxu0
    %3167 = vdwg.mxu0
    %v3168 = vadd.f32 %v2939, %v3094
    %v3169 = vadd.f32 %v2940, %v3096
    %v3170 = vadd.f32 %v2941, %v3165
    %v3171 = vld [vmem:[%s8] sm:$0x7]
    %v3173 = vlaneseq
    %v3174 = vshrl.u32 %v3173, 7
    %v3175 = vsub.s32 0, %v3174
    %v3176 = vrot.slane %v3171, %v3175
    %v3177 = vlaneseq
    %v3178 = vshrl.u32 %v3177, 7
    %v3179 = vsub.s32 1, %v3178
    %v3180 = vrot.slane %v3171, %v3179
    %v3181 = vlaneseq
    %v3182 = vshrl.u32 %v3181, 7
    %v3183 = vsub.s32 2, %v3182
    %v3184 = vrot.slane %v3171, %v3183
    %v3188 = vadd.f32 %v3168, %v3176
    %v3189 = vadd.f32 %v3169, %v3180
    %v3190 = vadd.f32 %v3170, %v3184
    %vm3191 = vcmp.ge.f32.partialorder %v3188, 0.0
    %vm3192 = vcmp.ge.f32.partialorder %v3189, 0.0
    %vm3193 = vcmp.ge.f32.partialorder %v3190, 0.0
    %v3194 = vmul.f32 %v3188, 0.01
    %v3195 = vmul.f32 %v3189, 0.01
    %v3196 = vmul.f32 %v3190, 0.01
    %v3197 = vsel %vm3191, %v3188, %v3194
    %v3198 = vsel %vm3192, %v3189, %v3195
    %v3199 = vsel %vm3193, %v3190, %v3196
    %v3200 = vld [vmem:[%s9] sm:$0x3]
    %v3202 = vsel %vm592, %v3200, 0
    %3204 = vmatprep.subr.mxu0 %v3198
    %3205 = vmatpush1.msra.mxu0 %v3197
    %3206 = vmatprep.subr.mxu0 0.0
    %3207 = vmatpush1.msra.mxu0 0.0
    %3208 = vmatprep.subr.mxu0 0.0
    %3209 = vmatpush1.msra.mxu0 0.0
    %3210 = vmatprep.subr.mxu0 0.0
    %3211 = vmatpush1.msra.mxu0 0.0
    %3212 = vmatprep.subr.mxu0 0.0
    %3213 = vmatpush1.msra.mxu0 0.0
    %3214 = vmatprep.subr.mxu0 0.0
    %3215 = vmatpush1.msra.mxu0 0.0
    %3216 = vmatprep.subr.mxu0 0.0
    %3217 = vmatpush1.msra.mxu0 0.0
    %3218 = vmatprep.subr.mxu0 0.0
    %3219 = vmatpush1.msra.mxu0 0.0
    %3220 = vmatprep.subr.mxu0 0.0
    %3221 = vmatpush1.msra.mxu0 0.0
    %3222 = vmatprep.subr.mxu0 0.0
    %3223 = vmatpush1.msra.mxu0 0.0
    %3224 = vmatprep.subr.mxu0 0.0
    %3225 = vmatpush1.msra.mxu0 0.0
    %3226 = vmatprep.subr.mxu0 0.0
    %3227 = vmatpush1.msra.mxu0 0.0
    %3228 = vmatprep.subr.mxu0 0.0
    %3229 = vmatpush1.msra.mxu0 0.0
    %3230 = vmatprep.subr.mxu0 0.0
    %3231 = vmatpush1.msra.mxu0 0.0
    %3232 = vmatprep.subr.mxu0 0.0
    %3233 = vmatpush1.msra.mxu0 0.0
    %3234 = vmatprep.subr.mxu0 0.0
    %3235 = vmatpush1.msra.mxu0 0.0
    %3236 = vmatprep.subr.mxu0 0.0
    %3237 = vmatpush1.msra.mxu0 0.0
    %3238 = vmatprep.subr.mxu0 0.0
    %3239 = vmatpush1.msra.mxu0 0.0
    %3240 = vmatprep.subr.mxu0 0.0
    %3241 = vmatpush1.msra.mxu0 0.0
    %3242 = vmatprep.subr.mxu0 0.0
    %3243 = vmatpush1.msra.mxu0 0.0
    %3244 = vmatprep.subr.mxu0 0.0
    %3245 = vmatpush1.msra.mxu0 0.0
    %3246 = vmatprep.subr.mxu0 0.0
    %3247 = vmatpush1.msra.mxu0 0.0
    %3248 = vmatprep.subr.mxu0 0.0
    %3249 = vmatpush1.msra.mxu0 0.0
    %3250 = vmatprep.subr.mxu0 0.0
    %3251 = vmatpush1.msra.mxu0 0.0
    %3252 = vmatprep.subr.mxu0 0.0
    %3253 = vmatpush1.msra.mxu0 0.0
    %3254 = vmatprep.subr.mxu0 0.0
    %3255 = vmatpush1.msra.mxu0 0.0
    %3256 = vmatprep.subr.mxu0 0.0
    %3257 = vmatpush1.msra.mxu0 0.0
    %3258 = vmatprep.subr.mxu0 0.0
    %3259 = vmatpush1.msra.mxu0 0.0
    %3260 = vmatprep.subr.mxu0 0.0
    %3261 = vmatpush1.msra.mxu0 0.0
    %3262 = vmatprep.subr.mxu0 0.0
    %3263 = vmatpush1.msra.mxu0 0.0
    %3264 = vmatprep.subr.mxu0 0.0
    %3265 = vmatpush1.msra.mxu0 0.0
    %3266 = vmatprep.subr.mxu0 0.0
    %3267 = vmatpush1.msra.mxu0 0.0
    %3268 = vmatprep.mubr.f32.mxu0 0.0
    %3269 = vmatmul.mubr.f32.gmra.mrb[0].mxu0 %v3202
    %v3270 = vpop.f32.mrb[0].mxu0
    %v3271 = vadd.f32 0.0, %v3270
    %v3272 = vpop.f32.mrb[0].mxu0
    %v3273 = vadd.f32 0.0, %v3272
    %3274 = vdwg.mxu0
    %3275 = vmatprep.subr.mxu0 0.0
    %3276 = vmatpush1.msra.mxu0 %v3199
    %3277 = vmatprep.subr.mxu0 0.0
    %3278 = vmatpush1.msra.mxu0 0.0
    %3279 = vmatprep.subr.mxu0 0.0
    %3280 = vmatpush1.msra.mxu0 0.0
    %3281 = vmatprep.subr.mxu0 0.0
    %3282 = vmatpush1.msra.mxu0 0.0
    %3283 = vmatprep.subr.mxu0 0.0
    %3284 = vmatpush1.msra.mxu0 0.0
    %3285 = vmatprep.subr.mxu0 0.0
    %3286 = vmatpush1.msra.mxu0 0.0
    %3287 = vmatprep.subr.mxu0 0.0
    %3288 = vmatpush1.msra.mxu0 0.0
    %3289 = vmatprep.subr.mxu0 0.0
    %3290 = vmatpush1.msra.mxu0 0.0
    %3291 = vmatprep.subr.mxu0 0.0
    %3292 = vmatpush1.msra.mxu0 0.0
    %3293 = vmatprep.subr.mxu0 0.0
    %3294 = vmatpush1.msra.mxu0 0.0
    %3295 = vmatprep.subr.mxu0 0.0
    %3296 = vmatpush1.msra.mxu0 0.0
    %3297 = vmatprep.subr.mxu0 0.0
    %3298 = vmatpush1.msra.mxu0 0.0
    %3299 = vmatprep.subr.mxu0 0.0
    %3300 = vmatpush1.msra.mxu0 0.0
    %3301 = vmatprep.subr.mxu0 0.0
    %3302 = vmatpush1.msra.mxu0 0.0
    %3303 = vmatprep.subr.mxu0 0.0
    %3304 = vmatpush1.msra.mxu0 0.0
    %3305 = vmatprep.subr.mxu0 0.0
    %3306 = vmatpush1.msra.mxu0 0.0
    %3307 = vmatprep.subr.mxu0 0.0
    %3308 = vmatpush1.msra.mxu0 0.0
    %3309 = vmatprep.subr.mxu0 0.0
    %3310 = vmatpush1.msra.mxu0 0.0
    %3311 = vmatprep.subr.mxu0 0.0
    %3312 = vmatpush1.msra.mxu0 0.0
    %3313 = vmatprep.subr.mxu0 0.0
    %3314 = vmatpush1.msra.mxu0 0.0
    %3315 = vmatprep.subr.mxu0 0.0
    %3316 = vmatpush1.msra.mxu0 0.0
    %3317 = vmatprep.subr.mxu0 0.0
    %3318 = vmatpush1.msra.mxu0 0.0
    %3319 = vmatprep.subr.mxu0 0.0
    %3320 = vmatpush1.msra.mxu0 0.0
    %3321 = vmatprep.subr.mxu0 0.0
    %3322 = vmatpush1.msra.mxu0 0.0
    %3323 = vmatprep.subr.mxu0 0.0
    %3324 = vmatpush1.msra.mxu0 0.0
    %3325 = vmatprep.subr.mxu0 0.0
    %3326 = vmatpush1.msra.mxu0 0.0
    %3327 = vmatprep.subr.mxu0 0.0
    %3328 = vmatpush1.msra.mxu0 0.0
    %3329 = vmatprep.subr.mxu0 0.0
    %3330 = vmatpush1.msra.mxu0 0.0
    %3331 = vmatprep.subr.mxu0 0.0
    %3332 = vmatpush1.msra.mxu0 0.0
    %3333 = vmatprep.subr.mxu0 0.0
    %3334 = vmatpush1.msra.mxu0 0.0
    %3335 = vmatprep.subr.mxu0 0.0
    %3336 = vmatpush1.msra.mxu0 0.0
    %3337 = vmatprep.subr.mxu0 0.0
    %3338 = vmatpush1.msra.mxu0 0.0
    %3339 = vmatprep.mubr.f32.mxu0 0.0
    %3340 = vmatmul.mubr.f32.gmra.mrb[0].mxu0 %v3202
    %v3341 = vpop.f32.mrb[0].mxu0
    %v3342 = vadd.f32 0.0, %v3341
    %v3343 = vpop.f32.mrb[0].mxu0
    %3344 = vdwg.mxu0
    %v3345 = vld [vmem:[%s10] sm:$0xff]
    %v3346 = vld [vmem:[%s10 + $0x8] sm:$0xff]
    %v3347 = vld [vmem:[%s10 + $0x10] sm:$0xff]
    %v3348 = vld [vmem:[%s10 + $0x18] sm:$0xff]
    %v3349 = vld [vmem:[%s10 + $0x20] sm:$0xff]
    %v3350 = vld [vmem:[%s10 + $0x28] sm:$0xff]
    %v3351 = vld [vmem:[%s10 + $0x30] sm:$0xff]
    %v3352 = vld [vmem:[%s10 + $0x38] sm:$0xff]
    %v3353 = vld [vmem:[%s10 + $0x40] sm:$0xff]
    %v3354 = vld [vmem:[%s10 + $0x48] sm:$0xff]
    %v3355 = vld [vmem:[%s10 + $0x50] sm:$0xff]
    %v3356 = vld [vmem:[%s10 + $0x58] sm:$0xff]
    %v3357 = vld [vmem:[%s10 + $0x60] sm:$0xff]
    %v3358 = vld [vmem:[%s10 + $0x68] sm:$0xff]
    %v3359 = vld [vmem:[%s10 + $0x70] sm:$0xff]
    %v3360 = vld [vmem:[%s10 + $0x78] sm:$0xff]
    %v3361 = vld [vmem:[%s10 + $0x80] sm:$0xff]
    %v3362 = vld [vmem:[%s10 + $0x88] sm:$0xff]
    %v3363 = vld [vmem:[%s10 + $0x90] sm:$0xff]
    %v3364 = vld [vmem:[%s10 + $0x98] sm:$0xff]
    %v3365 = vld [vmem:[%s10 + $0xa0] sm:$0xff]
    %v3366 = vld [vmem:[%s10 + $0xa8] sm:$0xff]
    %v3367 = vld [vmem:[%s10 + $0xb0] sm:$0xff]
    %v3368 = vld [vmem:[%s10 + $0xb8] sm:$0xff]
    %v3369 = vld [vmem:[%s10 + $0xc0] sm:$0xff]
    %v3370 = vld [vmem:[%s10 + $0xc8] sm:$0xff]
    %v3371 = vld [vmem:[%s10 + $0xd0] sm:$0xff]
    %v3372 = vld [vmem:[%s10 + $0xd8] sm:$0xff]
    %v3373 = vld [vmem:[%s10 + $0xe0] sm:$0xff]
    %v3374 = vld [vmem:[%s10 + $0xe8] sm:$0xff]
    %v3375 = vld [vmem:[%s10 + $0xf0] sm:$0xff]
    %v3376 = vld [vmem:[%s10 + $0xf8] sm:$0xff]
    %v3377 = vld [vmem:[%s10 + $0x100] sm:$0xff]
    %v3378 = vld [vmem:[%s10 + $0x108] sm:$0xff]
    %v3379 = vld [vmem:[%s10 + $0x110] sm:$0xff]
    %v3380 = vld [vmem:[%s10 + $0x118] sm:$0xff]
    %v3381 = vld [vmem:[%s10 + $0x120] sm:$0xff]
    %v3382 = vld [vmem:[%s10 + $0x128] sm:$0xff]
    %v3383 = vld [vmem:[%s10 + $0x130] sm:$0xff]
    %v3384 = vld [vmem:[%s10 + $0x138] sm:$0xff]
    %v3385 = vld [vmem:[%s10 + $0x140] sm:$0xff]
    %v3386 = vld [vmem:[%s10 + $0x148] sm:$0xff]
    %v3387 = vld [vmem:[%s10 + $0x150] sm:$0xff]
    %v3388 = vld [vmem:[%s10 + $0x158] sm:$0xff]
    %v3389 = vld [vmem:[%s10 + $0x160] sm:$0xff]
    %v3390 = vld [vmem:[%s10 + $0x168] sm:$0xff]
    %v3391 = vld [vmem:[%s10 + $0x170] sm:$0xff]
    %v3392 = vld [vmem:[%s10 + $0x178] sm:$0xff]
    %s3393 = scalar_lea.vmem %s9, 2
    %v3394 = vld [vmem:[%s3393] sm:$0x3]
    %v3396 = vsel %vm592, %v3394, 0
    %3398 = vmatprep.subr.mxu0 %v3198
    %3399 = vmatpush1.msra.mxu0 %v3197
    %3400 = vmatprep.subr.mxu0 0.0
    %3401 = vmatpush1.msra.mxu0 0.0
    %3402 = vmatprep.subr.mxu0 0.0
    %3403 = vmatpush1.msra.mxu0 0.0
    %3404 = vmatprep.subr.mxu0 0.0
    %3405 = vmatpush1.msra.mxu0 0.0
    %3406 = vmatprep.subr.mxu0 0.0
    %3407 = vmatpush1.msra.mxu0 0.0
    %3408 = vmatprep.subr.mxu0 0.0
    %3409 = vmatpush1.msra.mxu0 0.0
    %3410 = vmatprep.subr.mxu0 0.0
    %3411 = vmatpush1.msra.mxu0 0.0
    %3412 = vmatprep.subr.mxu0 0.0
    %3413 = vmatpush1.msra.mxu0 0.0
    %3414 = vmatprep.subr.mxu0 0.0
    %3415 = vmatpush1.msra.mxu0 0.0
    %3416 = vmatprep.subr.mxu0 0.0
    %3417 = vmatpush1.msra.mxu0 0.0
    %3418 = vmatprep.subr.mxu0 0.0
    %3419 = vmatpush1.msra.mxu0 0.0
    %3420 = vmatprep.subr.mxu0 0.0
    %3421 = vmatpush1.msra.mxu0 0.0
    %3422 = vmatprep.subr.mxu0 0.0
    %3423 = vmatpush1.msra.mxu0 0.0
    %3424 = vmatprep.subr.mxu0 0.0
    %3425 = vmatpush1.msra.mxu0 0.0
    %3426 = vmatprep.subr.mxu0 0.0
    %3427 = vmatpush1.msra.mxu0 0.0
    %3428 = vmatprep.subr.mxu0 0.0
    %3429 = vmatpush1.msra.mxu0 0.0
    %3430 = vmatprep.subr.mxu0 0.0
    %3431 = vmatpush1.msra.mxu0 0.0
    %3432 = vmatprep.subr.mxu0 0.0
    %3433 = vmatpush1.msra.mxu0 0.0
    %3434 = vmatprep.subr.mxu0 0.0
    %3435 = vmatpush1.msra.mxu0 0.0
    %3436 = vmatprep.subr.mxu0 0.0
    %3437 = vmatpush1.msra.mxu0 0.0
    %3438 = vmatprep.subr.mxu0 0.0
    %3439 = vmatpush1.msra.mxu0 0.0
    %3440 = vmatprep.subr.mxu0 0.0
    %3441 = vmatpush1.msra.mxu0 0.0
    %3442 = vmatprep.subr.mxu0 0.0
    %3443 = vmatpush1.msra.mxu0 0.0
    %3444 = vmatprep.subr.mxu0 0.0
    %3445 = vmatpush1.msra.mxu0 0.0
    %3446 = vmatprep.subr.mxu0 0.0
    %3447 = vmatpush1.msra.mxu0 0.0
    %3448 = vmatprep.subr.mxu0 0.0
    %3449 = vmatpush1.msra.mxu0 0.0
    %3450 = vmatprep.subr.mxu0 0.0
    %3451 = vmatpush1.msra.mxu0 0.0
    %3452 = vmatprep.subr.mxu0 0.0
    %3453 = vmatpush1.msra.mxu0 0.0
    %3454 = vmatprep.subr.mxu0 0.0
    %3455 = vmatpush1.msra.mxu0 0.0
    %3456 = vmatprep.subr.mxu0 0.0
    %3457 = vmatpush1.msra.mxu0 0.0
    %3458 = vmatprep.subr.mxu0 0.0
    %3459 = vmatpush1.msra.mxu0 0.0
    %3460 = vmatprep.subr.mxu0 0.0
    %3461 = vmatpush1.msra.mxu0 0.0
    %3462 = vmatprep.mubr.f32.mxu0 0.0
    %3463 = vmatmul.mubr.f32.gmra.mrb[0].mxu0 %v3396
    %v3464 = vpop.f32.mrb[0].mxu0
    %v3465 = vadd.f32 0.0, %v3464
    %v3466 = vpop.f32.mrb[0].mxu0
    %v3467 = vadd.f32 0.0, %v3466
    %3468 = vdwg.mxu0
    %3469 = vmatprep.subr.mxu0 0.0
    %3470 = vmatpush1.msra.mxu0 %v3199
    %3471 = vmatprep.subr.mxu0 0.0
    %3472 = vmatpush1.msra.mxu0 0.0
    %3473 = vmatprep.subr.mxu0 0.0
    %3474 = vmatpush1.msra.mxu0 0.0
    %3475 = vmatprep.subr.mxu0 0.0
    %3476 = vmatpush1.msra.mxu0 0.0
    %3477 = vmatprep.subr.mxu0 0.0
    %3478 = vmatpush1.msra.mxu0 0.0
    %3479 = vmatprep.subr.mxu0 0.0
    %3480 = vmatpush1.msra.mxu0 0.0
    %3481 = vmatprep.subr.mxu0 0.0
    %3482 = vmatpush1.msra.mxu0 0.0
    %3483 = vmatprep.subr.mxu0 0.0
    %3484 = vmatpush1.msra.mxu0 0.0
    %3485 = vmatprep.subr.mxu0 0.0
    %3486 = vmatpush1.msra.mxu0 0.0
    %3487 = vmatprep.subr.mxu0 0.0
    %3488 = vmatpush1.msra.mxu0 0.0
    %3489 = vmatprep.subr.mxu0 0.0
    %3490 = vmatpush1.msra.mxu0 0.0
    %3491 = vmatprep.subr.mxu0 0.0
    %3492 = vmatpush1.msra.mxu0 0.0
    %3493 = vmatprep.subr.mxu0 0.0
    %3494 = vmatpush1.msra.mxu0 0.0
    %3495 = vmatprep.subr.mxu0 0.0
    %3496 = vmatpush1.msra.mxu0 0.0
    %3497 = vmatprep.subr.mxu0 0.0
    %3498 = vmatpush1.msra.mxu0 0.0
    %3499 = vmatprep.subr.mxu0 0.0
    %3500 = vmatpush1.msra.mxu0 0.0
    %3501 = vmatprep.subr.mxu0 0.0
    %3502 = vmatpush1.msra.mxu0 0.0
    %3503 = vmatprep.subr.mxu0 0.0
    %3504 = vmatpush1.msra.mxu0 0.0
    %3505 = vmatprep.subr.mxu0 0.0
    %3506 = vmatpush1.msra.mxu0 0.0
    %3507 = vmatprep.subr.mxu0 0.0
    %3508 = vmatpush1.msra.mxu0 0.0
    %3509 = vmatprep.subr.mxu0 0.0
    %3510 = vmatpush1.msra.mxu0 0.0
    %3511 = vmatprep.subr.mxu0 0.0
    %3512 = vmatpush1.msra.mxu0 0.0
    %3513 = vmatprep.subr.mxu0 0.0
    %3514 = vmatpush1.msra.mxu0 0.0
    %3515 = vmatprep.subr.mxu0 0.0
    %3516 = vmatpush1.msra.mxu0 0.0
    %3517 = vmatprep.subr.mxu0 0.0
    %3518 = vmatpush1.msra.mxu0 0.0
    %3519 = vmatprep.subr.mxu0 0.0
    %3520 = vmatpush1.msra.mxu0 0.0
    %3521 = vmatprep.subr.mxu0 0.0
    %3522 = vmatpush1.msra.mxu0 0.0
    %3523 = vmatprep.subr.mxu0 0.0
    %3524 = vmatpush1.msra.mxu0 0.0
    %3525 = vmatprep.subr.mxu0 0.0
    %3526 = vmatpush1.msra.mxu0 0.0
    %3527 = vmatprep.subr.mxu0 0.0
    %3528 = vmatpush1.msra.mxu0 0.0
    %3529 = vmatprep.subr.mxu0 0.0
    %3530 = vmatpush1.msra.mxu0 0.0
    %3531 = vmatprep.subr.mxu0 0.0
    %3532 = vmatpush1.msra.mxu0 0.0
    %3533 = vmatprep.mubr.f32.mxu0 0.0
    %3534 = vmatmul.mubr.f32.gmra.mrb[0].mxu0 %v3396
    %v3535 = vpop.f32.mrb[0].mxu0
    %v3536 = vadd.f32 0.0, %v3535
    %v3537 = vpop.f32.mrb[0].mxu0
    %3538 = vdwg.mxu0
    %s3539 = scalar_lea.vmem %s10, 384
    %v3540 = vld [vmem:[%s3539] sm:$0xff]
    %v3541 = vld [vmem:[%s3539 + $0x8] sm:$0xff]
    %v3542 = vld [vmem:[%s3539 + $0x10] sm:$0xff]
    %v3543 = vld [vmem:[%s3539 + $0x18] sm:$0xff]
    %v3544 = vld [vmem:[%s3539 + $0x20] sm:$0xff]
    %v3545 = vld [vmem:[%s3539 + $0x28] sm:$0xff]
    %v3546 = vld [vmem:[%s3539 + $0x30] sm:$0xff]
    %v3547 = vld [vmem:[%s3539 + $0x38] sm:$0xff]
    %v3548 = vld [vmem:[%s3539 + $0x40] sm:$0xff]
    %v3549 = vld [vmem:[%s3539 + $0x48] sm:$0xff]
    %v3550 = vld [vmem:[%s3539 + $0x50] sm:$0xff]
    %v3551 = vld [vmem:[%s3539 + $0x58] sm:$0xff]
    %v3552 = vld [vmem:[%s3539 + $0x60] sm:$0xff]
    %v3553 = vld [vmem:[%s3539 + $0x68] sm:$0xff]
    %v3554 = vld [vmem:[%s3539 + $0x70] sm:$0xff]
    %v3555 = vld [vmem:[%s3539 + $0x78] sm:$0xff]
    %v3556 = vld [vmem:[%s3539 + $0x80] sm:$0xff]
    %v3557 = vld [vmem:[%s3539 + $0x88] sm:$0xff]
    %v3558 = vld [vmem:[%s3539 + $0x90] sm:$0xff]
    %v3559 = vld [vmem:[%s3539 + $0x98] sm:$0xff]
    %v3560 = vld [vmem:[%s3539 + $0xa0] sm:$0xff]
    %v3561 = vld [vmem:[%s3539 + $0xa8] sm:$0xff]
    %v3562 = vld [vmem:[%s3539 + $0xb0] sm:$0xff]
    %v3563 = vld [vmem:[%s3539 + $0xb8] sm:$0xff]
    %v3564 = vld [vmem:[%s3539 + $0xc0] sm:$0xff]
    %v3565 = vld [vmem:[%s3539 + $0xc8] sm:$0xff]
    %v3566 = vld [vmem:[%s3539 + $0xd0] sm:$0xff]
    %v3567 = vld [vmem:[%s3539 + $0xd8] sm:$0xff]
    %v3568 = vld [vmem:[%s3539 + $0xe0] sm:$0xff]
    %v3569 = vld [vmem:[%s3539 + $0xe8] sm:$0xff]
    %v3570 = vld [vmem:[%s3539 + $0xf0] sm:$0xff]
    %v3571 = vld [vmem:[%s3539 + $0xf8] sm:$0xff]
    %v3572 = vld [vmem:[%s3539 + $0x100] sm:$0xff]
    %v3573 = vld [vmem:[%s3539 + $0x108] sm:$0xff]
    %v3574 = vld [vmem:[%s3539 + $0x110] sm:$0xff]
    %v3575 = vld [vmem:[%s3539 + $0x118] sm:$0xff]
    %v3576 = vld [vmem:[%s3539 + $0x120] sm:$0xff]
    %v3577 = vld [vmem:[%s3539 + $0x128] sm:$0xff]
    %v3578 = vld [vmem:[%s3539 + $0x130] sm:$0xff]
    %v3579 = vld [vmem:[%s3539 + $0x138] sm:$0xff]
    %v3580 = vld [vmem:[%s3539 + $0x140] sm:$0xff]
    %v3581 = vld [vmem:[%s3539 + $0x148] sm:$0xff]
    %v3582 = vld [vmem:[%s3539 + $0x150] sm:$0xff]
    %v3583 = vld [vmem:[%s3539 + $0x158] sm:$0xff]
    %v3584 = vld [vmem:[%s3539 + $0x160] sm:$0xff]
    %v3585 = vld [vmem:[%s3539 + $0x168] sm:$0xff]
    %v3586 = vld [vmem:[%s3539 + $0x170] sm:$0xff]
    %v3587 = vld [vmem:[%s3539 + $0x178] sm:$0xff]
    %3588 = vmatprep.subr.mxu0 0.0
    %3589 = vmatpush1.msra.mxu0 %v3540
    %3590 = vmatprep.subr.mxu0 0.0
    %3591 = vmatpush1.msra.mxu0 %v3541
    %3592 = vmatprep.subr.mxu0 0.0
    %3593 = vmatpush1.msra.mxu0 %v3542
    %3594 = vmatprep.subr.mxu0 0.0
    %3595 = vmatpush1.msra.mxu0 %v3543
    %3596 = vmatprep.subr.mxu0 0.0
    %3597 = vmatpush1.msra.mxu0 %v3544
    %3598 = vmatprep.subr.mxu0 0.0
    %3599 = vmatpush1.msra.mxu0 %v3545
    %3600 = vmatprep.subr.mxu0 0.0
    %3601 = vmatpush1.msra.mxu0 %v3546
    %3602 = vmatprep.subr.mxu0 0.0
    %3603 = vmatpush1.msra.mxu0 %v3547
    %3604 = vmatprep.subr.mxu0 0.0
    %3605 = vmatpush1.msra.mxu0 %v3548
    %3606 = vmatprep.subr.mxu0 0.0
    %3607 = vmatpush1.msra.mxu0 %v3549
    %3608 = vmatprep.subr.mxu0 0.0
    %3609 = vmatpush1.msra.mxu0 %v3550
    %3610 = vmatprep.subr.mxu0 0.0
    %3611 = vmatpush1.msra.mxu0 %v3551
    %3612 = vmatprep.subr.mxu0 0.0
    %3613 = vmatpush1.msra.mxu0 %v3552
    %3614 = vmatprep.subr.mxu0 0.0
    %3615 = vmatpush1.msra.mxu0 %v3553
    %3616 = vmatprep.subr.mxu0 0.0
    %3617 = vmatpush1.msra.mxu0 %v3554
    %3618 = vmatprep.subr.mxu0 0.0
    %3619 = vmatpush1.msra.mxu0 %v3555
    %3620 = vmatprep.subr.mxu0 0.0
    %3621 = vmatpush1.msra.mxu0 %v3556
    %3622 = vmatprep.subr.mxu0 0.0
    %3623 = vmatpush1.msra.mxu0 %v3557
    %3624 = vmatprep.subr.mxu0 0.0
    %3625 = vmatpush1.msra.mxu0 %v3558
    %3626 = vmatprep.subr.mxu0 0.0
    %3627 = vmatpush1.msra.mxu0 %v3559
    %3628 = vmatprep.subr.mxu0 0.0
    %3629 = vmatpush1.msra.mxu0 %v3560
    %3630 = vmatprep.subr.mxu0 0.0
    %3631 = vmatpush1.msra.mxu0 %v3561
    %3632 = vmatprep.subr.mxu0 0.0
    %3633 = vmatpush1.msra.mxu0 %v3562
    %3634 = vmatprep.subr.mxu0 0.0
    %3635 = vmatpush1.msra.mxu0 %v3563
    %3636 = vmatprep.subr.mxu0 0.0
    %3637 = vmatpush1.msra.mxu0 %v3564
    %3638 = vmatprep.subr.mxu0 0.0
    %3639 = vmatpush1.msra.mxu0 %v3565
    %3640 = vmatprep.subr.mxu0 0.0
    %3641 = vmatpush1.msra.mxu0 %v3566
    %3642 = vmatprep.subr.mxu0 0.0
    %3643 = vmatpush1.msra.mxu0 %v3567
    %3644 = vmatprep.subr.mxu0 0.0
    %3645 = vmatpush1.msra.mxu0 %v3568
    %3646 = vmatprep.subr.mxu0 0.0
    %3647 = vmatpush1.msra.mxu0 %v3569
    %3648 = vmatprep.subr.mxu0 0.0
    %3649 = vmatpush1.msra.mxu0 %v3570
    %3650 = vmatprep.subr.mxu0 0.0
    %3651 = vmatpush1.msra.mxu0 %v3571
    %3652 = vmatprep.mubr.f32.mxu0 %v3467
    %3653 = vmatmul.mubr.f32.gmra.mrb[0].mxu0 %v3465
    %v3654 = vpop.f32.mrb[0].mxu0
    %v3655 = vadd.f32 0.0, %v3654
    %v3656 = vpop.f32.mrb[0].mxu0
    %3657 = vdwg.mxu0
    %3658 = vmatprep.subr.mxu0 0.0
    %3659 = vmatpush1.msra.mxu0 %v3572
    %3660 = vmatprep.subr.mxu0 0.0
    %3661 = vmatpush1.msra.mxu0 %v3573
    %3662 = vmatprep.subr.mxu0 0.0
    %3663 = vmatpush1.msra.mxu0 %v3574
    %3664 = vmatprep.subr.mxu0 0.0
    %3665 = vmatpush1.msra.mxu0 %v3575
    %3666 = vmatprep.subr.mxu0 0.0
    %3667 = vmatpush1.msra.mxu0 %v3576
    %3668 = vmatprep.subr.mxu0 0.0
    %3669 = vmatpush1.msra.mxu0 %v3577
    %3670 = vmatprep.subr.mxu0 0.0
    %3671 = vmatpush1.msra.mxu0 %v3578
    %3672 = vmatprep.subr.mxu0 0.0
    %3673 = vmatpush1.msra.mxu0 %v3579
    %3674 = vmatprep.subr.mxu0 0.0
    %3675 = vmatpush1.msra.mxu0 %v3580
    %3676 = vmatprep.subr.mxu0 0.0
    %3677 = vmatpush1.msra.mxu0 %v3581
    %3678 = vmatprep.subr.mxu0 0.0
    %3679 = vmatpush1.msra.mxu0 %v3582
    %3680 = vmatprep.subr.mxu0 0.0
    %3681 = vmatpush1.msra.mxu0 %v3583
    %3682 = vmatprep.subr.mxu0 0.0
    %3683 = vmatpush1.msra.mxu0 %v3584
    %3684 = vmatprep.subr.mxu0 0.0
    %3685 = vmatpush1.msra.mxu0 %v3585
    %3686 = vmatprep.subr.mxu0 0.0
    %3687 = vmatpush1.msra.mxu0 %v3586
    %3688 = vmatprep.subr.mxu0 0.0
    %3689 = vmatpush1.msra.mxu0 %v3587
    %3690 = vmatprep.subr.mxu0 0.0
    %3691 = vmatpush1.msra.mxu0 0.0
    %3692 = vmatprep.subr.mxu0 0.0
    %3693 = vmatpush1.msra.mxu0 0.0
    %3694 = vmatprep.subr.mxu0 0.0
    %3695 = vmatpush1.msra.mxu0 0.0
    %3696 = vmatprep.subr.mxu0 0.0
    %3697 = vmatpush1.msra.mxu0 0.0
    %3698 = vmatprep.subr.mxu0 0.0
    %3699 = vmatpush1.msra.mxu0 0.0
    %3700 = vmatprep.subr.mxu0 0.0
    %3701 = vmatpush1.msra.mxu0 0.0
    %3702 = vmatprep.subr.mxu0 0.0
    %3703 = vmatpush1.msra.mxu0 0.0
    %3704 = vmatprep.subr.mxu0 0.0
    %3705 = vmatpush1.msra.mxu0 0.0
    %3706 = vmatprep.subr.mxu0 0.0
    %3707 = vmatpush1.msra.mxu0 0.0
    %3708 = vmatprep.subr.mxu0 0.0
    %3709 = vmatpush1.msra.mxu0 0.0
    %3710 = vmatprep.subr.mxu0 0.0
    %3711 = vmatpush1.msra.mxu0 0.0
    %3712 = vmatprep.subr.mxu0 0.0
    %3713 = vmatpush1.msra.mxu0 0.0
    %3714 = vmatprep.subr.mxu0 0.0
    %3715 = vmatpush1.msra.mxu0 0.0
    %3716 = vmatprep.subr.mxu0 0.0
    %3717 = vmatpush1.msra.mxu0 0.0
    %3718 = vmatprep.subr.mxu0 0.0
    %3719 = vmatpush1.msra.mxu0 0.0
    %3720 = vmatprep.subr.mxu0 0.0
    %3721 = vmatpush1.msra.mxu0 0.0
    %3722 = vmatprep.mubr.f32.mxu0 0.0
    %3723 = vmatmul.mubr.f32.gmra.mrb[0].mxu0 %v3536
    %v3724 = vpop.f32.mrb[0].mxu0
    %v3725 = vadd.f32 %v3655, %v3724
    %v3726 = vpop.f32.mrb[0].mxu0
    %3727 = vdwg.mxu0
    %3728 = vmatprep.subr.mxu0 0.0
    %3729 = vmatpush1.msra.mxu0 %v3345
    %3730 = vmatprep.subr.mxu0 0.0
    %3731 = vmatpush1.msra.mxu0 %v3346
    %3732 = vmatprep.subr.mxu0 0.0
    %3733 = vmatpush1.msra.mxu0 %v3347
    %3734 = vmatprep.subr.mxu0 0.0
    %3735 = vmatpush1.msra.mxu0 %v3348
    %3736 = vmatprep.subr.mxu0 0.0
    %3737 = vmatpush1.msra.mxu0 %v3349
    %3738 = vmatprep.subr.mxu0 0.0
    %3739 = vmatpush1.msra.mxu0 %v3350
    %3740 = vmatprep.subr.mxu0 0.0
    %3741 = vmatpush1.msra.mxu0 %v3351
    %3742 = vmatprep.subr.mxu0 0.0
    %3743 = vmatpush1.msra.mxu0 %v3352
    %3744 = vmatprep.subr.mxu0 0.0
    %3745 = vmatpush1.msra.mxu0 %v3353
    %3746 = vmatprep.subr.mxu0 0.0
    %3747 = vmatpush1.msra.mxu0 %v3354
    %3748 = vmatprep.subr.mxu0 0.0
    %3749 = vmatpush1.msra.mxu0 %v3355
    %3750 = vmatprep.subr.mxu0 0.0
    %3751 = vmatpush1.msra.mxu0 %v3356
    %3752 = vmatprep.subr.mxu0 0.0
    %3753 = vmatpush1.msra.mxu0 %v3357
    %3754 = vmatprep.subr.mxu0 0.0
    %3755 = vmatpush1.msra.mxu0 %v3358
    %3756 = vmatprep.subr.mxu0 0.0
    %3757 = vmatpush1.msra.mxu0 %v3359
    %3758 = vmatprep.subr.mxu0 0.0
    %3759 = vmatpush1.msra.mxu0 %v3360
    %3760 = vmatprep.subr.mxu0 0.0
    %3761 = vmatpush1.msra.mxu0 %v3361
    %3762 = vmatprep.subr.mxu0 0.0
    %3763 = vmatpush1.msra.mxu0 %v3362
    %3764 = vmatprep.subr.mxu0 0.0
    %3765 = vmatpush1.msra.mxu0 %v3363
    %3766 = vmatprep.subr.mxu0 0.0
    %3767 = vmatpush1.msra.mxu0 %v3364
    %3768 = vmatprep.subr.mxu0 0.0
    %3769 = vmatpush1.msra.mxu0 %v3365
    %3770 = vmatprep.subr.mxu0 0.0
    %3771 = vmatpush1.msra.mxu0 %v3366
    %3772 = vmatprep.subr.mxu0 0.0
    %3773 = vmatpush1.msra.mxu0 %v3367
    %3774 = vmatprep.subr.mxu0 0.0
    %3775 = vmatpush1.msra.mxu0 %v3368
    %3776 = vmatprep.subr.mxu0 0.0
    %3777 = vmatpush1.msra.mxu0 %v3369
    %3778 = vmatprep.subr.mxu0 0.0
    %3779 = vmatpush1.msra.mxu0 %v3370
    %3780 = vmatprep.subr.mxu0 0.0
    %3781 = vmatpush1.msra.mxu0 %v3371
    %3782 = vmatprep.subr.mxu0 0.0
    %3783 = vmatpush1.msra.mxu0 %v3372
    %3784 = vmatprep.subr.mxu0 0.0
    %3785 = vmatpush1.msra.mxu0 %v3373
    %3786 = vmatprep.subr.mxu0 0.0
    %3787 = vmatpush1.msra.mxu0 %v3374
    %3788 = vmatprep.subr.mxu0 0.0
    %3789 = vmatpush1.msra.mxu0 %v3375
    %3790 = vmatprep.subr.mxu0 0.0
    %3791 = vmatpush1.msra.mxu0 %v3376
    %3792 = vmatprep.mubr.f32.mxu0 %v3273
    %3793 = vmatmul.mubr.f32.gmra.mrb[0].mxu0 %v3271
    %v3794 = vpop.f32.mrb[0].mxu0
    %v3795 = vadd.f32 %v3725, %v3794
    %v3796 = vpop.f32.mrb[0].mxu0
    %3797 = vdwg.mxu0
    %3798 = vmatprep.subr.mxu0 0.0
    %3799 = vmatpush1.msra.mxu0 %v3377
    %3800 = vmatprep.subr.mxu0 0.0
    %3801 = vmatpush1.msra.mxu0 %v3378
    %3802 = vmatprep.subr.mxu0 0.0
    %3803 = vmatpush1.msra.mxu0 %v3379
    %3804 = vmatprep.subr.mxu0 0.0
    %3805 = vmatpush1.msra.mxu0 %v3380
    %3806 = vmatprep.subr.mxu0 0.0
    %3807 = vmatpush1.msra.mxu0 %v3381
    %3808 = vmatprep.subr.mxu0 0.0
    %3809 = vmatpush1.msra.mxu0 %v3382
    %3810 = vmatprep.subr.mxu0 0.0
    %3811 = vmatpush1.msra.mxu0 %v3383
    %3812 = vmatprep.subr.mxu0 0.0
    %3813 = vmatpush1.msra.mxu0 %v3384
    %3814 = vmatprep.subr.mxu0 0.0
    %3815 = vmatpush1.msra.mxu0 %v3385
    %3816 = vmatprep.subr.mxu0 0.0
    %3817 = vmatpush1.msra.mxu0 %v3386
    %3818 = vmatprep.subr.mxu0 0.0
    %3819 = vmatpush1.msra.mxu0 %v3387
    %3820 = vmatprep.subr.mxu0 0.0
    %3821 = vmatpush1.msra.mxu0 %v3388
    %3822 = vmatprep.subr.mxu0 0.0
    %3823 = vmatpush1.msra.mxu0 %v3389
    %3824 = vmatprep.subr.mxu0 0.0
    %3825 = vmatpush1.msra.mxu0 %v3390
    %3826 = vmatprep.subr.mxu0 0.0
    %3827 = vmatpush1.msra.mxu0 %v3391
    %3828 = vmatprep.subr.mxu0 0.0
    %3829 = vmatpush1.msra.mxu0 %v3392
    %3830 = vmatprep.subr.mxu0 0.0
    %3831 = vmatpush1.msra.mxu0 0.0
    %3832 = vmatprep.subr.mxu0 0.0
    %3833 = vmatpush1.msra.mxu0 0.0
    %3834 = vmatprep.subr.mxu0 0.0
    %3835 = vmatpush1.msra.mxu0 0.0
    %3836 = vmatprep.subr.mxu0 0.0
    %3837 = vmatpush1.msra.mxu0 0.0
    %3838 = vmatprep.subr.mxu0 0.0
    %3839 = vmatpush1.msra.mxu0 0.0
    %3840 = vmatprep.subr.mxu0 0.0
    %3841 = vmatpush1.msra.mxu0 0.0
    %3842 = vmatprep.subr.mxu0 0.0
    %3843 = vmatpush1.msra.mxu0 0.0
    %3844 = vmatprep.subr.mxu0 0.0
    %3845 = vmatpush1.msra.mxu0 0.0
    %3846 = vmatprep.subr.mxu0 0.0
    %3847 = vmatpush1.msra.mxu0 0.0
    %3848 = vmatprep.subr.mxu0 0.0
    %3849 = vmatpush1.msra.mxu0 0.0
    %3850 = vmatprep.subr.mxu0 0.0
    %3851 = vmatpush1.msra.mxu0 0.0
    %3852 = vmatprep.subr.mxu0 0.0
    %3853 = vmatpush1.msra.mxu0 0.0
    %3854 = vmatprep.subr.mxu0 0.0
    %3855 = vmatpush1.msra.mxu0 0.0
    %3856 = vmatprep.subr.mxu0 0.0
    %3857 = vmatpush1.msra.mxu0 0.0
    %3858 = vmatprep.subr.mxu0 0.0
    %3859 = vmatpush1.msra.mxu0 0.0
    %3860 = vmatprep.subr.mxu0 0.0
    %3861 = vmatpush1.msra.mxu0 0.0
    %3862 = vmatprep.mubr.f32.mxu0 0.0
    %3863 = vmatmul.mubr.f32.gmra.mrb[0].mxu0 %v3342
    %v3864 = vpop.f32.mrb[0].mxu0
    %v3865 = vadd.f32 %v3795, %v3864
    %v3866 = vpop.f32.mrb[0].mxu0
    %3867 = vdwg.mxu0
    %s3868 = scalar_lea.vmem %s9, 4
    %v3869 = vld [vmem:[%s3868] sm:$0x3]
    %v3871 = vsel %vm592, %v3869, 0
    %3873 = vmatprep.subr.mxu0 %v3198
    %3874 = vmatpush1.msra.mxu0 %v3197
    %3875 = vmatprep.subr.mxu0 0.0
    %3876 = vmatpush1.msra.mxu0 0.0
    %3877 = vmatprep.subr.mxu0 0.0
    %3878 = vmatpush1.msra.mxu0 0.0
    %3879 = vmatprep.subr.mxu0 0.0
    %3880 = vmatpush1.msra.mxu0 0.0
    %3881 = vmatprep.subr.mxu0 0.0
    %3882 = vmatpush1.msra.mxu0 0.0
    %3883 = vmatprep.subr.mxu0 0.0
    %3884 = vmatpush1.msra.mxu0 0.0
    %3885 = vmatprep.subr.mxu0 0.0
    %3886 = vmatpush1.msra.mxu0 0.0
    %3887 = vmatprep.subr.mxu0 0.0
    %3888 = vmatpush1.msra.mxu0 0.0
    %3889 = vmatprep.subr.mxu0 0.0
    %3890 = vmatpush1.msra.mxu0 0.0
    %3891 = vmatprep.subr.mxu0 0.0
    %3892 = vmatpush1.msra.mxu0 0.0
    %3893 = vmatprep.subr.mxu0 0.0
    %3894 = vmatpush1.msra.mxu0 0.0
    %3895 = vmatprep.subr.mxu0 0.0
    %3896 = vmatpush1.msra.mxu0 0.0
    %3897 = vmatprep.subr.mxu0 0.0
    %3898 = vmatpush1.msra.mxu0 0.0
    %3899 = vmatprep.subr.mxu0 0.0
    %3900 = vmatpush1.msra.mxu0 0.0
    %3901 = vmatprep.subr.mxu0 0.0
    %3902 = vmatpush1.msra.mxu0 0.0
    %3903 = vmatprep.subr.mxu0 0.0
    %3904 = vmatpush1.msra.mxu0 0.0
    %3905 = vmatprep.subr.mxu0 0.0
    %3906 = vmatpush1.msra.mxu0 0.0
    %3907 = vmatprep.subr.mxu0 0.0
    %3908 = vmatpush1.msra.mxu0 0.0
    %3909 = vmatprep.subr.mxu0 0.0
    %3910 = vmatpush1.msra.mxu0 0.0
    %3911 = vmatprep.subr.mxu0 0.0
    %3912 = vmatpush1.msra.mxu0 0.0
    %3913 = vmatprep.subr.mxu0 0.0
    %3914 = vmatpush1.msra.mxu0 0.0
    %3915 = vmatprep.subr.mxu0 0.0
    %3916 = vmatpush1.msra.mxu0 0.0
    %3917 = vmatprep.subr.mxu0 0.0
    %3918 = vmatpush1.msra.mxu0 0.0
    %3919 = vmatprep.subr.mxu0 0.0
    %3920 = vmatpush1.msra.mxu0 0.0
    %3921 = vmatprep.subr.mxu0 0.0
    %3922 = vmatpush1.msra.mxu0 0.0
    %3923 = vmatprep.subr.mxu0 0.0
    %3924 = vmatpush1.msra.mxu0 0.0
    %3925 = vmatprep.subr.mxu0 0.0
    %3926 = vmatpush1.msra.mxu0 0.0
    %3927 = vmatprep.subr.mxu0 0.0
    %3928 = vmatpush1.msra.mxu0 0.0
    %3929 = vmatprep.subr.mxu0 0.0
    %3930 = vmatpush1.msra.mxu0 0.0
    %3931 = vmatprep.subr.mxu0 0.0
    %3932 = vmatpush1.msra.mxu0 0.0
    %3933 = vmatprep.subr.mxu0 0.0
    %3934 = vmatpush1.msra.mxu0 0.0
    %3935 = vmatprep.subr.mxu0 0.0
    %3936 = vmatpush1.msra.mxu0 0.0
    %3937 = vmatprep.mubr.f32.mxu0 0.0
    %3938 = vmatmul.mubr.f32.gmra.mrb[0].mxu0 %v3871
    %v3939 = vpop.f32.mrb[0].mxu0
    %v3940 = vadd.f32 0.0, %v3939
    %v3941 = vpop.f32.mrb[0].mxu0
    %v3942 = vadd.f32 0.0, %v3941
    %3943 = vdwg.mxu0
    %3944 = vmatprep.subr.mxu0 0.0
    %3945 = vmatpush1.msra.mxu0 %v3199
    %3946 = vmatprep.subr.mxu0 0.0
    %3947 = vmatpush1.msra.mxu0 0.0
    %3948 = vmatprep.subr.mxu0 0.0
    %3949 = vmatpush1.msra.mxu0 0.0
    %3950 = vmatprep.subr.mxu0 0.0
    %3951 = vmatpush1.msra.mxu0 0.0
    %3952 = vmatprep.subr.mxu0 0.0
    %3953 = vmatpush1.msra.mxu0 0.0
    %3954 = vmatprep.subr.mxu0 0.0
    %3955 = vmatpush1.msra.mxu0 0.0
    %3956 = vmatprep.subr.mxu0 0.0
    %3957 = vmatpush1.msra.mxu0 0.0
    %3958 = vmatprep.subr.mxu0 0.0
    %3959 = vmatpush1.msra.mxu0 0.0
    %3960 = vmatprep.subr.mxu0 0.0
    %3961 = vmatpush1.msra.mxu0 0.0
    %3962 = vmatprep.subr.mxu0 0.0
    %3963 = vmatpush1.msra.mxu0 0.0
    %3964 = vmatprep.subr.mxu0 0.0
    %3965 = vmatpush1.msra.mxu0 0.0
    %3966 = vmatprep.subr.mxu0 0.0
    %3967 = vmatpush1.msra.mxu0 0.0
    %3968 = vmatprep.subr.mxu0 0.0
    %3969 = vmatpush1.msra.mxu0 0.0
    %3970 = vmatprep.subr.mxu0 0.0
    %3971 = vmatpush1.msra.mxu0 0.0
    %3972 = vmatprep.subr.mxu0 0.0
    %3973 = vmatpush1.msra.mxu0 0.0
    %3974 = vmatprep.subr.mxu0 0.0
    %3975 = vmatpush1.msra.mxu0 0.0
    %3976 = vmatprep.subr.mxu0 0.0
    %3977 = vmatpush1.msra.mxu0 0.0
    %3978 = vmatprep.subr.mxu0 0.0
    %3979 = vmatpush1.msra.mxu0 0.0
    %3980 = vmatprep.subr.mxu0 0.0
    %3981 = vmatpush1.msra.mxu0 0.0
    %3982 = vmatprep.subr.mxu0 0.0
    %3983 = vmatpush1.msra.mxu0 0.0
    %3984 = vmatprep.subr.mxu0 0.0
    %3985 = vmatpush1.msra.mxu0 0.0
    %3986 = vmatprep.subr.mxu0 0.0
    %3987 = vmatpush1.msra.mxu0 0.0
    %3988 = vmatprep.subr.mxu0 0.0
    %3989 = vmatpush1.msra.mxu0 0.0
    %3990 = vmatprep.subr.mxu0 0.0
    %3991 = vmatpush1.msra.mxu0 0.0
    %3992 = vmatprep.subr.mxu0 0.0
    %3993 = vmatpush1.msra.mxu0 0.0
    %3994 = vmatprep.subr.mxu0 0.0
    %3995 = vmatpush1.msra.mxu0 0.0
    %3996 = vmatprep.subr.mxu0 0.0
    %3997 = vmatpush1.msra.mxu0 0.0
    %3998 = vmatprep.subr.mxu0 0.0
    %3999 = vmatpush1.msra.mxu0 0.0
    %4000 = vmatprep.subr.mxu0 0.0
    %4001 = vmatpush1.msra.mxu0 0.0
    %4002 = vmatprep.subr.mxu0 0.0
    %4003 = vmatpush1.msra.mxu0 0.0
    %4004 = vmatprep.subr.mxu0 0.0
    %4005 = vmatpush1.msra.mxu0 0.0
    %4006 = vmatprep.subr.mxu0 0.0
    %4007 = vmatpush1.msra.mxu0 0.0
    %4008 = vmatprep.mubr.f32.mxu0 0.0
    %4009 = vmatmul.mubr.f32.gmra.mrb[0].mxu0 %v3871
    %v4010 = vpop.f32.mrb[0].mxu0
    %v4011 = vadd.f32 0.0, %v4010
    %v4012 = vpop.f32.mrb[0].mxu0
    %4013 = vdwg.mxu0
    %s4014 = scalar_lea.vmem %s10, 768
    %v4015 = vld [vmem:[%s4014] sm:$0xff]
    %v4016 = vld [vmem:[%s4014 + $0x8] sm:$0xff]
    %v4017 = vld [vmem:[%s4014 + $0x10] sm:$0xff]
    %v4018 = vld [vmem:[%s4014 + $0x18] sm:$0xff]
    %v4019 = vld [vmem:[%s4014 + $0x20] sm:$0xff]
    %v4020 = vld [vmem:[%s4014 + $0x28] sm:$0xff]
    %v4021 = vld [vmem:[%s4014 + $0x30] sm:$0xff]
    %v4022 = vld [vmem:[%s4014 + $0x38] sm:$0xff]
    %v4023 = vld [vmem:[%s4014 + $0x40] sm:$0xff]
    %v4024 = vld [vmem:[%s4014 + $0x48] sm:$0xff]
    %v4025 = vld [vmem:[%s4014 + $0x50] sm:$0xff]
    %v4026 = vld [vmem:[%s4014 + $0x58] sm:$0xff]
    %v4027 = vld [vmem:[%s4014 + $0x60] sm:$0xff]
    %v4028 = vld [vmem:[%s4014 + $0x68] sm:$0xff]
    %v4029 = vld [vmem:[%s4014 + $0x70] sm:$0xff]
    %v4030 = vld [vmem:[%s4014 + $0x78] sm:$0xff]
    %v4031 = vld [vmem:[%s4014 + $0x80] sm:$0xff]
    %v4032 = vld [vmem:[%s4014 + $0x88] sm:$0xff]
    %v4033 = vld [vmem:[%s4014 + $0x90] sm:$0xff]
    %v4034 = vld [vmem:[%s4014 + $0x98] sm:$0xff]
    %v4035 = vld [vmem:[%s4014 + $0xa0] sm:$0xff]
    %v4036 = vld [vmem:[%s4014 + $0xa8] sm:$0xff]
    %v4037 = vld [vmem:[%s4014 + $0xb0] sm:$0xff]
    %v4038 = vld [vmem:[%s4014 + $0xb8] sm:$0xff]
    %v4039 = vld [vmem:[%s4014 + $0xc0] sm:$0xff]
    %v4040 = vld [vmem:[%s4014 + $0xc8] sm:$0xff]
    %v4041 = vld [vmem:[%s4014 + $0xd0] sm:$0xff]
    %v4042 = vld [vmem:[%s4014 + $0xd8] sm:$0xff]
    %v4043 = vld [vmem:[%s4014 + $0xe0] sm:$0xff]
    %v4044 = vld [vmem:[%s4014 + $0xe8] sm:$0xff]
    %v4045 = vld [vmem:[%s4014 + $0xf0] sm:$0xff]
    %v4046 = vld [vmem:[%s4014 + $0xf8] sm:$0xff]
    %v4047 = vld [vmem:[%s4014 + $0x100] sm:$0xff]
    %v4048 = vld [vmem:[%s4014 + $0x108] sm:$0xff]
    %v4049 = vld [vmem:[%s4014 + $0x110] sm:$0xff]
    %v4050 = vld [vmem:[%s4014 + $0x118] sm:$0xff]
    %v4051 = vld [vmem:[%s4014 + $0x120] sm:$0xff]
    %v4052 = vld [vmem:[%s4014 + $0x128] sm:$0xff]
    %v4053 = vld [vmem:[%s4014 + $0x130] sm:$0xff]
    %v4054 = vld [vmem:[%s4014 + $0x138] sm:$0xff]
    %v4055 = vld [vmem:[%s4014 + $0x140] sm:$0xff]
    %v4056 = vld [vmem:[%s4014 + $0x148] sm:$0xff]
    %v4057 = vld [vmem:[%s4014 + $0x150] sm:$0xff]
    %v4058 = vld [vmem:[%s4014 + $0x158] sm:$0xff]
    %v4059 = vld [vmem:[%s4014 + $0x160] sm:$0xff]
    %v4060 = vld [vmem:[%s4014 + $0x168] sm:$0xff]
    %v4061 = vld [vmem:[%s4014 + $0x170] sm:$0xff]
    %v4062 = vld [vmem:[%s4014 + $0x178] sm:$0xff]
    %4063 = vmatprep.subr.mxu0 0.0
    %4064 = vmatpush1.msra.mxu0 %v4015
    %4065 = vmatprep.subr.mxu0 0.0
    %4066 = vmatpush1.msra.mxu0 %v4016
    %4067 = vmatprep.subr.mxu0 0.0
    %4068 = vmatpush1.msra.mxu0 %v4017
    %4069 = vmatprep.subr.mxu0 0.0
    %4070 = vmatpush1.msra.mxu0 %v4018
    %4071 = vmatprep.subr.mxu0 0.0
    %4072 = vmatpush1.msra.mxu0 %v4019
    %4073 = vmatprep.subr.mxu0 0.0
    %4074 = vmatpush1.msra.mxu0 %v4020
    %4075 = vmatprep.subr.mxu0 0.0
    %4076 = vmatpush1.msra.mxu0 %v4021
    %4077 = vmatprep.subr.mxu0 0.0
    %4078 = vmatpush1.msra.mxu0 %v4022
    %4079 = vmatprep.subr.mxu0 0.0
    %4080 = vmatpush1.msra.mxu0 %v4023
    %4081 = vmatprep.subr.mxu0 0.0
    %4082 = vmatpush1.msra.mxu0 %v4024
    %4083 = vmatprep.subr.mxu0 0.0
    %4084 = vmatpush1.msra.mxu0 %v4025
    %4085 = vmatprep.subr.mxu0 0.0
    %4086 = vmatpush1.msra.mxu0 %v4026
    %4087 = vmatprep.subr.mxu0 0.0
    %4088 = vmatpush1.msra.mxu0 %v4027
    %4089 = vmatprep.subr.mxu0 0.0
    %4090 = vmatpush1.msra.mxu0 %v4028
    %4091 = vmatprep.subr.mxu0 0.0
    %4092 = vmatpush1.msra.mxu0 %v4029
    %4093 = vmatprep.subr.mxu0 0.0
    %4094 = vmatpush1.msra.mxu0 %v4030
    %4095 = vmatprep.subr.mxu0 0.0
    %4096 = vmatpush1.msra.mxu0 %v4031
    %4097 = vmatprep.subr.mxu0 0.0
    %4098 = vmatpush1.msra.mxu0 %v4032
    %4099 = vmatprep.subr.mxu0 0.0
    %4100 = vmatpush1.msra.mxu0 %v4033
    %4101 = vmatprep.subr.mxu0 0.0
    %4102 = vmatpush1.msra.mxu0 %v4034
    %4103 = vmatprep.subr.mxu0 0.0
    %4104 = vmatpush1.msra.mxu0 %v4035
    %4105 = vmatprep.subr.mxu0 0.0
    %4106 = vmatpush1.msra.mxu0 %v4036
    %4107 = vmatprep.subr.mxu0 0.0
    %4108 = vmatpush1.msra.mxu0 %v4037
    %4109 = vmatprep.subr.mxu0 0.0
    %4110 = vmatpush1.msra.mxu0 %v4038
    %4111 = vmatprep.subr.mxu0 0.0
    %4112 = vmatpush1.msra.mxu0 %v4039
    %4113 = vmatprep.subr.mxu0 0.0
    %4114 = vmatpush1.msra.mxu0 %v4040
    %4115 = vmatprep.subr.mxu0 0.0
    %4116 = vmatpush1.msra.mxu0 %v4041
    %4117 = vmatprep.subr.mxu0 0.0
    %4118 = vmatpush1.msra.mxu0 %v4042
    %4119 = vmatprep.subr.mxu0 0.0
    %4120 = vmatpush1.msra.mxu0 %v4043
    %4121 = vmatprep.subr.mxu0 0.0
    %4122 = vmatpush1.msra.mxu0 %v4044
    %4123 = vmatprep.subr.mxu0 0.0
    %4124 = vmatpush1.msra.mxu0 %v4045
    %4125 = vmatprep.subr.mxu0 0.0
    %4126 = vmatpush1.msra.mxu0 %v4046
    %4127 = vmatprep.mubr.f32.mxu0 %v3942
    %4128 = vmatmul.mubr.f32.gmra.mrb[0].mxu0 %v3940
    %v4129 = vpop.f32.mrb[0].mxu0
    %v4130 = vadd.f32 0.0, %v4129
    %v4131 = vpop.f32.mrb[0].mxu0
    %4132 = vdwg.mxu0
    %4133 = vmatprep.subr.mxu0 0.0
    %4134 = vmatpush1.msra.mxu0 %v4047
    %4135 = vmatprep.subr.mxu0 0.0
    %4136 = vmatpush1.msra.mxu0 %v4048
    %4137 = vmatprep.subr.mxu0 0.0
    %4138 = vmatpush1.msra.mxu0 %v4049
    %4139 = vmatprep.subr.mxu0 0.0
    %4140 = vmatpush1.msra.mxu0 %v4050
    %4141 = vmatprep.subr.mxu0 0.0
    %4142 = vmatpush1.msra.mxu0 %v4051
    %4143 = vmatprep.subr.mxu0 0.0
    %4144 = vmatpush1.msra.mxu0 %v4052
    %4145 = vmatprep.subr.mxu0 0.0
    %4146 = vmatpush1.msra.mxu0 %v4053
    %4147 = vmatprep.subr.mxu0 0.0
    %4148 = vmatpush1.msra.mxu0 %v4054
    %4149 = vmatprep.subr.mxu0 0.0
    %4150 = vmatpush1.msra.mxu0 %v4055
    %4151 = vmatprep.subr.mxu0 0.0
    %4152 = vmatpush1.msra.mxu0 %v4056
    %4153 = vmatprep.subr.mxu0 0.0
    %4154 = vmatpush1.msra.mxu0 %v4057
    %4155 = vmatprep.subr.mxu0 0.0
    %4156 = vmatpush1.msra.mxu0 %v4058
    %4157 = vmatprep.subr.mxu0 0.0
    %4158 = vmatpush1.msra.mxu0 %v4059
    %4159 = vmatprep.subr.mxu0 0.0
    %4160 = vmatpush1.msra.mxu0 %v4060
    %4161 = vmatprep.subr.mxu0 0.0
    %4162 = vmatpush1.msra.mxu0 %v4061
    %4163 = vmatprep.subr.mxu0 0.0
    %4164 = vmatpush1.msra.mxu0 %v4062
    %4165 = vmatprep.subr.mxu0 0.0
    %4166 = vmatpush1.msra.mxu0 0.0
    %4167 = vmatprep.subr.mxu0 0.0
    %4168 = vmatpush1.msra.mxu0 0.0
    %4169 = vmatprep.subr.mxu0 0.0
    %4170 = vmatpush1.msra.mxu0 0.0
    %4171 = vmatprep.subr.mxu0 0.0
    %4172 = vmatpush1.msra.mxu0 0.0
    %4173 = vmatprep.subr.mxu0 0.0
    %4174 = vmatpush1.msra.mxu0 0.0
    %4175 = vmatprep.subr.mxu0 0.0
    %4176 = vmatpush1.msra.mxu0 0.0
    %4177 = vmatprep.subr.mxu0 0.0
    %4178 = vmatpush1.msra.mxu0 0.0
    %4179 = vmatprep.subr.mxu0 0.0
    %4180 = vmatpush1.msra.mxu0 0.0
    %4181 = vmatprep.subr.mxu0 0.0
    %4182 = vmatpush1.msra.mxu0 0.0
    %4183 = vmatprep.subr.mxu0 0.0
    %4184 = vmatpush1.msra.mxu0 0.0
    %4185 = vmatprep.subr.mxu0 0.0
    %4186 = vmatpush1.msra.mxu0 0.0
    %4187 = vmatprep.subr.mxu0 0.0
    %4188 = vmatpush1.msra.mxu0 0.0
    %4189 = vmatprep.subr.mxu0 0.0
    %4190 = vmatpush1.msra.mxu0 0.0
    %4191 = vmatprep.subr.mxu0 0.0
    %4192 = vmatpush1.msra.mxu0 0.0
    %4193 = vmatprep.subr.mxu0 0.0
    %4194 = vmatpush1.msra.mxu0 0.0
    %4195 = vmatprep.subr.mxu0 0.0
    %4196 = vmatpush1.msra.mxu0 0.0
    %4197 = vmatprep.mubr.f32.mxu0 0.0
    %4198 = vmatmul.mubr.f32.gmra.mrb[0].mxu0 %v4011
    %v4199 = vpop.f32.mrb[0].mxu0
    %v4200 = vadd.f32 %v4130, %v4199
    %v4201 = vpop.f32.mrb[0].mxu0
    %4202 = vdwg.mxu0
    %v4203 = vadd.f32 %v3865, %v4200
    %s4204 = scalar_lea.vmem %s9, 6
    %v4205 = vld [vmem:[%s4204] sm:$0x3]
    %v4207 = vsel %vm592, %v4205, 0
    %4209 = vmatprep.subr.mxu0 %v3198
    %4210 = vmatpush1.msra.mxu0 %v3197
    %4211 = vmatprep.subr.mxu0 0.0
    %4212 = vmatpush1.msra.mxu0 0.0
    %4213 = vmatprep.subr.mxu0 0.0
    %4214 = vmatpush1.msra.mxu0 0.0
    %4215 = vmatprep.subr.mxu0 0.0
    %4216 = vmatpush1.msra.mxu0 0.0
    %4217 = vmatprep.subr.mxu0 0.0
    %4218 = vmatpush1.msra.mxu0 0.0
    %4219 = vmatprep.subr.mxu0 0.0
    %4220 = vmatpush1.msra.mxu0 0.0
    %4221 = vmatprep.subr.mxu0 0.0
    %4222 = vmatpush1.msra.mxu0 0.0
    %4223 = vmatprep.subr.mxu0 0.0
    %4224 = vmatpush1.msra.mxu0 0.0
    %4225 = vmatprep.subr.mxu0 0.0
    %4226 = vmatpush1.msra.mxu0 0.0
    %4227 = vmatprep.subr.mxu0 0.0
    %4228 = vmatpush1.msra.mxu0 0.0
    %4229 = vmatprep.subr.mxu0 0.0
    %4230 = vmatpush1.msra.mxu0 0.0
    %4231 = vmatprep.subr.mxu0 0.0
    %4232 = vmatpush1.msra.mxu0 0.0
    %4233 = vmatprep.subr.mxu0 0.0
    %4234 = vmatpush1.msra.mxu0 0.0
    %4235 = vmatprep.subr.mxu0 0.0
    %4236 = vmatpush1.msra.mxu0 0.0
    %4237 = vmatprep.subr.mxu0 0.0
    %4238 = vmatpush1.msra.mxu0 0.0
    %4239 = vmatprep.subr.mxu0 0.0
    %4240 = vmatpush1.msra.mxu0 0.0
    %4241 = vmatprep.subr.mxu0 0.0
    %4242 = vmatpush1.msra.mxu0 0.0
    %4243 = vmatprep.subr.mxu0 0.0
    %4244 = vmatpush1.msra.mxu0 0.0
    %4245 = vmatprep.subr.mxu0 0.0
    %4246 = vmatpush1.msra.mxu0 0.0
    %4247 = vmatprep.subr.mxu0 0.0
    %4248 = vmatpush1.msra.mxu0 0.0
    %4249 = vmatprep.subr.mxu0 0.0
    %4250 = vmatpush1.msra.mxu0 0.0
    %4251 = vmatprep.subr.mxu0 0.0
    %4252 = vmatpush1.msra.mxu0 0.0
    %4253 = vmatprep.subr.mxu0 0.0
    %4254 = vmatpush1.msra.mxu0 0.0
    %4255 = vmatprep.subr.mxu0 0.0
    %4256 = vmatpush1.msra.mxu0 0.0
    %4257 = vmatprep.subr.mxu0 0.0
    %4258 = vmatpush1.msra.mxu0 0.0
    %4259 = vmatprep.subr.mxu0 0.0
    %4260 = vmatpush1.msra.mxu0 0.0
    %4261 = vmatprep.subr.mxu0 0.0
    %4262 = vmatpush1.msra.mxu0 0.0
    %4263 = vmatprep.subr.mxu0 0.0
    %4264 = vmatpush1.msra.mxu0 0.0
    %4265 = vmatprep.subr.mxu0 0.0
    %4266 = vmatpush1.msra.mxu0 0.0
    %4267 = vmatprep.subr.mxu0 0.0
    %4268 = vmatpush1.msra.mxu0 0.0
    %4269 = vmatprep.subr.mxu0 0.0
    %4270 = vmatpush1.msra.mxu0 0.0
    %4271 = vmatprep.subr.mxu0 0.0
    %4272 = vmatpush1.msra.mxu0 0.0
    %4273 = vmatprep.mubr.f32.mxu0 0.0
    %4274 = vmatmul.mubr.f32.gmra.mrb[0].mxu0 %v4207
    %v4275 = vpop.f32.mrb[0].mxu0
    %v4276 = vadd.f32 0.0, %v4275
    %v4277 = vpop.f32.mrb[0].mxu0
    %v4278 = vadd.f32 0.0, %v4277
    %4279 = vdwg.mxu0
    %4280 = vmatprep.subr.mxu0 0.0
    %4281 = vmatpush1.msra.mxu0 %v3199
    %4282 = vmatprep.subr.mxu0 0.0
    %4283 = vmatpush1.msra.mxu0 0.0
    %4284 = vmatprep.subr.mxu0 0.0
    %4285 = vmatpush1.msra.mxu0 0.0
    %4286 = vmatprep.subr.mxu0 0.0
    %4287 = vmatpush1.msra.mxu0 0.0
    %4288 = vmatprep.subr.mxu0 0.0
    %4289 = vmatpush1.msra.mxu0 0.0
    %4290 = vmatprep.subr.mxu0 0.0
    %4291 = vmatpush1.msra.mxu0 0.0
    %4292 = vmatprep.subr.mxu0 0.0
    %4293 = vmatpush1.msra.mxu0 0.0
    %4294 = vmatprep.subr.mxu0 0.0
    %4295 = vmatpush1.msra.mxu0 0.0
    %4296 = vmatprep.subr.mxu0 0.0
    %4297 = vmatpush1.msra.mxu0 0.0
    %4298 = vmatprep.subr.mxu0 0.0
    %4299 = vmatpush1.msra.mxu0 0.0
    %4300 = vmatprep.subr.mxu0 0.0
    %4301 = vmatpush1.msra.mxu0 0.0
    %4302 = vmatprep.subr.mxu0 0.0
    %4303 = vmatpush1.msra.mxu0 0.0
    %4304 = vmatprep.subr.mxu0 0.0
    %4305 = vmatpush1.msra.mxu0 0.0
    %4306 = vmatprep.subr.mxu0 0.0
    %4307 = vmatpush1.msra.mxu0 0.0
    %4308 = vmatprep.subr.mxu0 0.0
    %4309 = vmatpush1.msra.mxu0 0.0
    %4310 = vmatprep.subr.mxu0 0.0
    %4311 = vmatpush1.msra.mxu0 0.0
    %4312 = vmatprep.subr.mxu0 0.0
    %4313 = vmatpush1.msra.mxu0 0.0
    %4314 = vmatprep.subr.mxu0 0.0
    %4315 = vmatpush1.msra.mxu0 0.0
    %4316 = vmatprep.subr.mxu0 0.0
    %4317 = vmatpush1.msra.mxu0 0.0
    %4318 = vmatprep.subr.mxu0 0.0
    %4319 = vmatpush1.msra.mxu0 0.0
    %4320 = vmatprep.subr.mxu0 0.0
    %4321 = vmatpush1.msra.mxu0 0.0
    %4322 = vmatprep.subr.mxu0 0.0
    %4323 = vmatpush1.msra.mxu0 0.0
    %4324 = vmatprep.subr.mxu0 0.0
    %4325 = vmatpush1.msra.mxu0 0.0
    %4326 = vmatprep.subr.mxu0 0.0
    %4327 = vmatpush1.msra.mxu0 0.0
    %4328 = vmatprep.subr.mxu0 0.0
    %4329 = vmatpush1.msra.mxu0 0.0
    %4330 = vmatprep.subr.mxu0 0.0
    %4331 = vmatpush1.msra.mxu0 0.0
    %4332 = vmatprep.subr.mxu0 0.0
    %4333 = vmatpush1.msra.mxu0 0.0
    %4334 = vmatprep.subr.mxu0 0.0
    %4335 = vmatpush1.msra.mxu0 0.0
    %4336 = vmatprep.subr.mxu0 0.0
    %4337 = vmatpush1.msra.mxu0 0.0
    %4338 = vmatprep.subr.mxu0 0.0
    %4339 = vmatpush1.msra.mxu0 0.0
    %4340 = vmatprep.subr.mxu0 0.0
    %4341 = vmatpush1.msra.mxu0 0.0
    %4342 = vmatprep.subr.mxu0 0.0
    %4343 = vmatpush1.msra.mxu0 0.0
    %4344 = vmatprep.mubr.f32.mxu0 0.0
    %4345 = vmatmul.mubr.f32.gmra.mrb[0].mxu0 %v4207
    %v4346 = vpop.f32.mrb[0].mxu0
    %v4347 = vadd.f32 0.0, %v4346
    %v4348 = vpop.f32.mrb[0].mxu0
    %4349 = vdwg.mxu0
    %s4350 = scalar_lea.vmem %s10, 1152
    %v4351 = vld [vmem:[%s4350] sm:$0xff]
    %v4352 = vld [vmem:[%s4350 + $0x8] sm:$0xff]
    %v4353 = vld [vmem:[%s4350 + $0x10] sm:$0xff]
    %v4354 = vld [vmem:[%s4350 + $0x18] sm:$0xff]
    %v4355 = vld [vmem:[%s4350 + $0x20] sm:$0xff]
    %v4356 = vld [vmem:[%s4350 + $0x28] sm:$0xff]
    %v4357 = vld [vmem:[%s4350 + $0x30] sm:$0xff]
    %v4358 = vld [vmem:[%s4350 + $0x38] sm:$0xff]
    %v4359 = vld [vmem:[%s4350 + $0x40] sm:$0xff]
    %v4360 = vld [vmem:[%s4350 + $0x48] sm:$0xff]
    %v4361 = vld [vmem:[%s4350 + $0x50] sm:$0xff]
    %v4362 = vld [vmem:[%s4350 + $0x58] sm:$0xff]
    %v4363 = vld [vmem:[%s4350 + $0x60] sm:$0xff]
    %v4364 = vld [vmem:[%s4350 + $0x68] sm:$0xff]
    %v4365 = vld [vmem:[%s4350 + $0x70] sm:$0xff]
    %v4366 = vld [vmem:[%s4350 + $0x78] sm:$0xff]
    %v4367 = vld [vmem:[%s4350 + $0x80] sm:$0xff]
    %v4368 = vld [vmem:[%s4350 + $0x88] sm:$0xff]
    %v4369 = vld [vmem:[%s4350 + $0x90] sm:$0xff]
    %v4370 = vld [vmem:[%s4350 + $0x98] sm:$0xff]
    %v4371 = vld [vmem:[%s4350 + $0xa0] sm:$0xff]
    %v4372 = vld [vmem:[%s4350 + $0xa8] sm:$0xff]
    %v4373 = vld [vmem:[%s4350 + $0xb0] sm:$0xff]
    %v4374 = vld [vmem:[%s4350 + $0xb8] sm:$0xff]
    %v4375 = vld [vmem:[%s4350 + $0xc0] sm:$0xff]
    %v4376 = vld [vmem:[%s4350 + $0xc8] sm:$0xff]
    %v4377 = vld [vmem:[%s4350 + $0xd0] sm:$0xff]
    %v4378 = vld [vmem:[%s4350 + $0xd8] sm:$0xff]
    %v4379 = vld [vmem:[%s4350 + $0xe0] sm:$0xff]
    %v4380 = vld [vmem:[%s4350 + $0xe8] sm:$0xff]
    %v4381 = vld [vmem:[%s4350 + $0xf0] sm:$0xff]
    %v4382 = vld [vmem:[%s4350 + $0xf8] sm:$0xff]
    %v4383 = vld [vmem:[%s4350 + $0x100] sm:$0xff]
    %v4384 = vld [vmem:[%s4350 + $0x108] sm:$0xff]
    %v4385 = vld [vmem:[%s4350 + $0x110] sm:$0xff]
    %v4386 = vld [vmem:[%s4350 + $0x118] sm:$0xff]
    %v4387 = vld [vmem:[%s4350 + $0x120] sm:$0xff]
    %v4388 = vld [vmem:[%s4350 + $0x128] sm:$0xff]
    %v4389 = vld [vmem:[%s4350 + $0x130] sm:$0xff]
    %v4390 = vld [vmem:[%s4350 + $0x138] sm:$0xff]
    %v4391 = vld [vmem:[%s4350 + $0x140] sm:$0xff]
    %v4392 = vld [vmem:[%s4350 + $0x148] sm:$0xff]
    %v4393 = vld [vmem:[%s4350 + $0x150] sm:$0xff]
    %v4394 = vld [vmem:[%s4350 + $0x158] sm:$0xff]
    %v4395 = vld [vmem:[%s4350 + $0x160] sm:$0xff]
    %v4396 = vld [vmem:[%s4350 + $0x168] sm:$0xff]
    %v4397 = vld [vmem:[%s4350 + $0x170] sm:$0xff]
    %v4398 = vld [vmem:[%s4350 + $0x178] sm:$0xff]
    %4399 = vmatprep.subr.mxu0 0.0
    %4400 = vmatpush1.msra.mxu0 %v4351
    %4401 = vmatprep.subr.mxu0 0.0
    %4402 = vmatpush1.msra.mxu0 %v4352
    %4403 = vmatprep.subr.mxu0 0.0
    %4404 = vmatpush1.msra.mxu0 %v4353
    %4405 = vmatprep.subr.mxu0 0.0
    %4406 = vmatpush1.msra.mxu0 %v4354
    %4407 = vmatprep.subr.mxu0 0.0
    %4408 = vmatpush1.msra.mxu0 %v4355
    %4409 = vmatprep.subr.mxu0 0.0
    %4410 = vmatpush1.msra.mxu0 %v4356
    %4411 = vmatprep.subr.mxu0 0.0
    %4412 = vmatpush1.msra.mxu0 %v4357
    %4413 = vmatprep.subr.mxu0 0.0
    %4414 = vmatpush1.msra.mxu0 %v4358
    %4415 = vmatprep.subr.mxu0 0.0
    %4416 = vmatpush1.msra.mxu0 %v4359
    %4417 = vmatprep.subr.mxu0 0.0
    %4418 = vmatpush1.msra.mxu0 %v4360
    %4419 = vmatprep.subr.mxu0 0.0
    %4420 = vmatpush1.msra.mxu0 %v4361
    %4421 = vmatprep.subr.mxu0 0.0
    %4422 = vmatpush1.msra.mxu0 %v4362
    %4423 = vmatprep.subr.mxu0 0.0
    %4424 = vmatpush1.msra.mxu0 %v4363
    %4425 = vmatprep.subr.mxu0 0.0
    %4426 = vmatpush1.msra.mxu0 %v4364
    %4427 = vmatprep.subr.mxu0 0.0
    %4428 = vmatpush1.msra.mxu0 %v4365
    %4429 = vmatprep.subr.mxu0 0.0
    %4430 = vmatpush1.msra.mxu0 %v4366
    %4431 = vmatprep.subr.mxu0 0.0
    %4432 = vmatpush1.msra.mxu0 %v4367
    %4433 = vmatprep.subr.mxu0 0.0
    %4434 = vmatpush1.msra.mxu0 %v4368
    %4435 = vmatprep.subr.mxu0 0.0
    %4436 = vmatpush1.msra.mxu0 %v4369
    %4437 = vmatprep.subr.mxu0 0.0
    %4438 = vmatpush1.msra.mxu0 %v4370
    %4439 = vmatprep.subr.mxu0 0.0
    %4440 = vmatpush1.msra.mxu0 %v4371
    %4441 = vmatprep.subr.mxu0 0.0
    %4442 = vmatpush1.msra.mxu0 %v4372
    %4443 = vmatprep.subr.mxu0 0.0
    %4444 = vmatpush1.msra.mxu0 %v4373
    %4445 = vmatprep.subr.mxu0 0.0
    %4446 = vmatpush1.msra.mxu0 %v4374
    %4447 = vmatprep.subr.mxu0 0.0
    %4448 = vmatpush1.msra.mxu0 %v4375
    %4449 = vmatprep.subr.mxu0 0.0
    %4450 = vmatpush1.msra.mxu0 %v4376
    %4451 = vmatprep.subr.mxu0 0.0
    %4452 = vmatpush1.msra.mxu0 %v4377
    %4453 = vmatprep.subr.mxu0 0.0
    %4454 = vmatpush1.msra.mxu0 %v4378
    %4455 = vmatprep.subr.mxu0 0.0
    %4456 = vmatpush1.msra.mxu0 %v4379
    %4457 = vmatprep.subr.mxu0 0.0
    %4458 = vmatpush1.msra.mxu0 %v4380
    %4459 = vmatprep.subr.mxu0 0.0
    %4460 = vmatpush1.msra.mxu0 %v4381
    %4461 = vmatprep.subr.mxu0 0.0
    %4462 = vmatpush1.msra.mxu0 %v4382
    %4463 = vmatprep.mubr.f32.mxu0 %v4278
    %4464 = vmatmul.mubr.f32.gmra.mrb[0].mxu0 %v4276
    %v4465 = vpop.f32.mrb[0].mxu0
    %v4466 = vadd.f32 0.0, %v4465
    %v4467 = vpop.f32.mrb[0].mxu0
    %4468 = vdwg.mxu0
    %4469 = vmatprep.subr.mxu0 0.0
    %4470 = vmatpush1.msra.mxu0 %v4383
    %4471 = vmatprep.subr.mxu0 0.0
    %4472 = vmatpush1.msra.mxu0 %v4384
    %4473 = vmatprep.subr.mxu0 0.0
    %4474 = vmatpush1.msra.mxu0 %v4385
    %4475 = vmatprep.subr.mxu0 0.0
    %4476 = vmatpush1.msra.mxu0 %v4386
    %4477 = vmatprep.subr.mxu0 0.0
    %4478 = vmatpush1.msra.mxu0 %v4387
    %4479 = vmatprep.subr.mxu0 0.0
    %4480 = vmatpush1.msra.mxu0 %v4388
    %4481 = vmatprep.subr.mxu0 0.0
    %4482 = vmatpush1.msra.mxu0 %v4389
    %4483 = vmatprep.subr.mxu0 0.0
    %4484 = vmatpush1.msra.mxu0 %v4390
    %4485 = vmatprep.subr.mxu0 0.0
    %4486 = vmatpush1.msra.mxu0 %v4391
    %4487 = vmatprep.subr.mxu0 0.0
    %4488 = vmatpush1.msra.mxu0 %v4392
    %4489 = vmatprep.subr.mxu0 0.0
    %4490 = vmatpush1.msra.mxu0 %v4393
    %4491 = vmatprep.subr.mxu0 0.0
    %4492 = vmatpush1.msra.mxu0 %v4394
    %4493 = vmatprep.subr.mxu0 0.0
    %4494 = vmatpush1.msra.mxu0 %v4395
    %4495 = vmatprep.subr.mxu0 0.0
    %4496 = vmatpush1.msra.mxu0 %v4396
    %4497 = vmatprep.subr.mxu0 0.0
    %4498 = vmatpush1.msra.mxu0 %v4397
    %4499 = vmatprep.subr.mxu0 0.0
    %4500 = vmatpush1.msra.mxu0 %v4398
    %4501 = vmatprep.subr.mxu0 0.0
    %4502 = vmatpush1.msra.mxu0 0.0
    %4503 = vmatprep.subr.mxu0 0.0
    %4504 = vmatpush1.msra.mxu0 0.0
    %4505 = vmatprep.subr.mxu0 0.0
    %4506 = vmatpush1.msra.mxu0 0.0
    %4507 = vmatprep.subr.mxu0 0.0
    %4508 = vmatpush1.msra.mxu0 0.0
    %4509 = vmatprep.subr.mxu0 0.0
    %4510 = vmatpush1.msra.mxu0 0.0
    %4511 = vmatprep.subr.mxu0 0.0
    %4512 = vmatpush1.msra.mxu0 0.0
    %4513 = vmatprep.subr.mxu0 0.0
    %4514 = vmatpush1.msra.mxu0 0.0
    %4515 = vmatprep.subr.mxu0 0.0
    %4516 = vmatpush1.msra.mxu0 0.0
    %4517 = vmatprep.subr.mxu0 0.0
    %4518 = vmatpush1.msra.mxu0 0.0
    %4519 = vmatprep.subr.mxu0 0.0
    %4520 = vmatpush1.msra.mxu0 0.0
    %4521 = vmatprep.subr.mxu0 0.0
    %4522 = vmatpush1.msra.mxu0 0.0
    %4523 = vmatprep.subr.mxu0 0.0
    %4524 = vmatpush1.msra.mxu0 0.0
    %4525 = vmatprep.subr.mxu0 0.0
    %4526 = vmatpush1.msra.mxu0 0.0
    %4527 = vmatprep.subr.mxu0 0.0
    %4528 = vmatpush1.msra.mxu0 0.0
    %4529 = vmatprep.subr.mxu0 0.0
    %4530 = vmatpush1.msra.mxu0 0.0
    %4531 = vmatprep.subr.mxu0 0.0
    %4532 = vmatpush1.msra.mxu0 0.0
    %4533 = vmatprep.mubr.f32.mxu0 0.0
    %4534 = vmatmul.mubr.f32.gmra.mrb[0].mxu0 %v4347
    %v4535 = vpop.f32.mrb[0].mxu0
    %v4536 = vadd.f32 %v4466, %v4535
    %v4537 = vpop.f32.mrb[0].mxu0
    %4538 = vdwg.mxu0
    %v4539 = vadd.f32 %v4203, %v4536
    %v4540 = vld [vmem:[%s11] sm:$0x1]
    %v4542 = vlaneseq
    %v4543 = vshrl.u32 %v4542, 7
    %v4544 = vsub.s32 0, %v4543
    %v4545 = vrot.slane %v4540, %v4544
    %v4547 = vadd.f32 %v4539, %v4545
    %vm4548 = vcmask 74752
    %4549 = vst.msk [vmem:[#allocation2] sm:$0x3] %vm4548, %v4547
    // Predicated region
    $region50: #{_lambda_.1} parent=1 // pred_check
      _
    $region51: #{_lambda_.1} parent=1 // pred_check_branch
      %4551 = sbr.rel (0) target = $region53
    $region52: #{_lambda_.1} parent=1 // pred_region
      %s4553 = ssub.s32 32, 32
      %4554 = vsyncadd [#allocation3], %s4553
      %s4556 = sshll.u32 [#allocation2], 4
      %s4557 = int_to_ptr.vmem [resolvable:$true] %s4556
      %4559 = dma.vmem_to_hbm [thread:$0]  %s4557, 32, %s12, [#allocation3]
    $region53: #{_lambda_.1} parent=1 // pred_fallthru
      _
    // Predicated region
    $region54: #{_lambda_.1} parent=1 // pred_check
      _
    $region55: #{_lambda_.1} parent=1 // pred_check_branch
      %4561 = sbr.rel (0) target = $region57
    $region56: #{_lambda_.1} parent=1 // pred_region
      %4562 = dma.done [#allocation3], 32
    $region57: #{_lambda_.1} parent=1 // pred_fallthru
      _
    %4563 = vsyncpa [#allocation3], 1

</llo_original>
